<compile_context>
chip_gen: v6e
topology: v6e:2x2x1
jax: 0.10.0
libtpu: 0.0.40
codegen_flags: <defaults>
</compile_context>

<pallas_src>
import functools
import math

import numpy as np
import jax
import jax.numpy as jnp
from jax.experimental import pallas as pl
from jax.experimental.pallas import tpu as pltpu


def _gelu(x):
    # TODO(synk): PyTorch nn.GELU() defaults to the exact erf form; the tanh
    # approximation is used (also in the reference) for guaranteed EUP lowering.
    c = math.sqrt(2.0 / math.pi)
    return 0.5 * x * (1.0 + jnp.tanh(c * (x + 0.044715 * x * x * x)))


def _lka_kernel(H, W, C, P, cfg1, cfg2,
                x_ref, w1_ref, b1_ref, w2_ref, b2_ref, w3_ref, b3_ref,
                o_ref, pad_ref, col_ref):
    # Per grid step:
    #   x_ref   (BB, H, W, C)            NHWC input block
    #   w1_ref  (K1*K1*C, C)             im2col xcorr weights (flip + transpose)
    #   w2_ref  (K2*K2*C, C)
    #   w3_ref  (C, C)                   1x1 conv (channel-transposed)
    #   b*_ref  (1, C)
    #   o_ref   (BB, H, W, C)
    #   pad_ref (BB, H+2P, W+2P, C) f32  zero-ring scratch (conv padding)
    #   col_ref (BB*H*W, KKmax*C)   f32  im2col column scratch
    BB = x_ref.shape[0]
    M = BB * H * W
    Wp = W + 2 * P

    # Zero ONLY the border strips of the padded ring; the interior is always
    # rewritten before it is read.  Done every step (scratch is per-core and
    # the grid axis is "parallel", so a program_id==0 guard would be unsafe).
    if P > 0:
        zrow = jnp.zeros((BB, P, Wp, C), jnp.float32)
        pad_ref[:, pl.ds(0, P), :, :] = zrow
        pad_ref[:, pl.ds(H + P, P), :, :] = zrow
        zcol = jnp.zeros((BB, H, P, C), jnp.float32)
        pad_ref[:, pl.ds(P, H), pl.ds(0, P), :] = zcol
        pad_ref[:, pl.ds(P, H), pl.ds(W + P, P), :] = zcol

    def conv(act_nhwc, w_ref, b_ref, K, d, p):
        # Write the current activation into the ring interior, gather the K*K
        # shifted windows into the im2col buffer, then ONE channel-mixing dot
        # over the K*K*C contraction (DEFAULT precision: bf16 pass, f32 acc).
        pad_ref[:, pl.ds(P, H), pl.ds(P, W), :] = act_nhwc
        for t in range(K * K):                       # static unroll (K = 3)
            ki, kj = divmod(t, K)
            dy = d * ki - p
            dx = d * kj - p
            win = pad_ref[:, pl.ds(P + dy, H), pl.ds(P + dx, W), :]
            col_ref[:, pl.ds(t * C, C)] = win.reshape(M, C)
        cols = col_ref[:, pl.ds(0, K * K * C)]
        return jnp.dot(cols, w_ref[...],
                       preferred_element_type=jnp.float32) + b_ref[...]

    a = _gelu(conv(x_ref[...].astype(jnp.float32), w1_ref, b1_ref, *cfg1))
    a = _gelu(conv(a.reshape(BB, H, W, C), w2_ref, b2_ref, *cfg2))
    a = _gelu(jnp.dot(a, w3_ref[...],
                      preferred_element_type=jnp.float32) + b3_ref[...])

    # Gate with a fresh read of x (already VMEM-resident).
    o_ref[...] = (a.reshape(BB, H, W, C)
                  * x_ref[...].astype(jnp.float32)).astype(o_ref.dtype)


def lka_transpose(x, params, *, kernel_sizes=(3, 3), dilation=6,
                  batch_block=1, channels_last=False):
    """LKATranspose forward.

    x: (B, C, H, W) if channels_last=False (PyTorch parity), else (B, H, W, C).
    Returns the same layout / dtype as x.
    """
    if channels_last:
        B, H, W, C = x.shape
        x_nhwc = x
    else:
        B, C, H, W = x.shape
        # Layout glue only — keep the surrounding model NHWC to avoid this
        # extra HBM round trip (use channels_last=True).
        x_nhwc = jnp.transpose(x, (0, 2, 3, 1))

    BB = batch_block
    assert B % BB == 0, "batch_block must divide batch"

    k1, k2 = kernel_sizes
    d1, d2 = 1, dilation
    p1 = k1 // 2
    p2 = dilation * (k2 - 1) // 2
    # Stride-1 ConvTranspose2d keeps the spatial size iff d*(K-1) == 2*p.
    assert d1 * (k1 - 1) == 2 * p1 and d2 * (k2 - 1) == 2 * p2, \
        "fused kernel assumes same-size ConvTranspose2d layers"
    pe1 = d1 * (k1 - 1) - p1          # equivalent cross-correlation padding
    pe2 = d2 * (k2 - 1) - p2
    assert pe1 >= 0 and pe2 >= 0, "convT-as-xcorr identity needs pe >= 0"
    P = max(pe1, pe2)
    KKmax = max(k1 * k1, k2 * k2)

    def to_xcorr_cols(wt, K):
        # ConvTranspose2d weight (Cin, Cout, K, K) -> im2col xcorr matrix
        # (K*K*Cin, Cout): spatial flip + channel transpose, taps-major.
        w = jnp.transpose(wt[:, :, ::-1, ::-1], (2, 3, 0, 1))   # (K,K,Cin,Cout)
        return w.reshape(K * K * C, C).astype(jnp.float32)

    w1 = to_xcorr_cols(params["w1"], k1)
    w2 = to_xcorr_cols(params["w2"], k2)
    w3 = params["w3"][:, :, 0, 0].astype(jnp.float32)            # (Cin, Cout)
    b1 = params["b1"].reshape(1, C).astype(jnp.float32)
    b2 = params["b2"].reshape(1, C).astype(jnp.float32)
    b3 = params["b3"].reshape(1, C).astype(jnp.float32)

    kernel = functools.partial(_lka_kernel, H, W, C, P,
                               (k1, d1, pe1), (k2, d2, pe2))

    # Explicit, generation-aware VMEM budget: padded ring + im2col scratch +
    # double-buffered x/out blocks + weights + live f32 temps, 2x headroom,
    # capped under v7x's 64 MiB physical VMEM.
    bs = 4
    blk_bytes = BB * H * W * C * bs
    pad_bytes = BB * (H + 2 * P) * (W + 2 * P) * C * bs
    col_bytes = BB * H * W * KKmax * C * bs
    w_bytes = (k1 * k1 + k2 * k2 + 1) * C * C * bs + 3 * C * bs
    need = pad_bytes + col_bytes + 4 * blk_bytes + w_bytes \
        + 3 * col_bytes + 4 * blk_bytes
    vmem_limit = int(min(max(2 * need, 32 * 1024 * 1024), 48 * 1024 * 1024))

    shared = lambda b: (0, 0)

    out_nhwc = pl.pallas_call(
        kernel,
        out_shape=jax.ShapeDtypeStruct((B, H, W, C), x.dtype),
        grid=(B // BB,),
        in_specs=[
            pl.BlockSpec((BB, H, W, C), lambda b: (b, 0, 0, 0)),   # x
            pl.BlockSpec((k1 * k1 * C, C), shared),                # w1 (im2col)
            pl.BlockSpec((1, C), shared),                          # b1
            pl.BlockSpec((k2 * k2 * C, C), shared),                # w2 (im2col)
            pl.BlockSpec((1, C), shared),                          # b2
            pl.BlockSpec((C, C), shared),                          # w3 (1x1)
            pl.BlockSpec((1, C), shared),                          # b3
        ],
        out_specs=pl.BlockSpec((BB, H, W, C), lambda b: (b, 0, 0, 0)),
        scratch_shapes=[
            pltpu.VMEM((BB, H + 2 * P, W + 2 * P, C), jnp.float32),  # pad ring
            pltpu.VMEM((BB * H * W, KKmax * C), jnp.float32),        # im2col
        ],
        compiler_params=pltpu.CompilerParams(
            dimension_semantics=("parallel",),
            vmem_limit_bytes=vmem_limit),
    )(x_nhwc, w1, b1, w2, b2, w3, b3)

    if channels_last:
        return out_nhwc
    return jnp.transpose(out_nhwc, (0, 3, 1, 2))


# ----------------------- independent numpy reference ------------------------

def _conv_transpose2d_np(x, w, b, stride, padding, dilation):
    """Direct scatter implementation of PyTorch ConvTranspose2d (NCHW)."""
    B, Cin, H, W = x.shape
    _, Cout, K1, K2 = w.shape
    Hf = (H - 1) * stride + dilation * (K1 - 1) + 1
    Wf = (W - 1) * stride + dilation * (K2 - 1) + 1
    out = np.zeros((B, Cout, Hf, Wf), np.float64)
    for ci in range(Cin):
        for co in range(Cout):
            for ki in range(K1):
                for kj in range(K2):
                    out[:, co,
                        ki * dilation:ki * dilation + (H - 1) * stride + 1:stride,
                        kj * dilation:kj * dilation + (W - 1) * stride + 1:stride] \
                        += x[:, ci] * w[ci, co, ki, kj]
    out += b.reshape(1, Cout, 1, 1)
    if padding:
        out = out[:, :, padding:Hf - padding, padding:Wf - padding]
    return out


def _gelu_np(v):
    return 0.5 * v * (1.0 + np.tanh(np.sqrt(2.0 / np.pi) * (v + 0.044715 * v ** 3)))


def _reference_np(x, params, kernel_sizes=(3, 3), dilation=6):
    x = np.asarray(x, np.float64)
    p = {k: np.asarray(v, np.float64) for k, v in params.items()}
    k1, k2 = kernel_sizes
    a = _gelu_np(_conv_transpose2d_np(x, p["w1"], p["b1"], 1, k1 // 2, 1))
    a = _gelu_np(_conv_transpose2d_np(a, p["w2"], p["b2"], 1,
                                      dilation * (k2 - 1) // 2, dilation))
    a = _gelu_np(_conv_transpose2d_np(a, p["w3"], p["b3"], 1, 0, 1))
    return a * x


def init_params(key, channels, kernel_sizes=(3, 3)):
    k1, k2 = kernel_sizes
    ks = jax.random.split(key, 6)
    u = lambda k, shape, s: jax.random.uniform(k, shape, jnp.float32, -s, s)
    s1 = 1.0 / math.sqrt(channels * k1 * k1)
    s2 = 1.0 / math.sqrt(channels * k2 * k2)
    s3 = 1.0 / math.sqrt(channels)
    return {
        "w1": u(ks[0], (channels, channels, k1, k1), s1),   # (Cin, Cout, K, K)
        "b1": u(ks[1], (channels,), s1),
        "w2": u(ks[2], (channels, channels, k2, k2), s2),
        "b2": u(ks[3], (channels,), s2),
        "w3": u(ks[4], (channels, channels, 1, 1), s3),
        "b3": u(ks[5], (channels,), s3),
    }


if __name__ == "__main__":
    B, C, H, W = 2, 4, 16, 16
    key = jax.random.PRNGKey(0)
    kp, kx = jax.random.split(key)

    params = init_params(kp, C)
    x = jax.random.normal(kx, (B, C, H, W), jnp.float32)

    out = lka_transpose(x, params, kernel_sizes=(3, 3), dilation=6)
    out = jax.block_until_ready(out)

    ref = _reference_np(np.asarray(x), {k: np.asarray(v) for k, v in params.items()})
    assert out.shape == (B, C, H, W)
    # Tolerance accounts for DEFAULT-precision (single bf16-pass) MXU matmuls,
    # adopted per the perf review in place of Precision.HIGHEST.
    assert np.allclose(np.asarray(out), ref, rtol=1e-2, atol=5e-3), \
        float(np.max(np.abs(np.asarray(out) - ref)))

    print("KERNEL_OK")
</pallas_src>

<mosaic_0001>
module attributes {stable_mosaic.version = 11 : i64} {
  func.func @_lka_kernel(%arg0: i32, %arg1: memref<1x16x16x4xf32, #tpu.memory_space<vmem>>, %arg2: memref<36x4xf32, #tpu.memory_space<vmem>>, %arg3: memref<1x4xf32, #tpu.memory_space<vmem>>, %arg4: memref<36x4xf32, #tpu.memory_space<vmem>>, %arg5: memref<1x4xf32, #tpu.memory_space<vmem>>, %arg6: memref<4x4xf32, #tpu.memory_space<vmem>>, %arg7: memref<1x4xf32, #tpu.memory_space<vmem>>, %arg8: memref<1x16x16x4xf32, #tpu.memory_space<vmem>>, %arg9: memref<1x28x28x4xf32, #tpu.memory_space<vmem>>, %arg10: memref<256x36xf32, #tpu.memory_space<vmem>>) attributes {dimension_semantics = [#tpu.dimension_semantics<parallel>], iteration_bounds = array<i64: 2>, scalar_prefetch = 0 : i64, scratch_operands = 2 : i64, tpu.core_type = #tpu.core_type<tc>, window_params = [{transform_indices = @transform_0, window_bounds = array<i64: 1, 16, 16, 4>}, {pipeline_mode = #tpu.pipeline_mode<synchronous>, transform_indices = @transform_1, window_bounds = array<i64: 36, 4>}, {pipeline_mode = #tpu.pipeline_mode<synchronous>, transform_indices = @transform_2, window_bounds = array<i64: 1, 4>}, {pipeline_mode = #tpu.pipeline_mode<synchronous>, transform_indices = @transform_3, window_bounds = array<i64: 36, 4>}, {pipeline_mode = #tpu.pipeline_mode<synchronous>, transform_indices = @transform_4, window_bounds = array<i64: 1, 4>}, {pipeline_mode = #tpu.pipeline_mode<synchronous>, transform_indices = @transform_5, window_bounds = array<i64: 4, 4>}, {pipeline_mode = #tpu.pipeline_mode<synchronous>, transform_indices = @transform_6, window_bounds = array<i64: 1, 4>}, {transform_indices = @transform_7, window_bounds = array<i64: 1, 16, 16, 4>}]} {
    %cst = arith.constant 0.000000e+00 : f32
    %0 = vector.broadcast %cst : f32 to vector<1x6x28x4xf32>
    %c0 = arith.constant 0 : index
    %c0_0 = arith.constant 0 : index
    %c0_1 = arith.constant 0 : index
    %c0_2 = arith.constant 0 : index
    %1 = vector.load %arg9[%c0, %c0_0, %c0_1, %c0_2] : memref<1x28x28x4xf32, #tpu.memory_space<vmem>>, vector<1x6x28x4xf32>
    tpu.vector_store %arg9[%c0, %c0_0, %c0_1, %c0_2], %0 {strides = array<i32>} : memref<1x28x28x4xf32, #tpu.memory_space<vmem>>, vector<1x6x28x4xf32>,
    %c0_3 = arith.constant 0 : index
    %c22 = arith.constant 22 : index
    %c0_4 = arith.constant 0 : index
    %c0_5 = arith.constant 0 : index
    %2 = vector.load %arg9[%c0_3, %c22, %c0_4, %c0_5] : memref<1x28x28x4xf32, #tpu.memory_space<vmem>>, vector<1x6x28x4xf32>
    tpu.vector_store %arg9[%c0_3, %c22, %c0_4, %c0_5], %0 {strides = array<i32>} : memref<1x28x28x4xf32, #tpu.memory_space<vmem>>, vector<1x6x28x4xf32>,
    %cst_6 = arith.constant 0.000000e+00 : f32
    %3 = vector.broadcast %cst_6 : f32 to vector<1x16x6x4xf32>
    %c0_7 = arith.constant 0 : index
    %c6 = arith.constant 6 : index
    %c0_8 = arith.constant 0 : index
    %c0_9 = arith.constant 0 : index
    %4 = vector.load %arg9[%c0_7, %c6, %c0_8, %c0_9] : memref<1x28x28x4xf32, #tpu.memory_space<vmem>>, vector<1x16x6x4xf32>
    tpu.vector_store %arg9[%c0_7, %c6, %c0_8, %c0_9], %3 {strides = array<i32>} : memref<1x28x28x4xf32, #tpu.memory_space<vmem>>, vector<1x16x6x4xf32>,
    %c0_10 = arith.constant 0 : index
    %c6_11 = arith.constant 6 : index
    %c22_12 = arith.constant 22 : index
    %c0_13 = arith.constant 0 : index
    %5 = vector.load %arg9[%c0_10, %c6_11, %c22_12, %c0_13] : memref<1x28x28x4xf32, #tpu.memory_space<vmem>>, vector<1x16x6x4xf32>
    tpu.vector_store %arg9[%c0_10, %c6_11, %c22_12, %c0_13], %3 {strides = array<i32>} : memref<1x28x28x4xf32, #tpu.memory_space<vmem>>, vector<1x16x6x4xf32>,
    %c0_14 = arith.constant 0 : index
    %c0_15 = arith.constant 0 : index
    %c0_16 = arith.constant 0 : index
    %c0_17 = arith.constant 0 : index
    %6 = vector.load %arg1[%c0_14, %c0_15, %c0_16, %c0_17] : memref<1x16x16x4xf32, #tpu.memory_space<vmem>>, vector<1x16x16x4xf32>
    %c0_18 = arith.constant 0 : index
    %c6_19 = arith.constant 6 : index
    %c6_20 = arith.constant 6 : index
    %c0_21 = arith.constant 0 : index
    %7 = vector.load %arg9[%c0_18, %c6_19, %c6_20, %c0_21] : memref<1x28x28x4xf32, #tpu.memory_space<vmem>>, vector<1x16x16x4xf32>
    tpu.vector_store %arg9[%c0_18, %c6_19, %c6_20, %c0_21], %6 {strides = array<i32>} : memref<1x28x28x4xf32, #tpu.memory_space<vmem>>, vector<1x16x16x4xf32>,
    %c0_22 = arith.constant 0 : index
    %c5 = arith.constant 5 : index
    %c5_23 = arith.constant 5 : index
    %c0_24 = arith.constant 0 : index
    %8 = vector.load %arg9[%c0_22, %c5, %c5_23, %c0_24] : memref<1x28x28x4xf32, #tpu.memory_space<vmem>>, vector<1x16x16x4xf32>
    %9 = vector.shape_cast %8 : vector<1x16x16x4xf32> to vector<256x4xf32>
    %c0_25 = arith.constant 0 : index
    %c0_26 = arith.constant 0 : index
    %10 = vector.load %arg10[%c0_25, %c0_26] : memref<256x36xf32, #tpu.memory_space<vmem>>, vector<256x4xf32>
    tpu.vector_store %arg10[%c0_25, %c0_26], %9 {strides = array<i32>} : memref<256x36xf32, #tpu.memory_space<vmem>>, vector<256x4xf32>,
    %c0_27 = arith.constant 0 : index
    %c5_28 = arith.constant 5 : index
    %c6_29 = arith.constant 6 : index
    %c0_30 = arith.constant 0 : index
    %11 = vector.load %arg9[%c0_27, %c5_28, %c6_29, %c0_30] : memref<1x28x28x4xf32, #tpu.memory_space<vmem>>, vector<1x16x16x4xf32>
    %12 = vector.shape_cast %11 : vector<1x16x16x4xf32> to vector<256x4xf32>
    %c0_31 = arith.constant 0 : index
    %c4 = arith.constant 4 : index
    %13 = vector.load %arg10[%c0_31, %c4] : memref<256x36xf32, #tpu.memory_space<vmem>>, vector<256x4xf32>
    tpu.vector_store %arg10[%c0_31, %c4], %12 {strides = array<i32>} : memref<256x36xf32, #tpu.memory_space<vmem>>, vector<256x4xf32>,
    %c0_32 = arith.constant 0 : index
    %c5_33 = arith.constant 5 : index
    %c7 = arith.constant 7 : index
    %c0_34 = arith.constant 0 : index
    %14 = vector.load %arg9[%c0_32, %c5_33, %c7, %c0_34] : memref<1x28x28x4xf32, #tpu.memory_space<vmem>>, vector<1x16x16x4xf32>
    %15 = vector.shape_cast %14 : vector<1x16x16x4xf32> to vector<256x4xf32>
    %c0_35 = arith.constant 0 : index
    %c8 = arith.constant 8 : index
    %16 = vector.load %arg10[%c0_35, %c8] : memref<256x36xf32, #tpu.memory_space<vmem>>, vector<256x4xf32>
    tpu.vector_store %arg10[%c0_35, %c8], %15 {strides = array<i32>} : memref<256x36xf32, #tpu.memory_space<vmem>>, vector<256x4xf32>,
    %c0_36 = arith.constant 0 : index
    %c6_37 = arith.constant 6 : index
    %c5_38 = arith.constant 5 : index
    %c0_39 = arith.constant 0 : index
    %17 = vector.load %arg9[%c0_36, %c6_37, %c5_38, %c0_39] : memref<1x28x28x4xf32, #tpu.memory_space<vmem>>, vector<1x16x16x4xf32>
    %18 = vector.shape_cast %17 : vector<1x16x16x4xf32> to vector<256x4xf32>
    %c0_40 = arith.constant 0 : index
    %c12 = arith.constant 12 : index
    %19 = vector.load %arg10[%c0_40, %c12] : memref<256x36xf32, #tpu.memory_space<vmem>>, vector<256x4xf32>
    tpu.vector_store %arg10[%c0_40, %c12], %18 {strides = array<i32>} : memref<256x36xf32, #tpu.memory_space<vmem>>, vector<256x4xf32>,
    %c0_41 = arith.constant 0 : index
    %c6_42 = arith.constant 6 : index
    %c6_43 = arith.constant 6 : index
    %c0_44 = arith.constant 0 : index
    %20 = vector.load %arg9[%c0_41, %c6_42, %c6_43, %c0_44] : memref<1x28x28x4xf32, #tpu.memory_space<vmem>>, vector<1x16x16x4xf32>
    %21 = vector.shape_cast %20 : vector<1x16x16x4xf32> to vector<256x4xf32>
    %c0_45 = arith.constant 0 : index
    %c16 = arith.constant 16 : index
    %22 = vector.load %arg10[%c0_45, %c16] : memref<256x36xf32, #tpu.memory_space<vmem>>, vector<256x4xf32>
    tpu.vector_store %arg10[%c0_45, %c16], %21 {strides = array<i32>} : memref<256x36xf32, #tpu.memory_space<vmem>>, vector<256x4xf32>,
    %c0_46 = arith.constant 0 : index
    %c6_47 = arith.constant 6 : index
    %c7_48 = arith.constant 7 : index
    %c0_49 = arith.constant 0 : index
    %23 = vector.load %arg9[%c0_46, %c6_47, %c7_48, %c0_49] : memref<1x28x28x4xf32, #tpu.memory_space<vmem>>, vector<1x16x16x4xf32>
    %24 = vector.shape_cast %23 : vector<1x16x16x4xf32> to vector<256x4xf32>
    %c0_50 = arith.constant 0 : index
    %c20 = arith.constant 20 : index
    %25 = vector.load %arg10[%c0_50, %c20] : memref<256x36xf32, #tpu.memory_space<vmem>>, vector<256x4xf32>
    tpu.vector_store %arg10[%c0_50, %c20], %24 {strides = array<i32>} : memref<256x36xf32, #tpu.memory_space<vmem>>, vector<256x4xf32>,
    %c0_51 = arith.constant 0 : index
    %c7_52 = arith.constant 7 : index
    %c5_53 = arith.constant 5 : index
    %c0_54 = arith.constant 0 : index
    %26 = vector.load %arg9[%c0_51, %c7_52, %c5_53, %c0_54] : memref<1x28x28x4xf32, #tpu.memory_space<vmem>>, vector<1x16x16x4xf32>
    %27 = vector.shape_cast %26 : vector<1x16x16x4xf32> to vector<256x4xf32>
    %c0_55 = arith.constant 0 : index
    %c24 = arith.constant 24 : index
    %28 = vector.load %arg10[%c0_55, %c24] : memref<256x36xf32, #tpu.memory_space<vmem>>, vector<256x4xf32>
    tpu.vector_store %arg10[%c0_55, %c24], %27 {strides = array<i32>} : memref<256x36xf32, #tpu.memory_space<vmem>>, vector<256x4xf32>,
    %c0_56 = arith.constant 0 : index
    %c7_57 = arith.constant 7 : index
    %c6_58 = arith.constant 6 : index
    %c0_59 = arith.constant 0 : index
    %29 = vector.load %arg9[%c0_56, %c7_57, %c6_58, %c0_59] : memref<1x28x28x4xf32, #tpu.memory_space<vmem>>, vector<1x16x16x4xf32>
    %30 = vector.shape_cast %29 : vector<1x16x16x4xf32> to vector<256x4xf32>
    %c0_60 = arith.constant 0 : index
    %c28 = arith.constant 28 : index
    %31 = vector.load %arg10[%c0_60, %c28] : memref<256x36xf32, #tpu.memory_space<vmem>>, vector<256x4xf32>
    tpu.vector_store %arg10[%c0_60, %c28], %30 {strides = array<i32>} : memref<256x36xf32, #tpu.memory_space<vmem>>, vector<256x4xf32>,
    %c0_61 = arith.constant 0 : index
    %c7_62 = arith.constant 7 : index
    %c7_63 = arith.constant 7 : index
    %c0_64 = arith.constant 0 : index
    %32 = vector.load %arg9[%c0_61, %c7_62, %c7_63, %c0_64] : memref<1x28x28x4xf32, #tpu.memory_space<vmem>>, vector<1x16x16x4xf32>
    %33 = vector.shape_cast %32 : vector<1x16x16x4xf32> to vector<256x4xf32>
    %c0_65 = arith.constant 0 : index
    %c32 = arith.constant 32 : index
    %34 = vector.load %arg10[%c0_65, %c32] : memref<256x36xf32, #tpu.memory_space<vmem>>, vector<256x4xf32>
    tpu.vector_store %arg10[%c0_65, %c32], %33 {strides = array<i32>} : memref<256x36xf32, #tpu.memory_space<vmem>>, vector<256x4xf32>,
    %c0_66 = arith.constant 0 : index
    %c0_67 = arith.constant 0 : index
    %35 = vector.load %arg10[%c0_66, %c0_67] : memref<256x36xf32, #tpu.memory_space<vmem>>, vector<256x36xf32>
    %c0_68 = arith.constant 0 : index
    %c0_69 = arith.constant 0 : index
    %36 = vector.load %arg2[%c0_68, %c0_69] : memref<36x4xf32, #tpu.memory_space<vmem>>, vector<36x4xf32>
    %cst_70 = arith.constant dense<0.000000e+00> : vector<256x4xf32>
    %37 = tpu.matmul %35, %36, %cst_70 {dimension_numbers = #tpu.dot_dimension_numbers<[1], [0], [0], [1], [0, 0, 1, 1], [], []>} : vector<256x36xf32>, vector<36x4xf32>, vector<256x4xf32> -> vector<256x4xf32>
    %c0_71 = arith.constant 0 : index
    %c0_72 = arith.constant 0 : index
    %38 = vector.load %arg3[%c0_71, %c0_72] : memref<1x4xf32, #tpu.memory_space<vmem>>, vector<1x4xf32>
    %39 = vector.broadcast %38 : vector<1x4xf32> to vector<256x4xf32>
    %40 = arith.addf %37, %39 : vector<256x4xf32>
    %cst_73 = arith.constant 5.000000e-01 : f32
    %41 = vector.broadcast %cst_73 : f32 to vector<256x4xf32>
    %42 = arith.mulf %41, %40 : vector<256x4xf32>
    %cst_74 = arith.constant 4.471500e-02 : f32
    %43 = vector.broadcast %cst_74 : f32 to vector<256x4xf32>
    %44 = arith.mulf %43, %40 : vector<256x4xf32>
    %45 = arith.mulf %44, %40 : vector<256x4xf32>
    %46 = arith.mulf %45, %40 : vector<256x4xf32>
    %47 = arith.addf %40, %46 : vector<256x4xf32>
    %cst_75 = arith.constant 0.797884583 : f32
    %48 = vector.broadcast %cst_75 : f32 to vector<256x4xf32>
    %49 = arith.mulf %48, %47 : vector<256x4xf32>
    %50 = math.tanh %49 : vector<256x4xf32>
    %cst_76 = arith.constant 1.000000e+00 : f32
    %51 = vector.broadcast %cst_76 : f32 to vector<256x4xf32>
    %52 = arith.addf %51, %50 : vector<256x4xf32>
    %53 = arith.mulf %42, %52 : vector<256x4xf32>
    %54 = vector.shape_cast %53 : vector<256x4xf32> to vector<1x16x16x4xf32>
    %c0_77 = arith.constant 0 : index
    %c6_78 = arith.constant 6 : index
    %c6_79 = arith.constant 6 : index
    %c0_80 = arith.constant 0 : index
    %55 = vector.load %arg9[%c0_77, %c6_78, %c6_79, %c0_80] : memref<1x28x28x4xf32, #tpu.memory_space<vmem>>, vector<1x16x16x4xf32>
    tpu.vector_store %arg9[%c0_77, %c6_78, %c6_79, %c0_80], %54 {strides = array<i32>} : memref<1x28x28x4xf32, #tpu.memory_space<vmem>>, vector<1x16x16x4xf32>,
    %c0_81 = arith.constant 0 : index
    %c0_82 = arith.constant 0 : index
    %c0_83 = arith.constant 0 : index
    %c0_84 = arith.constant 0 : index
    %56 = vector.load %arg9[%c0_81, %c0_82, %c0_83, %c0_84] : memref<1x28x28x4xf32, #tpu.memory_space<vmem>>, vector<1x16x16x4xf32>
    %57 = vector.shape_cast %56 : vector<1x16x16x4xf32> to vector<256x4xf32>
    %c0_85 = arith.constant 0 : index
    %c0_86 = arith.constant 0 : index
    %58 = vector.load %arg10[%c0_85, %c0_86] : memref<256x36xf32, #tpu.memory_space<vmem>>, vector<256x4xf32>
    tpu.vector_store %arg10[%c0_85, %c0_86], %57 {strides = array<i32>} : memref<256x36xf32, #tpu.memory_space<vmem>>, vector<256x4xf32>,
    %c0_87 = arith.constant 0 : index
    %c0_88 = arith.constant 0 : index
    %c6_89 = arith.constant 6 : index
    %c0_90 = arith.constant 0 : index
    %59 = vector.load %arg9[%c0_87, %c0_88, %c6_89, %c0_90] : memref<1x28x28x4xf32, #tpu.memory_space<vmem>>, vector<1x16x16x4xf32>
    %60 = vector.shape_cast %59 : vector<1x16x16x4xf32> to vector<256x4xf32>
    %c0_91 = arith.constant 0 : index
    %c4_92 = arith.constant 4 : index
    %61 = vector.load %arg10[%c0_91, %c4_92] : memref<256x36xf32, #tpu.memory_space<vmem>>, vector<256x4xf32>
    tpu.vector_store %arg10[%c0_91, %c4_92], %60 {strides = array<i32>} : memref<256x36xf32, #tpu.memory_space<vmem>>, vector<256x4xf32>,
    %c0_93 = arith.constant 0 : index
    %c0_94 = arith.constant 0 : index
    %c12_95 = arith.constant 12 : index
    %c0_96 = arith.constant 0 : index
    %62 = vector.load %arg9[%c0_93, %c0_94, %c12_95, %c0_96] : memref<1x28x28x4xf32, #tpu.memory_space<vmem>>, vector<1x16x16x4xf32>
    %63 = vector.shape_cast %62 : vector<1x16x16x4xf32> to vector<256x4xf32>
    %c0_97 = arith.constant 0 : index
    %c8_98 = arith.constant 8 : index
    %64 = vector.load %arg10[%c0_97, %c8_98] : memref<256x36xf32, #tpu.memory_space<vmem>>, vector<256x4xf32>
    tpu.vector_store %arg10[%c0_97, %c8_98], %63 {strides = array<i32>} : memref<256x36xf32, #tpu.memory_space<vmem>>, vector<256x4xf32>,
    %c0_99 = arith.constant 0 : index
    %c6_100 = arith.constant 6 : index
    %c0_101 = arith.constant 0 : index
    %c0_102 = arith.constant 0 : index
    %65 = vector.load %arg9[%c0_99, %c6_100, %c0_101, %c0_102] : memref<1x28x28x4xf32, #tpu.memory_space<vmem>>, vector<1x16x16x4xf32>
    %66 = vector.shape_cast %65 : vector<1x16x16x4xf32> to vector<256x4xf32>
    %c0_103 = arith.constant 0 : index
    %c12_104 = arith.constant 12 : index
    %67 = vector.load %arg10[%c0_103, %c12_104] : memref<256x36xf32, #tpu.memory_space<vmem>>, vector<256x4xf32>
    tpu.vector_store %arg10[%c0_103, %c12_104], %66 {strides = array<i32>} : memref<256x36xf32, #tpu.memory_space<vmem>>, vector<256x4xf32>,
    %c0_105 = arith.constant 0 : index
    %c6_106 = arith.constant 6 : index
    %c6_107 = arith.constant 6 : index
    %c0_108 = arith.constant 0 : index
    %68 = vector.load %arg9[%c0_105, %c6_106, %c6_107, %c0_108] : memref<1x28x28x4xf32, #tpu.memory_space<vmem>>, vector<1x16x16x4xf32>
    %69 = vector.shape_cast %68 : vector<1x16x16x4xf32> to vector<256x4xf32>
    %c0_109 = arith.constant 0 : index
    %c16_110 = arith.constant 16 : index
    %70 = vector.load %arg10[%c0_109, %c16_110] : memref<256x36xf32, #tpu.memory_space<vmem>>, vector<256x4xf32>
    tpu.vector_store %arg10[%c0_109, %c16_110], %69 {strides = array<i32>} : memref<256x36xf32, #tpu.memory_space<vmem>>, vector<256x4xf32>,
    %c0_111 = arith.constant 0 : index
    %c6_112 = arith.constant 6 : index
    %c12_113 = arith.constant 12 : index
    %c0_114 = arith.constant 0 : index
    %71 = vector.load %arg9[%c0_111, %c6_112, %c12_113, %c0_114] : memref<1x28x28x4xf32, #tpu.memory_space<vmem>>, vector<1x16x16x4xf32>
    %72 = vector.shape_cast %71 : vector<1x16x16x4xf32> to vector<256x4xf32>
    %c0_115 = arith.constant 0 : index
    %c20_116 = arith.constant 20 : index
    %73 = vector.load %arg10[%c0_115, %c20_116] : memref<256x36xf32, #tpu.memory_space<vmem>>, vector<256x4xf32>
    tpu.vector_store %arg10[%c0_115, %c20_116], %72 {strides = array<i32>} : memref<256x36xf32, #tpu.memory_space<vmem>>, vector<256x4xf32>,
    %c0_117 = arith.constant 0 : index
    %c12_118 = arith.constant 12 : index
    %c0_119 = arith.constant 0 : index
    %c0_120 = arith.constant 0 : index
    %74 = vector.load %arg9[%c0_117, %c12_118, %c0_119, %c0_120] : memref<1x28x28x4xf32, #tpu.memory_space<vmem>>, vector<1x16x16x4xf32>
    %75 = vector.shape_cast %74 : vector<1x16x16x4xf32> to vector<256x4xf32>
    %c0_121 = arith.constant 0 : index
    %c24_122 = arith.constant 24 : index
    %76 = vector.load %arg10[%c0_121, %c24_122] : memref<256x36xf32, #tpu.memory_space<vmem>>, vector<256x4xf32>
    tpu.vector_store %arg10[%c0_121, %c24_122], %75 {strides = array<i32>} : memref<256x36xf32, #tpu.memory_space<vmem>>, vector<256x4xf32>,
    %c0_123 = arith.constant 0 : index
    %c12_124 = arith.constant 12 : index
    %c6_125 = arith.constant 6 : index
    %c0_126 = arith.constant 0 : index
    %77 = vector.load %arg9[%c0_123, %c12_124, %c6_125, %c0_126] : memref<1x28x28x4xf32, #tpu.memory_space<vmem>>, vector<1x16x16x4xf32>
    %78 = vector.shape_cast %77 : vector<1x16x16x4xf32> to vector<256x4xf32>
    %c0_127 = arith.constant 0 : index
    %c28_128 = arith.constant 28 : index
    %79 = vector.load %arg10[%c0_127, %c28_128] : memref<256x36xf32, #tpu.memory_space<vmem>>, vector<256x4xf32>
    tpu.vector_store %arg10[%c0_127, %c28_128], %78 {strides = array<i32>} : memref<256x36xf32, #tpu.memory_space<vmem>>, vector<256x4xf32>,
    %c0_129 = arith.constant 0 : index
    %c12_130 = arith.constant 12 : index
    %c12_131 = arith.constant 12 : index
    %c0_132 = arith.constant 0 : index
    %80 = vector.load %arg9[%c0_129, %c12_130, %c12_131, %c0_132] : memref<1x28x28x4xf32, #tpu.memory_space<vmem>>, vector<1x16x16x4xf32>
    %81 = vector.shape_cast %80 : vector<1x16x16x4xf32> to vector<256x4xf32>
    %c0_133 = arith.constant 0 : index
    %c32_134 = arith.constant 32 : index
    %82 = vector.load %arg10[%c0_133, %c32_134] : memref<256x36xf32, #tpu.memory_space<vmem>>, vector<256x4xf32>
    tpu.vector_store %arg10[%c0_133, %c32_134], %81 {strides = array<i32>} : memref<256x36xf32, #tpu.memory_space<vmem>>, vector<256x4xf32>,
    %c0_135 = arith.constant 0 : index
    %c0_136 = arith.constant 0 : index
    %83 = vector.load %arg10[%c0_135, %c0_136] : memref<256x36xf32, #tpu.memory_space<vmem>>, vector<256x36xf32>
    %c0_137 = arith.constant 0 : index
    %c0_138 = arith.constant 0 : index
    %84 = vector.load %arg4[%c0_137, %c0_138] : memref<36x4xf32, #tpu.memory_space<vmem>>, vector<36x4xf32>
    %cst_139 = arith.constant dense<0.000000e+00> : vector<256x4xf32>
    %85 = tpu.matmul %83, %84, %cst_139 {dimension_numbers = #tpu.dot_dimension_numbers<[1], [0], [0], [1], [0, 0, 1, 1], [], []>} : vector<256x36xf32>, vector<36x4xf32>, vector<256x4xf32> -> vector<256x4xf32>
    %c0_140 = arith.constant 0 : index
    %c0_141 = arith.constant 0 : index
    %86 = vector.load %arg5[%c0_140, %c0_141] : memref<1x4xf32, #tpu.memory_space<vmem>>, vector<1x4xf32>
    %87 = vector.broadcast %86 : vector<1x4xf32> to vector<256x4xf32>
    %88 = arith.addf %85, %87 : vector<256x4xf32>
    %cst_142 = arith.constant 5.000000e-01 : f32
    %89 = vector.broadcast %cst_142 : f32 to vector<256x4xf32>
    %90 = arith.mulf %89, %88 : vector<256x4xf32>
    %cst_143 = arith.constant 4.471500e-02 : f32
    %91 = vector.broadcast %cst_143 : f32 to vector<256x4xf32>
    %92 = arith.mulf %91, %88 : vector<256x4xf32>
    %93 = arith.mulf %92, %88 : vector<256x4xf32>
    %94 = arith.mulf %93, %88 : vector<256x4xf32>
    %95 = arith.addf %88, %94 : vector<256x4xf32>
    %cst_144 = arith.constant 0.797884583 : f32
    %96 = vector.broadcast %cst_144 : f32 to vector<256x4xf32>
    %97 = arith.mulf %96, %95 : vector<256x4xf32>
    %98 = math.tanh %97 : vector<256x4xf32>
    %cst_145 = arith.constant 1.000000e+00 : f32
    %99 = vector.broadcast %cst_145 : f32 to vector<256x4xf32>
    %100 = arith.addf %99, %98 : vector<256x4xf32>
    %101 = arith.mulf %90, %100 : vector<256x4xf32>
    %c0_146 = arith.constant 0 : index
    %c0_147 = arith.constant 0 : index
    %102 = vector.load %arg6[%c0_146, %c0_147] : memref<4x4xf32, #tpu.memory_space<vmem>>, vector<4x4xf32>
    %cst_148 = arith.constant dense<0.000000e+00> : vector<256x4xf32>
    %103 = tpu.matmul %101, %102, %cst_148 {dimension_numbers = #tpu.dot_dimension_numbers<[1], [0], [0], [1], [0, 0, 1, 1], [], []>} : vector<256x4xf32>, vector<4x4xf32>, vector<256x4xf32> -> vector<256x4xf32>
    %c0_149 = arith.constant 0 : index
    %c0_150 = arith.constant 0 : index
    %104 = vector.load %arg7[%c0_149, %c0_150] : memref<1x4xf32, #tpu.memory_space<vmem>>, vector<1x4xf32>
    %105 = vector.broadcast %104 : vector<1x4xf32> to vector<256x4xf32>
    %106 = arith.addf %103, %105 : vector<256x4xf32>
    %cst_151 = arith.constant 5.000000e-01 : f32
    %107 = vector.broadcast %cst_151 : f32 to vector<256x4xf32>
    %108 = arith.mulf %107, %106 : vector<256x4xf32>
    %cst_152 = arith.constant 4.471500e-02 : f32
    %109 = vector.broadcast %cst_152 : f32 to vector<256x4xf32>
    %110 = arith.mulf %109, %106 : vector<256x4xf32>
    %111 = arith.mulf %110, %106 : vector<256x4xf32>
    %112 = arith.mulf %111, %106 : vector<256x4xf32>
    %113 = arith.addf %106, %112 : vector<256x4xf32>
    %cst_153 = arith.constant 0.797884583 : f32
    %114 = vector.broadcast %cst_153 : f32 to vector<256x4xf32>
    %115 = arith.mulf %114, %113 : vector<256x4xf32>
    %116 = math.tanh %115 : vector<256x4xf32>
    %cst_154 = arith.constant 1.000000e+00 : f32
    %117 = vector.broadcast %cst_154 : f32 to vector<256x4xf32>
    %118 = arith.addf %117, %116 : vector<256x4xf32>
    %119 = arith.mulf %108, %118 : vector<256x4xf32>
    %120 = vector.shape_cast %119 : vector<256x4xf32> to vector<1x16x16x4xf32>
    %c0_155 = arith.constant 0 : index
    %c0_156 = arith.constant 0 : index
    %c0_157 = arith.constant 0 : index
    %c0_158 = arith.constant 0 : index
    %121 = vector.load %arg1[%c0_155, %c0_156, %c0_157, %c0_158] : memref<1x16x16x4xf32, #tpu.memory_space<vmem>>, vector<1x16x16x4xf32>
    %122 = arith.mulf %120, %121 : vector<1x16x16x4xf32>
    %c0_159 = arith.constant 0 : index
    %c0_160 = arith.constant 0 : index
    %c0_161 = arith.constant 0 : index
    %c0_162 = arith.constant 0 : index
    %123 = vector.load %arg8[%c0_159, %c0_160, %c0_161, %c0_162] : memref<1x16x16x4xf32, #tpu.memory_space<vmem>>, vector<1x16x16x4xf32>
    tpu.vector_store %arg8[%c0_159, %c0_160, %c0_161, %c0_162], %122 {strides = array<i32>} : memref<1x16x16x4xf32, #tpu.memory_space<vmem>>, vector<1x16x16x4xf32>,
    return
  }
  func.func @transform_0(%arg0: i32) -> (i32, i32, i32, i32) {
    %c0_i32 = arith.constant 0 : i32
    %c0_i32_0 = arith.constant 0 : i32
    %c0_i32_1 = arith.constant 0 : i32
    %c0_i32_2 = arith.constant 0 : i32
    return %arg0, %c0_i32, %c0_i32_0, %c0_i32_1 : i32, i32, i32, i32
  }
  func.func @transform_1(%arg0: i32) -> (i32, i32) {
    %c0_i32 = arith.constant 0 : i32
    %c0_i32_0 = arith.constant 0 : i32
    %c0_i32_1 = arith.constant 0 : i32
    return %c0_i32, %c0_i32_0 : i32, i32
  }
  func.func @transform_2(%arg0: i32) -> (i32, i32) {
    %c0_i32 = arith.constant 0 : i32
    %c0_i32_0 = arith.constant 0 : i32
    %c0_i32_1 = arith.constant 0 : i32
    return %c0_i32, %c0_i32_0 : i32, i32
  }
  func.func @transform_3(%arg0: i32) -> (i32, i32) {
    %c0_i32 = arith.constant 0 : i32
    %c0_i32_0 = arith.constant 0 : i32
    %c0_i32_1 = arith.constant 0 : i32
    return %c0_i32, %c0_i32_0 : i32, i32
  }
  func.func @transform_4(%arg0: i32) -> (i32, i32) {
    %c0_i32 = arith.constant 0 : i32
    %c0_i32_0 = arith.constant 0 : i32
    %c0_i32_1 = arith.constant 0 : i32
    return %c0_i32, %c0_i32_0 : i32, i32
  }
  func.func @transform_5(%arg0: i32) -> (i32, i32) {
    %c0_i32 = arith.constant 0 : i32
    %c0_i32_0 = arith.constant 0 : i32
    %c0_i32_1 = arith.constant 0 : i32
    return %c0_i32, %c0_i32_0 : i32, i32
  }
  func.func @transform_6(%arg0: i32) -> (i32, i32) {
    %c0_i32 = arith.constant 0 : i32
    %c0_i32_0 = arith.constant 0 : i32
    %c0_i32_1 = arith.constant 0 : i32
    return %c0_i32, %c0_i32_0 : i32, i32
  }
  func.func @transform_7(%arg0: i32) -> (i32, i32, i32, i32) {
    %c0_i32 = arith.constant 0 : i32
    %c0_i32_0 = arith.constant 0 : i32
    %c0_i32_1 = arith.constant 0 : i32
    %c0_i32_2 = arith.constant 0 : i32
    return %arg0, %c0_i32, %c0_i32_0, %c0_i32_1 : i32, i32, i32, i32
  }
}

</mosaic_0001>

<llo_original>
// kernel: tpu_custom_call.1
$region0: #{tpu_custom_call.1}
  #allocation0 [shape = 'u32[]', space=smem, size = 0x4, offset = 0x4, fixed_abs, tag = 'smem constant byte address 0x4 - core index']
  #allocation1 [shape = 'u32[144,128]{1,0:T(1,128)}', space=vmem, size = 0x12000, scoped, tag = 'internal scratch']
  #allocation2 [shape = 'f32[1,28,28,4]{3,2,1,0:T(8,128)}', space=vmem, size = 0x70000, scoped, tag = 'scratch operand']
  #allocation3 [shape = 'f32[256,36]{1,0:T(8,128)}', space=vmem, size = 0x20000, scoped, tag = 'scratch operand']
  %s0 = inlined_call_operand.vmem [shape: f32[2,16,16,4], index: 0, kind: input, shape index: {}]
  %s1 = inlined_call_operand.vmem [shape: f32[36,4], index: 1, kind: input, shape index: {}]
  %s2 = inlined_call_operand.vmem [shape: f32[1,4], index: 2, kind: input, shape index: {}]
  %s3 = inlined_call_operand.vmem [shape: f32[36,4], index: 3, kind: input, shape index: {}]
  %s4 = inlined_call_operand.vmem [shape: f32[1,4], index: 4, kind: input, shape index: {}]
  %s5 = inlined_call_operand.vmem [shape: f32[4,4], index: 5, kind: input, shape index: {}]
  %s6 = inlined_call_operand.vmem [shape: f32[1,4], index: 6, kind: input, shape index: {}]
  %s7 = inlined_call_operand.vmem [shape: f32[2,16,16,4], index: 7, kind: output, shape index: {}]
  %s8 = sld [smem:[#allocation0]]
  $region61: #{tpu_custom_call.1} parent=0
    _
  %s10 = ssub.s32 1, %s8
  %s11 = scalar_select 0, %s10, %s8
  loop: start=0, step=1, limit=4
  $region2: #{tpu_custom_call.1} parent=0 // loop_pre_header
    _
  $region3: #{tpu_custom_call.1} parent=0 // loop_header
    %s13 = sphi 0, %s17
    %p14 = scmp.ge.s32.totalorder %s13, 4
    %s23 = sphi 0, %s25
    %s26 = sphi 0, %s23
    %s27 = sphi 0, %s26
    %s43 = sphi 0, %s27
    %s47 = sphi 0, %s47
    %s49 = sphi 0, %s47
    %s50 = sphi 0, %s49
    %s64 = sphi 0, %s50
    %s68 = sphi 0, %s68
    %s70 = sphi 0, %s68
    %s71 = sphi 0, %s70
    %s85 = sphi 0, %s71
    %s89 = sphi 0, %s89
    %s91 = sphi 0, %s89
    %s92 = sphi 0, %s91
    %s106 = sphi 0, %s92
    %s110 = sphi 0, %s110
    %s112 = sphi 0, %s110
    %s113 = sphi 0, %s112
    %s127 = sphi 0, %s113
    %s131 = sphi 0, %s131
    %s133 = sphi 0, %s131
    %s134 = sphi 0, %s133
    %s148 = sphi 0, %s134
    %s152 = sphi 0, %s152
    %s154 = sphi 0, %s152
    %s155 = sphi 0, %s154
    %s169 = sphi 0, %s155
    %s175 = sphi 0, %s177
    %s178 = sphi 0, %s175
    %s179 = sphi 0, %s178
    %s195 = sphi 0, %s179
  $region4: #{tpu_custom_call.1} parent=0 // loop_header_branch
    %16 = sbr.rel (%p14) target = $region8
  $region5: #{tpu_custom_call.1} parent=0 // loop_body
    %s18 = ssub.s32 %s13, 1
    %s19 = ssub.s32 %s13, 2
    %s20 = sadd.s32 %s13, 1
    %s21 = ssub.s32 %s13, %s20
    %p22 = scmp.eq.s32.totalorder %s21, 0
    %s24 = sadd.s32 %s23, 1
    %s25 = scalar_select %p22, %s23, %s24
    %p28 = pneg %p22
    %p29 = scmp.eq.s32.totalorder %s13, 1
    %p30 = por %p28, %p29
    %p31 = scmp.ne.s32.totalorder %s23, %s26
    %p32 = scmp.eq.s32.totalorder %s13, 0
    %p33 = por %p31, %p32
    %p34 = scmp.ne.s32.totalorder %s23, %s26
    %p35 = scmp.eq.s32.totalorder %s18, 1
    %p36 = por %p34, %p35
    %p37 = scmp.ne.s32.totalorder %s26, %s27
    %p38 = scmp.eq.s32.totalorder %s18, 0
    %p39 = por %p37, %p38
    %p40 = scmp.ne.s32.totalorder %s26, %s27
    %p41 = scmp.eq.s32.totalorder %s19, 1
    %p42 = por %p40, %p41
    %p44 = scmp.ne.s32.totalorder %s27, %s43
    %p45 = scmp.eq.s32.totalorder %s19, 0
    %p46 = por %p44, %p45
    %s48 = sadd.s32 %s47, 1
    %p51 = scmp.eq.s32.totalorder %s13, 1
    %p52 = scmp.ne.s32.totalorder %s47, %s49
    %p53 = scmp.eq.s32.totalorder %s13, 0
    %p54 = por %p52, %p53
    %p55 = scmp.ne.s32.totalorder %s47, %s49
    %p56 = scmp.eq.s32.totalorder %s18, 1
    %p57 = por %p55, %p56
    %p58 = scmp.ne.s32.totalorder %s49, %s50
    %p59 = scmp.eq.s32.totalorder %s18, 0
    %p60 = por %p58, %p59
    %p61 = scmp.ne.s32.totalorder %s49, %s50
    %p62 = scmp.eq.s32.totalorder %s19, 1
    %p63 = por %p61, %p62
    %p65 = scmp.ne.s32.totalorder %s50, %s64
    %p66 = scmp.eq.s32.totalorder %s19, 0
    %p67 = por %p65, %p66
    %s69 = sadd.s32 %s68, 1
    %p72 = scmp.eq.s32.totalorder %s13, 1
    %p73 = scmp.ne.s32.totalorder %s68, %s70
    %p74 = scmp.eq.s32.totalorder %s13, 0
    %p75 = por %p73, %p74
    %p76 = scmp.ne.s32.totalorder %s68, %s70
    %p77 = scmp.eq.s32.totalorder %s18, 1
    %p78 = por %p76, %p77
    %p79 = scmp.ne.s32.totalorder %s70, %s71
    %p80 = scmp.eq.s32.totalorder %s18, 0
    %p81 = por %p79, %p80
    %p82 = scmp.ne.s32.totalorder %s70, %s71
    %p83 = scmp.eq.s32.totalorder %s19, 1
    %p84 = por %p82, %p83
    %p86 = scmp.ne.s32.totalorder %s71, %s85
    %p87 = scmp.eq.s32.totalorder %s19, 0
    %p88 = por %p86, %p87
    %s90 = sadd.s32 %s89, 1
    %p93 = scmp.eq.s32.totalorder %s13, 1
    %p94 = scmp.ne.s32.totalorder %s89, %s91
    %p95 = scmp.eq.s32.totalorder %s13, 0
    %p96 = por %p94, %p95
    %p97 = scmp.ne.s32.totalorder %s89, %s91
    %p98 = scmp.eq.s32.totalorder %s18, 1
    %p99 = por %p97, %p98
    %p100 = scmp.ne.s32.totalorder %s91, %s92
    %p101 = scmp.eq.s32.totalorder %s18, 0
    %p102 = por %p100, %p101
    %p103 = scmp.ne.s32.totalorder %s91, %s92
    %p104 = scmp.eq.s32.totalorder %s19, 1
    %p105 = por %p103, %p104
    %p107 = scmp.ne.s32.totalorder %s92, %s106
    %p108 = scmp.eq.s32.totalorder %s19, 0
    %p109 = por %p107, %p108
    %s111 = sadd.s32 %s110, 1
    %p114 = scmp.eq.s32.totalorder %s13, 1
    %p115 = scmp.ne.s32.totalorder %s110, %s112
    %p116 = scmp.eq.s32.totalorder %s13, 0
    %p117 = por %p115, %p116
    %p118 = scmp.ne.s32.totalorder %s110, %s112
    %p119 = scmp.eq.s32.totalorder %s18, 1
    %p120 = por %p118, %p119
    %p121 = scmp.ne.s32.totalorder %s112, %s113
    %p122 = scmp.eq.s32.totalorder %s18, 0
    %p123 = por %p121, %p122
    %p124 = scmp.ne.s32.totalorder %s112, %s113
    %p125 = scmp.eq.s32.totalorder %s19, 1
    %p126 = por %p124, %p125
    %p128 = scmp.ne.s32.totalorder %s113, %s127
    %p129 = scmp.eq.s32.totalorder %s19, 0
    %p130 = por %p128, %p129
    %s132 = sadd.s32 %s131, 1
    %p135 = scmp.eq.s32.totalorder %s13, 1
    %p136 = scmp.ne.s32.totalorder %s131, %s133
    %p137 = scmp.eq.s32.totalorder %s13, 0
    %p138 = por %p136, %p137
    %p139 = scmp.ne.s32.totalorder %s131, %s133
    %p140 = scmp.eq.s32.totalorder %s18, 1
    %p141 = por %p139, %p140
    %p142 = scmp.ne.s32.totalorder %s133, %s134
    %p143 = scmp.eq.s32.totalorder %s18, 0
    %p144 = por %p142, %p143
    %p145 = scmp.ne.s32.totalorder %s133, %s134
    %p146 = scmp.eq.s32.totalorder %s19, 1
    %p147 = por %p145, %p146
    %p149 = scmp.ne.s32.totalorder %s134, %s148
    %p150 = scmp.eq.s32.totalorder %s19, 0
    %p151 = por %p149, %p150
    %s153 = sadd.s32 %s152, 1
    %p156 = scmp.eq.s32.totalorder %s13, 1
    %p157 = scmp.ne.s32.totalorder %s152, %s154
    %p158 = scmp.eq.s32.totalorder %s13, 0
    %p159 = por %p157, %p158
    %p160 = scmp.ne.s32.totalorder %s152, %s154
    %p161 = scmp.eq.s32.totalorder %s18, 1
    %p162 = por %p160, %p161
    %p163 = scmp.ne.s32.totalorder %s154, %s155
    %p164 = scmp.eq.s32.totalorder %s18, 0
    %p165 = por %p163, %p164
    %p166 = scmp.ne.s32.totalorder %s154, %s155
    %p167 = scmp.eq.s32.totalorder %s19, 1
    %p168 = por %p166, %p167
    %p170 = scmp.ne.s32.totalorder %s155, %s169
    %p171 = scmp.eq.s32.totalorder %s19, 0
    %p172 = por %p170, %p171
    %s173 = ssub.s32 %s13, %s20
    %p174 = scmp.eq.s32.totalorder %s173, 0
    %s176 = sadd.s32 %s175, 1
    %s177 = scalar_select %p174, %s175, %s176
    %p180 = pneg %p174
    %p181 = scmp.eq.s32.totalorder %s13, 1
    %p182 = por %p180, %p181
    %p183 = scmp.ne.s32.totalorder %s175, %s178
    %p184 = scmp.eq.s32.totalorder %s13, 0
    %p185 = por %p183, %p184
    %p186 = scmp.ne.s32.totalorder %s175, %s178
    %p187 = scmp.eq.s32.totalorder %s18, 1
    %p188 = por %p186, %p187
    %p189 = scmp.ne.s32.totalorder %s178, %s179
    %p190 = scmp.eq.s32.totalorder %s18, 0
    %p191 = por %p189, %p190
    %p192 = scmp.ne.s32.totalorder %s178, %s179
    %p193 = scmp.eq.s32.totalorder %s19, 1
    %p194 = por %p192, %p193
    %p196 = scmp.ne.s32.totalorder %s179, %s195
    %p197 = scmp.eq.s32.totalorder %s19, 0
    %p198 = por %p196, %p197
    %p199 = scmp.le.s32.totalorder 1, %s13
    %p200 = scmp.lt.s32.totalorder %s13, 3
    %p201 = pnand %p199, %p200
    %p202 = pneg %p201
    // Predicated region
    $region9: #{tpu_custom_call.1} parent=5 // pred_check
      _
    $region10: #{tpu_custom_call.1} parent=5 // pred_check_branch
      %204 = sbr.rel (%p201) target = $region12
    $region11: #{tpu_custom_call.1} parent=5 // pred_region
      %s205 = ssub.s32 %s13, 1
      // Predicated region
      $region13: #{tpu_custom_call.1} parent=11 // pred_check
        %p206 = pneg %p60
      $region14: #{tpu_custom_call.1} parent=11 // pred_check_branch
        %208 = sbr.rel (%p206) target = $region16
      $region15: #{tpu_custom_call.1} parent=11 // pred_region
        _
      $region16: #{tpu_custom_call.1} parent=11 // pred_fallthru
        _
      // Predicated region
      $region17: #{tpu_custom_call.1} parent=11 // pred_check
        %p209 = pneg %p81
      $region18: #{tpu_custom_call.1} parent=11 // pred_check_branch
        %211 = sbr.rel (%p209) target = $region20
      $region19: #{tpu_custom_call.1} parent=11 // pred_region
        _
      $region20: #{tpu_custom_call.1} parent=11 // pred_fallthru
        _
      // Predicated region
      $region21: #{tpu_custom_call.1} parent=11 // pred_check
        %p212 = pneg %p102
      $region22: #{tpu_custom_call.1} parent=11 // pred_check_branch
        %214 = sbr.rel (%p212) target = $region24
      $region23: #{tpu_custom_call.1} parent=11 // pred_region
        _
      $region24: #{tpu_custom_call.1} parent=11 // pred_fallthru
        _
      // Predicated region
      $region25: #{tpu_custom_call.1} parent=11 // pred_check
        %p215 = pneg %p123
      $region26: #{tpu_custom_call.1} parent=11 // pred_check_branch
        %217 = sbr.rel (%p215) target = $region28
      $region27: #{tpu_custom_call.1} parent=11 // pred_region
        _
      $region28: #{tpu_custom_call.1} parent=11 // pred_fallthru
        _
      // Predicated region
      $region29: #{tpu_custom_call.1} parent=11 // pred_check
        %p218 = pneg %p144
      $region30: #{tpu_custom_call.1} parent=11 // pred_check_branch
        %220 = sbr.rel (%p218) target = $region32
      $region31: #{tpu_custom_call.1} parent=11 // pred_region
        _
      $region32: #{tpu_custom_call.1} parent=11 // pred_fallthru
        _
      // Predicated region
      $region33: #{tpu_custom_call.1} parent=11 // pred_check
        %p221 = pneg %p165
      $region34: #{tpu_custom_call.1} parent=11 // pred_check_branch
        %223 = sbr.rel (%p221) target = $region36
      $region35: #{tpu_custom_call.1} parent=11 // pred_region
        _
      $region36: #{tpu_custom_call.1} parent=11 // pred_fallthru
        _
    $region12: #{tpu_custom_call.1} parent=5 // pred_fallthru
      _
    %p224 = scmp.lt.s32.totalorder %s13, 2
    // Predicated region
    $region37: #{tpu_custom_call.1} parent=5 // pred_check
      %p225 = pneg %p224
    $region38: #{tpu_custom_call.1} parent=5 // pred_check_branch
      %227 = sbr.rel (%p225) target = $region40
    $region39: #{tpu_custom_call.1} parent=5 // pred_region
      // Predicated region
      $region41: #{tpu_custom_call.1} parent=39 // pred_check
        %p228 = pneg %p33
      $region42: #{tpu_custom_call.1} parent=39 // pred_check_branch
        %230 = sbr.rel (%p228) target = $region44
      $region43: #{tpu_custom_call.1} parent=39 // pred_region
        %p231 = scmp.lt.s32.totalorder %s13, 1
        %s232 = scalar_select %p231, %s13, 1
        %s233 = smul.addr %s232, 32
        %s234 = smul.addr %s233, 8
        %s235 = scalar_lea.vmem %s0, %s234
      $region44: #{tpu_custom_call.1} parent=39 // pred_fallthru
        _
    $region40: #{tpu_custom_call.1} parent=5 // pred_fallthru
      _
    %p236 = scmp.le.s32.totalorder 1, %s13
    %p237 = scmp.lt.s32.totalorder %s13, 3
    %p238 = pnand %p236, %p237
    %p239 = pneg %p238
    // Predicated region
    $region45: #{tpu_custom_call.1} parent=5 // pred_check
      _
    $region46: #{tpu_custom_call.1} parent=5 // pred_check_branch
      %241 = sbr.rel (%p238) target = $region48
    $region47: #{tpu_custom_call.1} parent=5 // pred_region
      %s242 = ssub.s32 %s13, 1
      %p243 = scmp.lt.s32.totalorder %s18, 1
      %s244 = scalar_select %p243, %s18, 1
      %s245 = smul.addr %s244, 32
      %s246 = smul.addr %s245, 8
      %s247 = scalar_lea.vmem %s0, %s246
      %p248 = pneg %p39
      %p249 = pneg %p36
      %p250 = pneg %p60
      %p251 = pneg %p57
      %p252 = pneg %p81
      %p253 = pneg %p78
      %p254 = pneg %p102
      %p255 = pneg %p99
      %p256 = pneg %p123
      %p257 = pneg %p120
      %p258 = pneg %p144
      %p259 = pneg %p141
      %p260 = pneg %p165
      %p261 = pneg %p162
      %p262 = pneg %p191
      %p263 = pneg %p188
      %p264 = scmp.lt.s32.totalorder %s18, 1
      %s265 = scalar_select %p264, %s18, 1
      %s266 = smul.addr %s265, 32
      %s267 = smul.addr %s266, 8
      %s268 = scalar_lea.vmem %s7, %s267
      %p269 = scmp.lt.s32.totalorder %s18, 1
      %s270 = scalar_select %p269, %s18, 1
      %s271 = smul.addr %s270, 32
      %s272 = smul.addr %s271, 8
      %s273 = scalar_lea.vmem %s0, %s272
      %p274 = scmp.lt.s32.totalorder %s18, 1
      %s275 = scalar_select %p274, %s18, 1
      %s276 = smul.addr %s275, 32
      %s277 = smul.addr %s276, 8
      %s278 = scalar_lea.vmem %s7, %s277
      %vm279 = vcmask 31744
      %280 = vst.msk [vmem:[#allocation2] sm:$0xff] %vm279, 0.0
      %281 = vst.msk [vmem:[#allocation2 + $0x8] sm:$0xff] %vm279, 0.0
      %282 = vst.msk [vmem:[#allocation2 + $0x10] sm:$0xff] %vm279, 0.0
      %vm283 = vcmask 27648
      %284 = vst.msk [vmem:[#allocation2 + $0x18] sm:$0xf] %vm283, 0.0
      %285 = vst.msk [vmem:[#allocation2 + $0x20] sm:$0xff] %vm279, 0.0
      %286 = vst.msk [vmem:[#allocation2 + $0x28] sm:$0xff] %vm279, 0.0
      %287 = vst.msk [vmem:[#allocation2 + $0x30] sm:$0xff] %vm279, 0.0
      %288 = vst.msk [vmem:[#allocation2 + $0x38] sm:$0xf] %vm283, 0.0
      %289 = vst.msk [vmem:[#allocation2 + $0x40] sm:$0xff] %vm279, 0.0
      %290 = vst.msk [vmem:[#allocation2 + $0x48] sm:$0xff] %vm279, 0.0
      %291 = vst.msk [vmem:[#allocation2 + $0x50] sm:$0xff] %vm279, 0.0
      %292 = vst.msk [vmem:[#allocation2 + $0x58] sm:$0xf] %vm283, 0.0
      %293 = vst.msk [vmem:[#allocation2 + $0x60] sm:$0xff] %vm279, 0.0
      %294 = vst.msk [vmem:[#allocation2 + $0x68] sm:$0xff] %vm279, 0.0
      %295 = vst.msk [vmem:[#allocation2 + $0x70] sm:$0xff] %vm279, 0.0
      %296 = vst.msk [vmem:[#allocation2 + $0x78] sm:$0xf] %vm283, 0.0
      %297 = vst.msk [vmem:[#allocation2 + $0x80] sm:$0xff] %vm279, 0.0
      %298 = vst.msk [vmem:[#allocation2 + $0x88] sm:$0xff] %vm279, 0.0
      %299 = vst.msk [vmem:[#allocation2 + $0x90] sm:$0xff] %vm279, 0.0
      %300 = vst.msk [vmem:[#allocation2 + $0x98] sm:$0xf] %vm283, 0.0
      %301 = vst.msk [vmem:[#allocation2 + $0xa0] sm:$0xff] %vm279, 0.0
      %302 = vst.msk [vmem:[#allocation2 + $0xa8] sm:$0xff] %vm279, 0.0
      %303 = vst.msk [vmem:[#allocation2 + $0xb0] sm:$0xff] %vm279, 0.0
      %304 = vst.msk [vmem:[#allocation2 + $0xb8] sm:$0xf] %vm283, 0.0
      %s305 = scalar_lea.vmem [#allocation2], 704
      %306 = vst.msk [vmem:[%s305] sm:$0xff] %vm279, 0.0
      %307 = vst.msk [vmem:[%s305 + $0x8] sm:$0xff] %vm279, 0.0
      %308 = vst.msk [vmem:[%s305 + $0x10] sm:$0xff] %vm279, 0.0
      %309 = vst.msk [vmem:[%s305 + $0x18] sm:$0xf] %vm283, 0.0
      %310 = vst.msk [vmem:[%s305 + $0x20] sm:$0xff] %vm279, 0.0
      %311 = vst.msk [vmem:[%s305 + $0x28] sm:$0xff] %vm279, 0.0
      %312 = vst.msk [vmem:[%s305 + $0x30] sm:$0xff] %vm279, 0.0
      %313 = vst.msk [vmem:[%s305 + $0x38] sm:$0xf] %vm283, 0.0
      %314 = vst.msk [vmem:[%s305 + $0x40] sm:$0xff] %vm279, 0.0
      %315 = vst.msk [vmem:[%s305 + $0x48] sm:$0xff] %vm279, 0.0
      %316 = vst.msk [vmem:[%s305 + $0x50] sm:$0xff] %vm279, 0.0
      %317 = vst.msk [vmem:[%s305 + $0x58] sm:$0xf] %vm283, 0.0
      %318 = vst.msk [vmem:[%s305 + $0x60] sm:$0xff] %vm279, 0.0
      %319 = vst.msk [vmem:[%s305 + $0x68] sm:$0xff] %vm279, 0.0
      %320 = vst.msk [vmem:[%s305 + $0x70] sm:$0xff] %vm279, 0.0
      %321 = vst.msk [vmem:[%s305 + $0x78] sm:$0xf] %vm283, 0.0
      %322 = vst.msk [vmem:[%s305 + $0x80] sm:$0xff] %vm279, 0.0
      %323 = vst.msk [vmem:[%s305 + $0x88] sm:$0xff] %vm279, 0.0
      %324 = vst.msk [vmem:[%s305 + $0x90] sm:$0xff] %vm279, 0.0
      %325 = vst.msk [vmem:[%s305 + $0x98] sm:$0xf] %vm283, 0.0
      %326 = vst.msk [vmem:[%s305 + $0xa0] sm:$0xff] %vm279, 0.0
      %327 = vst.msk [vmem:[%s305 + $0xa8] sm:$0xff] %vm279, 0.0
      %328 = vst.msk [vmem:[%s305 + $0xb0] sm:$0xff] %vm279, 0.0
      %329 = vst.msk [vmem:[%s305 + $0xb8] sm:$0xf] %vm283, 0.0
      %s330 = scalar_lea.vmem [#allocation2], 192
      %vm331 = vcmask 29696
      %332 = vst.msk [vmem:[%s330] sm:$0x3f] %vm331, 0.0
      %333 = vst.msk [vmem:[%s330 + $0x20] sm:$0x3f] %vm331, 0.0
      %334 = vst.msk [vmem:[%s330 + $0x40] sm:$0x3f] %vm331, 0.0
      %335 = vst.msk [vmem:[%s330 + $0x60] sm:$0x3f] %vm331, 0.0
      %336 = vst.msk [vmem:[%s330 + $0x80] sm:$0x3f] %vm331, 0.0
      %337 = vst.msk [vmem:[%s330 + $0xa0] sm:$0x3f] %vm331, 0.0
      %338 = vst.msk [vmem:[%s330 + $0xc0] sm:$0x3f] %vm331, 0.0
      %339 = vst.msk [vmem:[%s330 + $0xe0] sm:$0x3f] %vm331, 0.0
      %340 = vst.msk [vmem:[%s330 + $0x100] sm:$0x3f] %vm331, 0.0
      %341 = vst.msk [vmem:[%s330 + $0x120] sm:$0x3f] %vm331, 0.0
      %342 = vst.msk [vmem:[%s330 + $0x140] sm:$0x3f] %vm331, 0.0
      %343 = vst.msk [vmem:[%s330 + $0x160] sm:$0x3f] %vm331, 0.0
      %344 = vst.msk [vmem:[%s330 + $0x180] sm:$0x3f] %vm331, 0.0
      %345 = vst.msk [vmem:[%s330 + $0x1a0] sm:$0x3f] %vm331, 0.0
      %346 = vst.msk [vmem:[%s330 + $0x1c0] sm:$0x3f] %vm331, 0.0
      %347 = vst.msk [vmem:[%s330 + $0x1e0] sm:$0x3f] %vm331, 0.0
      %348 = vst.msk [vmem:[%s330 + $0x16] sm:$0x3f] %vm331, 0.0
      %349 = vst.msk [vmem:[%s330 + $0x36] sm:$0x3f] %vm331, 0.0
      %350 = vst.msk [vmem:[%s330 + $0x56] sm:$0x3f] %vm331, 0.0
      %351 = vst.msk [vmem:[%s330 + $0x76] sm:$0x3f] %vm331, 0.0
      %352 = vst.msk [vmem:[%s330 + $0x96] sm:$0x3f] %vm331, 0.0
      %353 = vst.msk [vmem:[%s330 + $0xb6] sm:$0x3f] %vm331, 0.0
      %354 = vst.msk [vmem:[%s330 + $0xd6] sm:$0x3f] %vm331, 0.0
      %355 = vst.msk [vmem:[%s330 + $0xf6] sm:$0x3f] %vm331, 0.0
      %356 = vst.msk [vmem:[%s330 + $0x116] sm:$0x3f] %vm331, 0.0
      %357 = vst.msk [vmem:[%s330 + $0x136] sm:$0x3f] %vm331, 0.0
      %358 = vst.msk [vmem:[%s330 + $0x156] sm:$0x3f] %vm331, 0.0
      %359 = vst.msk [vmem:[%s330 + $0x176] sm:$0x3f] %vm331, 0.0
      %360 = vst.msk [vmem:[%s330 + $0x196] sm:$0x3f] %vm331, 0.0
      %361 = vst.msk [vmem:[%s330 + $0x1b6] sm:$0x3f] %vm331, 0.0
      %362 = vst.msk [vmem:[%s330 + $0x1d6] sm:$0x3f] %vm331, 0.0
      %363 = vst.msk [vmem:[%s330 + $0x1f6] sm:$0x3f] %vm331, 0.0
      %v364 = vld [vmem:[%s273] sm:$0xff]
      %v365 = vld [vmem:[%s273 + $0x8] sm:$0xff]
      %v366 = vld [vmem:[%s273 + $0x10] sm:$0xff]
      %v367 = vld [vmem:[%s273 + $0x18] sm:$0xff]
      %v368 = vld [vmem:[%s273 + $0x20] sm:$0xff]
      %v369 = vld [vmem:[%s273 + $0x28] sm:$0xff]
      %v370 = vld [vmem:[%s273 + $0x30] sm:$0xff]
      %v371 = vld [vmem:[%s273 + $0x38] sm:$0xff]
      %v372 = vld [vmem:[%s273 + $0x40] sm:$0xff]
      %v373 = vld [vmem:[%s273 + $0x48] sm:$0xff]
      %v374 = vld [vmem:[%s273 + $0x50] sm:$0xff]
      %v375 = vld [vmem:[%s273 + $0x58] sm:$0xff]
      %v376 = vld [vmem:[%s273 + $0x60] sm:$0xff]
      %v377 = vld [vmem:[%s273 + $0x68] sm:$0xff]
      %v378 = vld [vmem:[%s273 + $0x70] sm:$0xff]
      %v379 = vld [vmem:[%s273 + $0x78] sm:$0xff]
      %v380 = vld [vmem:[%s273 + $0x80] sm:$0xff]
      %v381 = vld [vmem:[%s273 + $0x88] sm:$0xff]
      %v382 = vld [vmem:[%s273 + $0x90] sm:$0xff]
      %v383 = vld [vmem:[%s273 + $0x98] sm:$0xff]
      %v384 = vld [vmem:[%s273 + $0xa0] sm:$0xff]
      %v385 = vld [vmem:[%s273 + $0xa8] sm:$0xff]
      %v386 = vld [vmem:[%s273 + $0xb0] sm:$0xff]
      %v387 = vld [vmem:[%s273 + $0xb8] sm:$0xff]
      %v388 = vld [vmem:[%s273 + $0xc0] sm:$0xff]
      %v389 = vld [vmem:[%s273 + $0xc8] sm:$0xff]
      %v390 = vld [vmem:[%s273 + $0xd0] sm:$0xff]
      %v391 = vld [vmem:[%s273 + $0xd8] sm:$0xff]
      %v392 = vld [vmem:[%s273 + $0xe0] sm:$0xff]
      %v393 = vld [vmem:[%s273 + $0xe8] sm:$0xff]
      %v394 = vld [vmem:[%s273 + $0xf0] sm:$0xff]
      %v395 = vld [vmem:[%s273 + $0xf8] sm:$0xff]
      %396 = vst.msk [vmem:[%s330 + $0x6] sm:$0xff] %vm279, %v364
      %397 = vst.msk [vmem:[%s330 + $0xe] sm:$0xff] %vm279, %v365
      %398 = vst.msk [vmem:[%s330 + $0x26] sm:$0xff] %vm279, %v366
      %399 = vst.msk [vmem:[%s330 + $0x2e] sm:$0xff] %vm279, %v367
      %400 = vst.msk [vmem:[%s330 + $0x46] sm:$0xff] %vm279, %v368
      %401 = vst.msk [vmem:[%s330 + $0x4e] sm:$0xff] %vm279, %v369
      %402 = vst.msk [vmem:[%s330 + $0x66] sm:$0xff] %vm279, %v370
      %403 = vst.msk [vmem:[%s330 + $0x6e] sm:$0xff] %vm279, %v371
      %404 = vst.msk [vmem:[%s330 + $0x86] sm:$0xff] %vm279, %v372
      %405 = vst.msk [vmem:[%s330 + $0x8e] sm:$0xff] %vm279, %v373
      %406 = vst.msk [vmem:[%s330 + $0xa6] sm:$0xff] %vm279, %v374
      %407 = vst.msk [vmem:[%s330 + $0xae] sm:$0xff] %vm279, %v375
      %408 = vst.msk [vmem:[%s330 + $0xc6] sm:$0xff] %vm279, %v376
      %409 = vst.msk [vmem:[%s330 + $0xce] sm:$0xff] %vm279, %v377
      %410 = vst.msk [vmem:[%s330 + $0xe6] sm:$0xff] %vm279, %v378
      %411 = vst.msk [vmem:[%s330 + $0xee] sm:$0xff] %vm279, %v379
      %412 = vst.msk [vmem:[%s330 + $0x106] sm:$0xff] %vm279, %v380
      %413 = vst.msk [vmem:[%s330 + $0x10e] sm:$0xff] %vm279, %v381
      %414 = vst.msk [vmem:[%s330 + $0x126] sm:$0xff] %vm279, %v382
      %415 = vst.msk [vmem:[%s330 + $0x12e] sm:$0xff] %vm279, %v383
      %416 = vst.msk [vmem:[%s330 + $0x146] sm:$0xff] %vm279, %v384
      %417 = vst.msk [vmem:[%s330 + $0x14e] sm:$0xff] %vm279, %v385
      %418 = vst.msk [vmem:[%s330 + $0x166] sm:$0xff] %vm279, %v386
      %419 = vst.msk [vmem:[%s330 + $0x16e] sm:$0xff] %vm279, %v387
      %420 = vst.msk [vmem:[%s330 + $0x186] sm:$0xff] %vm279, %v388
      %421 = vst.msk [vmem:[%s330 + $0x18e] sm:$0xff] %vm279, %v389
      %422 = vst.msk [vmem:[%s330 + $0x1a6] sm:$0xff] %vm279, %v390
      %423 = vst.msk [vmem:[%s330 + $0x1ae] sm:$0xff] %vm279, %v391
      %424 = vst.msk [vmem:[%s330 + $0x1c6] sm:$0xff] %vm279, %v392
      %425 = vst.msk [vmem:[%s330 + $0x1ce] sm:$0xff] %vm279, %v393
      %426 = vst.msk [vmem:[%s330 + $0x1e6] sm:$0xff] %vm279, %v394
      %427 = vst.msk [vmem:[%s330 + $0x1ee] sm:$0xff] %vm279, %v395
      %s428 = scalar_lea.vmem [#allocation2], 160
      %v429 = vld [vmem:[%s428 + $0x5] sm:$0xff]
      %v430 = vld [vmem:[%s428 + $0xd] sm:$0xff]
      %v431 = vld [vmem:[%s428 + $0x25] sm:$0xff]
      %v432 = vld [vmem:[%s428 + $0x2d] sm:$0xff]
      %v433 = vld [vmem:[%s428 + $0x45] sm:$0xff]
      %v434 = vld [vmem:[%s428 + $0x4d] sm:$0xff]
      %v435 = vld [vmem:[%s428 + $0x65] sm:$0xff]
      %v436 = vld [vmem:[%s428 + $0x6d] sm:$0xff]
      %v437 = vld [vmem:[%s428 + $0x85] sm:$0xff]
      %v438 = vld [vmem:[%s428 + $0x8d] sm:$0xff]
      %v439 = vld [vmem:[%s428 + $0xa5] sm:$0xff]
      %v440 = vld [vmem:[%s428 + $0xad] sm:$0xff]
      %v441 = vld [vmem:[%s428 + $0xc5] sm:$0xff]
      %v442 = vld [vmem:[%s428 + $0xcd] sm:$0xff]
      %v443 = vld [vmem:[%s428 + $0xe5] sm:$0xff]
      %v444 = vld [vmem:[%s428 + $0xed] sm:$0xff]
      %v445 = vld [vmem:[%s428 + $0x105] sm:$0xff]
      %v446 = vld [vmem:[%s428 + $0x10d] sm:$0xff]
      %v447 = vld [vmem:[%s428 + $0x125] sm:$0xff]
      %v448 = vld [vmem:[%s428 + $0x12d] sm:$0xff]
      %v449 = vld [vmem:[%s428 + $0x145] sm:$0xff]
      %v450 = vld [vmem:[%s428 + $0x14d] sm:$0xff]
      %v451 = vld [vmem:[%s428 + $0x165] sm:$0xff]
      %v452 = vld [vmem:[%s428 + $0x16d] sm:$0xff]
      %v453 = vld [vmem:[%s428 + $0x185] sm:$0xff]
      %v454 = vld [vmem:[%s428 + $0x18d] sm:$0xff]
      %v455 = vld [vmem:[%s428 + $0x1a5] sm:$0xff]
      %v456 = vld [vmem:[%s428 + $0x1ad] sm:$0xff]
      %v457 = vld [vmem:[%s428 + $0x1c5] sm:$0xff]
      %v458 = vld [vmem:[%s428 + $0x1cd] sm:$0xff]
      %v459 = vld [vmem:[%s428 + $0x1e5] sm:$0xff]
      %v460 = vld [vmem:[%s428 + $0x1ed] sm:$0xff]
      %461 = vst.msk [vmem:[#allocation3] sm:$0xff] %vm279, %v429
      %462 = vst.msk [vmem:[#allocation3 + $0x8] sm:$0xff] %vm279, %v430
      %463 = vst.msk [vmem:[#allocation3 + $0x10] sm:$0xff] %vm279, %v431
      %464 = vst.msk [vmem:[#allocation3 + $0x18] sm:$0xff] %vm279, %v432
      %465 = vst.msk [vmem:[#allocation3 + $0x20] sm:$0xff] %vm279, %v433
      %466 = vst.msk [vmem:[#allocation3 + $0x28] sm:$0xff] %vm279, %v434
      %467 = vst.msk [vmem:[#allocation3 + $0x30] sm:$0xff] %vm279, %v435
      %468 = vst.msk [vmem:[#allocation3 + $0x38] sm:$0xff] %vm279, %v436
      %469 = vst.msk [vmem:[#allocation3 + $0x40] sm:$0xff] %vm279, %v437
      %470 = vst.msk [vmem:[#allocation3 + $0x48] sm:$0xff] %vm279, %v438
      %471 = vst.msk [vmem:[#allocation3 + $0x50] sm:$0xff] %vm279, %v439
      %472 = vst.msk [vmem:[#allocation3 + $0x58] sm:$0xff] %vm279, %v440
      %473 = vst.msk [vmem:[#allocation3 + $0x60] sm:$0xff] %vm279, %v441
      %474 = vst.msk [vmem:[#allocation3 + $0x68] sm:$0xff] %vm279, %v442
      %475 = vst.msk [vmem:[#allocation3 + $0x70] sm:$0xff] %vm279, %v443
      %476 = vst.msk [vmem:[#allocation3 + $0x78] sm:$0xff] %vm279, %v444
      %477 = vst.msk [vmem:[#allocation3 + $0x80] sm:$0xff] %vm279, %v445
      %478 = vst.msk [vmem:[#allocation3 + $0x88] sm:$0xff] %vm279, %v446
      %479 = vst.msk [vmem:[#allocation3 + $0x90] sm:$0xff] %vm279, %v447
      %480 = vst.msk [vmem:[#allocation3 + $0x98] sm:$0xff] %vm279, %v448
      %481 = vst.msk [vmem:[#allocation3 + $0xa0] sm:$0xff] %vm279, %v449
      %482 = vst.msk [vmem:[#allocation3 + $0xa8] sm:$0xff] %vm279, %v450
      %483 = vst.msk [vmem:[#allocation3 + $0xb0] sm:$0xff] %vm279, %v451
      %484 = vst.msk [vmem:[#allocation3 + $0xb8] sm:$0xff] %vm279, %v452
      %485 = vst.msk [vmem:[#allocation3 + $0xc0] sm:$0xff] %vm279, %v453
      %486 = vst.msk [vmem:[#allocation3 + $0xc8] sm:$0xff] %vm279, %v454
      %487 = vst.msk [vmem:[#allocation3 + $0xd0] sm:$0xff] %vm279, %v455
      %488 = vst.msk [vmem:[#allocation3 + $0xd8] sm:$0xff] %vm279, %v456
      %489 = vst.msk [vmem:[#allocation3 + $0xe0] sm:$0xff] %vm279, %v457
      %490 = vst.msk [vmem:[#allocation3 + $0xe8] sm:$0xff] %vm279, %v458
      %491 = vst.msk [vmem:[#allocation3 + $0xf0] sm:$0xff] %vm279, %v459
      %492 = vst.msk [vmem:[#allocation3 + $0xf8] sm:$0xff] %vm279, %v460
      %v493 = vld [vmem:[%s428 + $0x6] sm:$0xff]
      %v494 = vld [vmem:[%s428 + $0xe] sm:$0xff]
      %v495 = vld [vmem:[%s428 + $0x26] sm:$0xff]
      %v496 = vld [vmem:[%s428 + $0x2e] sm:$0xff]
      %v497 = vld [vmem:[%s428 + $0x46] sm:$0xff]
      %v498 = vld [vmem:[%s428 + $0x4e] sm:$0xff]
      %v499 = vld [vmem:[%s428 + $0x66] sm:$0xff]
      %v500 = vld [vmem:[%s428 + $0x6e] sm:$0xff]
      %v501 = vld [vmem:[%s428 + $0x86] sm:$0xff]
      %v502 = vld [vmem:[%s428 + $0x8e] sm:$0xff]
      %v503 = vld [vmem:[%s428 + $0xa6] sm:$0xff]
      %v504 = vld [vmem:[%s428 + $0xae] sm:$0xff]
      %v505 = vld [vmem:[%s428 + $0xc6] sm:$0xff]
      %v506 = vld [vmem:[%s428 + $0xce] sm:$0xff]
      %v507 = vld [vmem:[%s428 + $0xe6] sm:$0xff]
      %v508 = vld [vmem:[%s428 + $0xee] sm:$0xff]
      %v509 = vld [vmem:[%s428 + $0x106] sm:$0xff]
      %v510 = vld [vmem:[%s428 + $0x10e] sm:$0xff]
      %v511 = vld [vmem:[%s428 + $0x126] sm:$0xff]
      %v512 = vld [vmem:[%s428 + $0x12e] sm:$0xff]
      %v513 = vld [vmem:[%s428 + $0x146] sm:$0xff]
      %v514 = vld [vmem:[%s428 + $0x14e] sm:$0xff]
      %v515 = vld [vmem:[%s428 + $0x166] sm:$0xff]
      %v516 = vld [vmem:[%s428 + $0x16e] sm:$0xff]
      %v517 = vld [vmem:[%s428 + $0x186] sm:$0xff]
      %v518 = vld [vmem:[%s428 + $0x18e] sm:$0xff]
      %v519 = vld [vmem:[%s428 + $0x1a6] sm:$0xff]
      %v520 = vld [vmem:[%s428 + $0x1ae] sm:$0xff]
      %v521 = vld [vmem:[%s428 + $0x1c6] sm:$0xff]
      %v522 = vld [vmem:[%s428 + $0x1ce] sm:$0xff]
      %v523 = vld [vmem:[%s428 + $0x1e6] sm:$0xff]
      %v524 = vld [vmem:[%s428 + $0x1ee] sm:$0xff]
      %557 = vrot.lane.b32.xlu0 %v493, 4
      %v558 = vpop.permute.xlu0 %557
      %559 = vrot.lane.b32.xlu0 %v494, 4
      %v560 = vpop.permute.xlu0 %559
      %561 = vrot.lane.b32.xlu0 %v495, 4
      %v562 = vpop.permute.xlu0 %561
      %563 = vrot.lane.b32.xlu0 %v496, 4
      %v564 = vpop.permute.xlu0 %563
      %565 = vrot.lane.b32.xlu0 %v497, 4
      %v566 = vpop.permute.xlu0 %565
      %567 = vrot.lane.b32.xlu0 %v498, 4
      %v568 = vpop.permute.xlu0 %567
      %569 = vrot.lane.b32.xlu0 %v499, 4
      %v570 = vpop.permute.xlu0 %569
      %571 = vrot.lane.b32.xlu0 %v500, 4
      %v572 = vpop.permute.xlu0 %571
      %573 = vrot.lane.b32.xlu0 %v501, 4
      %v574 = vpop.permute.xlu0 %573
      %575 = vrot.lane.b32.xlu0 %v502, 4
      %v576 = vpop.permute.xlu0 %575
      %577 = vrot.lane.b32.xlu0 %v503, 4
      %v578 = vpop.permute.xlu0 %577
      %579 = vrot.lane.b32.xlu0 %v504, 4
      %v580 = vpop.permute.xlu0 %579
      %581 = vrot.lane.b32.xlu0 %v505, 4
      %v582 = vpop.permute.xlu0 %581
      %583 = vrot.lane.b32.xlu0 %v506, 4
      %v584 = vpop.permute.xlu0 %583
      %585 = vrot.lane.b32.xlu0 %v507, 4
      %v586 = vpop.permute.xlu0 %585
      %587 = vrot.lane.b32.xlu0 %v508, 4
      %v588 = vpop.permute.xlu0 %587
      %589 = vrot.lane.b32.xlu0 %v509, 4
      %v590 = vpop.permute.xlu0 %589
      %591 = vrot.lane.b32.xlu0 %v510, 4
      %v592 = vpop.permute.xlu0 %591
      %593 = vrot.lane.b32.xlu0 %v511, 4
      %v594 = vpop.permute.xlu0 %593
      %595 = vrot.lane.b32.xlu0 %v512, 4
      %v596 = vpop.permute.xlu0 %595
      %597 = vrot.lane.b32.xlu0 %v513, 4
      %v598 = vpop.permute.xlu0 %597
      %599 = vrot.lane.b32.xlu0 %v514, 4
      %v600 = vpop.permute.xlu0 %599
      %601 = vrot.lane.b32.xlu0 %v515, 4
      %v602 = vpop.permute.xlu0 %601
      %603 = vrot.lane.b32.xlu0 %v516, 4
      %v604 = vpop.permute.xlu0 %603
      %605 = vrot.lane.b32.xlu0 %v517, 4
      %v606 = vpop.permute.xlu0 %605
      %607 = vrot.lane.b32.xlu0 %v518, 4
      %v608 = vpop.permute.xlu0 %607
      %609 = vrot.lane.b32.xlu0 %v519, 4
      %v610 = vpop.permute.xlu0 %609
      %611 = vrot.lane.b32.xlu0 %v520, 4
      %v612 = vpop.permute.xlu0 %611
      %613 = vrot.lane.b32.xlu0 %v521, 4
      %v614 = vpop.permute.xlu0 %613
      %615 = vrot.lane.b32.xlu0 %v522, 4
      %v616 = vpop.permute.xlu0 %615
      %617 = vrot.lane.b32.xlu0 %v523, 4
      %v618 = vpop.permute.xlu0 %617
      %619 = vrot.lane.b32.xlu0 %v524, 4
      %v620 = vpop.permute.xlu0 %619
      %vm653 = vcmask 64544
      %654 = vst.msk [vmem:[#allocation3] sm:$0xff] %vm653, %v558
      %655 = vst.msk [vmem:[#allocation3 + $0x8] sm:$0xff] %vm653, %v560
      %656 = vst.msk [vmem:[#allocation3 + $0x10] sm:$0xff] %vm653, %v562
      %657 = vst.msk [vmem:[#allocation3 + $0x18] sm:$0xff] %vm653, %v564
      %658 = vst.msk [vmem:[#allocation3 + $0x20] sm:$0xff] %vm653, %v566
      %659 = vst.msk [vmem:[#allocation3 + $0x28] sm:$0xff] %vm653, %v568
      %660 = vst.msk [vmem:[#allocation3 + $0x30] sm:$0xff] %vm653, %v570
      %661 = vst.msk [vmem:[#allocation3 + $0x38] sm:$0xff] %vm653, %v572
      %662 = vst.msk [vmem:[#allocation3 + $0x40] sm:$0xff] %vm653, %v574
      %663 = vst.msk [vmem:[#allocation3 + $0x48] sm:$0xff] %vm653, %v576
      %664 = vst.msk [vmem:[#allocation3 + $0x50] sm:$0xff] %vm653, %v578
      %665 = vst.msk [vmem:[#allocation3 + $0x58] sm:$0xff] %vm653, %v580
      %666 = vst.msk [vmem:[#allocation3 + $0x60] sm:$0xff] %vm653, %v582
      %667 = vst.msk [vmem:[#allocation3 + $0x68] sm:$0xff] %vm653, %v584
      %668 = vst.msk [vmem:[#allocation3 + $0x70] sm:$0xff] %vm653, %v586
      %669 = vst.msk [vmem:[#allocation3 + $0x78] sm:$0xff] %vm653, %v588
      %670 = vst.msk [vmem:[#allocation3 + $0x80] sm:$0xff] %vm653, %v590
      %671 = vst.msk [vmem:[#allocation3 + $0x88] sm:$0xff] %vm653, %v592
      %672 = vst.msk [vmem:[#allocation3 + $0x90] sm:$0xff] %vm653, %v594
      %673 = vst.msk [vmem:[#allocation3 + $0x98] sm:$0xff] %vm653, %v596
      %674 = vst.msk [vmem:[#allocation3 + $0xa0] sm:$0xff] %vm653, %v598
      %675 = vst.msk [vmem:[#allocation3 + $0xa8] sm:$0xff] %vm653, %v600
      %676 = vst.msk [vmem:[#allocation3 + $0xb0] sm:$0xff] %vm653, %v602
      %677 = vst.msk [vmem:[#allocation3 + $0xb8] sm:$0xff] %vm653, %v604
      %678 = vst.msk [vmem:[#allocation3 + $0xc0] sm:$0xff] %vm653, %v606
      %679 = vst.msk [vmem:[#allocation3 + $0xc8] sm:$0xff] %vm653, %v608
      %680 = vst.msk [vmem:[#allocation3 + $0xd0] sm:$0xff] %vm653, %v610
      %681 = vst.msk [vmem:[#allocation3 + $0xd8] sm:$0xff] %vm653, %v612
      %682 = vst.msk [vmem:[#allocation3 + $0xe0] sm:$0xff] %vm653, %v614
      %683 = vst.msk [vmem:[#allocation3 + $0xe8] sm:$0xff] %vm653, %v616
      %684 = vst.msk [vmem:[#allocation3 + $0xf0] sm:$0xff] %vm653, %v618
      %685 = vst.msk [vmem:[#allocation3 + $0xf8] sm:$0xff] %vm653, %v620
      %v686 = vld [vmem:[%s428 + $0x7] sm:$0xff]
      %v687 = vld [vmem:[%s428 + $0xf] sm:$0xff]
      %v688 = vld [vmem:[%s428 + $0x27] sm:$0xff]
      %v689 = vld [vmem:[%s428 + $0x2f] sm:$0xff]
      %v690 = vld [vmem:[%s428 + $0x47] sm:$0xff]
      %v691 = vld [vmem:[%s428 + $0x4f] sm:$0xff]
      %v692 = vld [vmem:[%s428 + $0x67] sm:$0xff]
      %v693 = vld [vmem:[%s428 + $0x6f] sm:$0xff]
      %v694 = vld [vmem:[%s428 + $0x87] sm:$0xff]
      %v695 = vld [vmem:[%s428 + $0x8f] sm:$0xff]
      %v696 = vld [vmem:[%s428 + $0xa7] sm:$0xff]
      %v697 = vld [vmem:[%s428 + $0xaf] sm:$0xff]
      %v698 = vld [vmem:[%s428 + $0xc7] sm:$0xff]
      %v699 = vld [vmem:[%s428 + $0xcf] sm:$0xff]
      %v700 = vld [vmem:[%s428 + $0xe7] sm:$0xff]
      %v701 = vld [vmem:[%s428 + $0xef] sm:$0xff]
      %v702 = vld [vmem:[%s428 + $0x107] sm:$0xff]
      %v703 = vld [vmem:[%s428 + $0x10f] sm:$0xff]
      %v704 = vld [vmem:[%s428 + $0x127] sm:$0xff]
      %v705 = vld [vmem:[%s428 + $0x12f] sm:$0xff]
      %v706 = vld [vmem:[%s428 + $0x147] sm:$0xff]
      %v707 = vld [vmem:[%s428 + $0x14f] sm:$0xff]
      %v708 = vld [vmem:[%s428 + $0x167] sm:$0xff]
      %v709 = vld [vmem:[%s428 + $0x16f] sm:$0xff]
      %v710 = vld [vmem:[%s428 + $0x187] sm:$0xff]
      %v711 = vld [vmem:[%s428 + $0x18f] sm:$0xff]
      %v712 = vld [vmem:[%s428 + $0x1a7] sm:$0xff]
      %v713 = vld [vmem:[%s428 + $0x1af] sm:$0xff]
      %v714 = vld [vmem:[%s428 + $0x1c7] sm:$0xff]
      %v715 = vld [vmem:[%s428 + $0x1cf] sm:$0xff]
      %v716 = vld [vmem:[%s428 + $0x1e7] sm:$0xff]
      %v717 = vld [vmem:[%s428 + $0x1ef] sm:$0xff]
      %750 = vrot.lane.b32.xlu0 %v686, 8
      %v751 = vpop.permute.xlu0 %750
      %752 = vrot.lane.b32.xlu0 %v687, 8
      %v753 = vpop.permute.xlu0 %752
      %754 = vrot.lane.b32.xlu0 %v688, 8
      %v755 = vpop.permute.xlu0 %754
      %756 = vrot.lane.b32.xlu0 %v689, 8
      %v757 = vpop.permute.xlu0 %756
      %758 = vrot.lane.b32.xlu0 %v690, 8
      %v759 = vpop.permute.xlu0 %758
      %760 = vrot.lane.b32.xlu0 %v691, 8
      %v761 = vpop.permute.xlu0 %760
      %762 = vrot.lane.b32.xlu0 %v692, 8
      %v763 = vpop.permute.xlu0 %762
      %764 = vrot.lane.b32.xlu0 %v693, 8
      %v765 = vpop.permute.xlu0 %764
      %766 = vrot.lane.b32.xlu0 %v694, 8
      %v767 = vpop.permute.xlu0 %766
      %768 = vrot.lane.b32.xlu0 %v695, 8
      %v769 = vpop.permute.xlu0 %768
      %770 = vrot.lane.b32.xlu0 %v696, 8
      %v771 = vpop.permute.xlu0 %770
      %772 = vrot.lane.b32.xlu0 %v697, 8
      %v773 = vpop.permute.xlu0 %772
      %774 = vrot.lane.b32.xlu0 %v698, 8
      %v775 = vpop.permute.xlu0 %774
      %776 = vrot.lane.b32.xlu0 %v699, 8
      %v777 = vpop.permute.xlu0 %776
      %778 = vrot.lane.b32.xlu0 %v700, 8
      %v779 = vpop.permute.xlu0 %778
      %780 = vrot.lane.b32.xlu0 %v701, 8
      %v781 = vpop.permute.xlu0 %780
      %782 = vrot.lane.b32.xlu0 %v702, 8
      %v783 = vpop.permute.xlu0 %782
      %784 = vrot.lane.b32.xlu0 %v703, 8
      %v785 = vpop.permute.xlu0 %784
      %786 = vrot.lane.b32.xlu0 %v704, 8
      %v787 = vpop.permute.xlu0 %786
      %788 = vrot.lane.b32.xlu0 %v705, 8
      %v789 = vpop.permute.xlu0 %788
      %790 = vrot.lane.b32.xlu0 %v706, 8
      %v791 = vpop.permute.xlu0 %790
      %792 = vrot.lane.b32.xlu0 %v707, 8
      %v793 = vpop.permute.xlu0 %792
      %794 = vrot.lane.b32.xlu0 %v708, 8
      %v795 = vpop.permute.xlu0 %794
      %796 = vrot.lane.b32.xlu0 %v709, 8
      %v797 = vpop.permute.xlu0 %796
      %798 = vrot.lane.b32.xlu0 %v710, 8
      %v799 = vpop.permute.xlu0 %798
      %800 = vrot.lane.b32.xlu0 %v711, 8
      %v801 = vpop.permute.xlu0 %800
      %802 = vrot.lane.b32.xlu0 %v712, 8
      %v803 = vpop.permute.xlu0 %802
      %804 = vrot.lane.b32.xlu0 %v713, 8
      %v805 = vpop.permute.xlu0 %804
      %806 = vrot.lane.b32.xlu0 %v714, 8
      %v807 = vpop.permute.xlu0 %806
      %808 = vrot.lane.b32.xlu0 %v715, 8
      %v809 = vpop.permute.xlu0 %808
      %810 = vrot.lane.b32.xlu0 %v716, 8
      %v811 = vpop.permute.xlu0 %810
      %812 = vrot.lane.b32.xlu0 %v717, 8
      %v813 = vpop.permute.xlu0 %812
      %vm846 = vcmask 97344
      %847 = vst.msk [vmem:[#allocation3] sm:$0xff] %vm846, %v751
      %848 = vst.msk [vmem:[#allocation3 + $0x8] sm:$0xff] %vm846, %v753
      %849 = vst.msk [vmem:[#allocation3 + $0x10] sm:$0xff] %vm846, %v755
      %850 = vst.msk [vmem:[#allocation3 + $0x18] sm:$0xff] %vm846, %v757
      %851 = vst.msk [vmem:[#allocation3 + $0x20] sm:$0xff] %vm846, %v759
      %852 = vst.msk [vmem:[#allocation3 + $0x28] sm:$0xff] %vm846, %v761
      %853 = vst.msk [vmem:[#allocation3 + $0x30] sm:$0xff] %vm846, %v763
      %854 = vst.msk [vmem:[#allocation3 + $0x38] sm:$0xff] %vm846, %v765
      %855 = vst.msk [vmem:[#allocation3 + $0x40] sm:$0xff] %vm846, %v767
      %856 = vst.msk [vmem:[#allocation3 + $0x48] sm:$0xff] %vm846, %v769
      %857 = vst.msk [vmem:[#allocation3 + $0x50] sm:$0xff] %vm846, %v771
      %858 = vst.msk [vmem:[#allocation3 + $0x58] sm:$0xff] %vm846, %v773
      %859 = vst.msk [vmem:[#allocation3 + $0x60] sm:$0xff] %vm846, %v775
      %860 = vst.msk [vmem:[#allocation3 + $0x68] sm:$0xff] %vm846, %v777
      %861 = vst.msk [vmem:[#allocation3 + $0x70] sm:$0xff] %vm846, %v779
      %862 = vst.msk [vmem:[#allocation3 + $0x78] sm:$0xff] %vm846, %v781
      %863 = vst.msk [vmem:[#allocation3 + $0x80] sm:$0xff] %vm846, %v783
      %864 = vst.msk [vmem:[#allocation3 + $0x88] sm:$0xff] %vm846, %v785
      %865 = vst.msk [vmem:[#allocation3 + $0x90] sm:$0xff] %vm846, %v787
      %866 = vst.msk [vmem:[#allocation3 + $0x98] sm:$0xff] %vm846, %v789
      %867 = vst.msk [vmem:[#allocation3 + $0xa0] sm:$0xff] %vm846, %v791
      %868 = vst.msk [vmem:[#allocation3 + $0xa8] sm:$0xff] %vm846, %v793
      %869 = vst.msk [vmem:[#allocation3 + $0xb0] sm:$0xff] %vm846, %v795
      %870 = vst.msk [vmem:[#allocation3 + $0xb8] sm:$0xff] %vm846, %v797
      %871 = vst.msk [vmem:[#allocation3 + $0xc0] sm:$0xff] %vm846, %v799
      %872 = vst.msk [vmem:[#allocation3 + $0xc8] sm:$0xff] %vm846, %v801
      %873 = vst.msk [vmem:[#allocation3 + $0xd0] sm:$0xff] %vm846, %v803
      %874 = vst.msk [vmem:[#allocation3 + $0xd8] sm:$0xff] %vm846, %v805
      %875 = vst.msk [vmem:[#allocation3 + $0xe0] sm:$0xff] %vm846, %v807
      %876 = vst.msk [vmem:[#allocation3 + $0xe8] sm:$0xff] %vm846, %v809
      %877 = vst.msk [vmem:[#allocation3 + $0xf0] sm:$0xff] %vm846, %v811
      %878 = vst.msk [vmem:[#allocation3 + $0xf8] sm:$0xff] %vm846, %v813
      %v879 = vld [vmem:[%s330 + $0x5] sm:$0xff]
      %v880 = vld [vmem:[%s330 + $0xd] sm:$0xff]
      %v881 = vld [vmem:[%s330 + $0x25] sm:$0xff]
      %v882 = vld [vmem:[%s330 + $0x2d] sm:$0xff]
      %v883 = vld [vmem:[%s330 + $0x45] sm:$0xff]
      %v884 = vld [vmem:[%s330 + $0x4d] sm:$0xff]
      %v885 = vld [vmem:[%s330 + $0x65] sm:$0xff]
      %v886 = vld [vmem:[%s330 + $0x6d] sm:$0xff]
      %v887 = vld [vmem:[%s330 + $0x85] sm:$0xff]
      %v888 = vld [vmem:[%s330 + $0x8d] sm:$0xff]
      %v889 = vld [vmem:[%s330 + $0xa5] sm:$0xff]
      %v890 = vld [vmem:[%s330 + $0xad] sm:$0xff]
      %v891 = vld [vmem:[%s330 + $0xc5] sm:$0xff]
      %v892 = vld [vmem:[%s330 + $0xcd] sm:$0xff]
      %v893 = vld [vmem:[%s330 + $0xe5] sm:$0xff]
      %v894 = vld [vmem:[%s330 + $0xed] sm:$0xff]
      %v895 = vld [vmem:[%s330 + $0x105] sm:$0xff]
      %v896 = vld [vmem:[%s330 + $0x10d] sm:$0xff]
      %v897 = vld [vmem:[%s330 + $0x125] sm:$0xff]
      %v898 = vld [vmem:[%s330 + $0x12d] sm:$0xff]
      %v899 = vld [vmem:[%s330 + $0x145] sm:$0xff]
      %v900 = vld [vmem:[%s330 + $0x14d] sm:$0xff]
      %v901 = vld [vmem:[%s330 + $0x165] sm:$0xff]
      %v902 = vld [vmem:[%s330 + $0x16d] sm:$0xff]
      %v903 = vld [vmem:[%s330 + $0x185] sm:$0xff]
      %v904 = vld [vmem:[%s330 + $0x18d] sm:$0xff]
      %v905 = vld [vmem:[%s330 + $0x1a5] sm:$0xff]
      %v906 = vld [vmem:[%s330 + $0x1ad] sm:$0xff]
      %v907 = vld [vmem:[%s330 + $0x1c5] sm:$0xff]
      %v908 = vld [vmem:[%s330 + $0x1cd] sm:$0xff]
      %v909 = vld [vmem:[%s330 + $0x1e5] sm:$0xff]
      %v910 = vld [vmem:[%s330 + $0x1ed] sm:$0xff]
      %943 = vrot.lane.b32.xlu0 %v879, 12
      %v944 = vpop.permute.xlu0 %943
      %945 = vrot.lane.b32.xlu0 %v880, 12
      %v946 = vpop.permute.xlu0 %945
      %947 = vrot.lane.b32.xlu0 %v881, 12
      %v948 = vpop.permute.xlu0 %947
      %949 = vrot.lane.b32.xlu0 %v882, 12
      %v950 = vpop.permute.xlu0 %949
      %951 = vrot.lane.b32.xlu0 %v883, 12
      %v952 = vpop.permute.xlu0 %951
      %953 = vrot.lane.b32.xlu0 %v884, 12
      %v954 = vpop.permute.xlu0 %953
      %955 = vrot.lane.b32.xlu0 %v885, 12
      %v956 = vpop.permute.xlu0 %955
      %957 = vrot.lane.b32.xlu0 %v886, 12
      %v958 = vpop.permute.xlu0 %957
      %959 = vrot.lane.b32.xlu0 %v887, 12
      %v960 = vpop.permute.xlu0 %959
      %961 = vrot.lane.b32.xlu0 %v888, 12
      %v962 = vpop.permute.xlu0 %961
      %963 = vrot.lane.b32.xlu0 %v889, 12
      %v964 = vpop.permute.xlu0 %963
      %965 = vrot.lane.b32.xlu0 %v890, 12
      %v966 = vpop.permute.xlu0 %965
      %967 = vrot.lane.b32.xlu0 %v891, 12
      %v968 = vpop.permute.xlu0 %967
      %969 = vrot.lane.b32.xlu0 %v892, 12
      %v970 = vpop.permute.xlu0 %969
      %971 = vrot.lane.b32.xlu0 %v893, 12
      %v972 = vpop.permute.xlu0 %971
      %973 = vrot.lane.b32.xlu0 %v894, 12
      %v974 = vpop.permute.xlu0 %973
      %975 = vrot.lane.b32.xlu0 %v895, 12
      %v976 = vpop.permute.xlu0 %975
      %977 = vrot.lane.b32.xlu0 %v896, 12
      %v978 = vpop.permute.xlu0 %977
      %979 = vrot.lane.b32.xlu0 %v897, 12
      %v980 = vpop.permute.xlu0 %979
      %981 = vrot.lane.b32.xlu0 %v898, 12
      %v982 = vpop.permute.xlu0 %981
      %983 = vrot.lane.b32.xlu0 %v899, 12
      %v984 = vpop.permute.xlu0 %983
      %985 = vrot.lane.b32.xlu0 %v900, 12
      %v986 = vpop.permute.xlu0 %985
      %987 = vrot.lane.b32.xlu0 %v901, 12
      %v988 = vpop.permute.xlu0 %987
      %989 = vrot.lane.b32.xlu0 %v902, 12
      %v990 = vpop.permute.xlu0 %989
      %991 = vrot.lane.b32.xlu0 %v903, 12
      %v992 = vpop.permute.xlu0 %991
      %993 = vrot.lane.b32.xlu0 %v904, 12
      %v994 = vpop.permute.xlu0 %993
      %995 = vrot.lane.b32.xlu0 %v905, 12
      %v996 = vpop.permute.xlu0 %995
      %997 = vrot.lane.b32.xlu0 %v906, 12
      %v998 = vpop.permute.xlu0 %997
      %999 = vrot.lane.b32.xlu0 %v907, 12
      %v1000 = vpop.permute.xlu0 %999
      %1001 = vrot.lane.b32.xlu0 %v908, 12
      %v1002 = vpop.permute.xlu0 %1001
      %1003 = vrot.lane.b32.xlu0 %v909, 12
      %v1004 = vpop.permute.xlu0 %1003
      %1005 = vrot.lane.b32.xlu0 %v910, 12
      %v1006 = vpop.permute.xlu0 %1005
      %vm1039 = vcmask 130144
      %1040 = vst.msk [vmem:[#allocation3] sm:$0xff] %vm1039, %v944
      %1041 = vst.msk [vmem:[#allocation3 + $0x8] sm:$0xff] %vm1039, %v946
      %1042 = vst.msk [vmem:[#allocation3 + $0x10] sm:$0xff] %vm1039, %v948
      %1043 = vst.msk [vmem:[#allocation3 + $0x18] sm:$0xff] %vm1039, %v950
      %1044 = vst.msk [vmem:[#allocation3 + $0x20] sm:$0xff] %vm1039, %v952
      %1045 = vst.msk [vmem:[#allocation3 + $0x28] sm:$0xff] %vm1039, %v954
      %1046 = vst.msk [vmem:[#allocation3 + $0x30] sm:$0xff] %vm1039, %v956
      %1047 = vst.msk [vmem:[#allocation3 + $0x38] sm:$0xff] %vm1039, %v958
      %1048 = vst.msk [vmem:[#allocation3 + $0x40] sm:$0xff] %vm1039, %v960
      %1049 = vst.msk [vmem:[#allocation3 + $0x48] sm:$0xff] %vm1039, %v962
      %1050 = vst.msk [vmem:[#allocation3 + $0x50] sm:$0xff] %vm1039, %v964
      %1051 = vst.msk [vmem:[#allocation3 + $0x58] sm:$0xff] %vm1039, %v966
      %1052 = vst.msk [vmem:[#allocation3 + $0x60] sm:$0xff] %vm1039, %v968
      %1053 = vst.msk [vmem:[#allocation3 + $0x68] sm:$0xff] %vm1039, %v970
      %1054 = vst.msk [vmem:[#allocation3 + $0x70] sm:$0xff] %vm1039, %v972
      %1055 = vst.msk [vmem:[#allocation3 + $0x78] sm:$0xff] %vm1039, %v974
      %1056 = vst.msk [vmem:[#allocation3 + $0x80] sm:$0xff] %vm1039, %v976
      %1057 = vst.msk [vmem:[#allocation3 + $0x88] sm:$0xff] %vm1039, %v978
      %1058 = vst.msk [vmem:[#allocation3 + $0x90] sm:$0xff] %vm1039, %v980
      %1059 = vst.msk [vmem:[#allocation3 + $0x98] sm:$0xff] %vm1039, %v982
      %1060 = vst.msk [vmem:[#allocation3 + $0xa0] sm:$0xff] %vm1039, %v984
      %1061 = vst.msk [vmem:[#allocation3 + $0xa8] sm:$0xff] %vm1039, %v986
      %1062 = vst.msk [vmem:[#allocation3 + $0xb0] sm:$0xff] %vm1039, %v988
      %1063 = vst.msk [vmem:[#allocation3 + $0xb8] sm:$0xff] %vm1039, %v990
      %1064 = vst.msk [vmem:[#allocation3 + $0xc0] sm:$0xff] %vm1039, %v992
      %1065 = vst.msk [vmem:[#allocation3 + $0xc8] sm:$0xff] %vm1039, %v994
      %1066 = vst.msk [vmem:[#allocation3 + $0xd0] sm:$0xff] %vm1039, %v996
      %1067 = vst.msk [vmem:[#allocation3 + $0xd8] sm:$0xff] %vm1039, %v998
      %1068 = vst.msk [vmem:[#allocation3 + $0xe0] sm:$0xff] %vm1039, %v1000
      %1069 = vst.msk [vmem:[#allocation3 + $0xe8] sm:$0xff] %vm1039, %v1002
      %1070 = vst.msk [vmem:[#allocation3 + $0xf0] sm:$0xff] %vm1039, %v1004
      %1071 = vst.msk [vmem:[#allocation3 + $0xf8] sm:$0xff] %vm1039, %v1006
      %v1072 = vld [vmem:[%s330 + $0x6] sm:$0xff]
      %v1073 = vld [vmem:[%s330 + $0xe] sm:$0xff]
      %v1074 = vld [vmem:[%s330 + $0x26] sm:$0xff]
      %v1075 = vld [vmem:[%s330 + $0x2e] sm:$0xff]
      %v1076 = vld [vmem:[%s330 + $0x46] sm:$0xff]
      %v1077 = vld [vmem:[%s330 + $0x4e] sm:$0xff]
      %v1078 = vld [vmem:[%s330 + $0x66] sm:$0xff]
      %v1079 = vld [vmem:[%s330 + $0x6e] sm:$0xff]
      %v1080 = vld [vmem:[%s330 + $0x86] sm:$0xff]
      %v1081 = vld [vmem:[%s330 + $0x8e] sm:$0xff]
      %v1082 = vld [vmem:[%s330 + $0xa6] sm:$0xff]
      %v1083 = vld [vmem:[%s330 + $0xae] sm:$0xff]
      %v1084 = vld [vmem:[%s330 + $0xc6] sm:$0xff]
      %v1085 = vld [vmem:[%s330 + $0xce] sm:$0xff]
      %v1086 = vld [vmem:[%s330 + $0xe6] sm:$0xff]
      %v1087 = vld [vmem:[%s330 + $0xee] sm:$0xff]
      %v1088 = vld [vmem:[%s330 + $0x106] sm:$0xff]
      %v1089 = vld [vmem:[%s330 + $0x10e] sm:$0xff]
      %v1090 = vld [vmem:[%s330 + $0x126] sm:$0xff]
      %v1091 = vld [vmem:[%s330 + $0x12e] sm:$0xff]
      %v1092 = vld [vmem:[%s330 + $0x146] sm:$0xff]
      %v1093 = vld [vmem:[%s330 + $0x14e] sm:$0xff]
      %v1094 = vld [vmem:[%s330 + $0x166] sm:$0xff]
      %v1095 = vld [vmem:[%s330 + $0x16e] sm:$0xff]
      %v1096 = vld [vmem:[%s330 + $0x186] sm:$0xff]
      %v1097 = vld [vmem:[%s330 + $0x18e] sm:$0xff]
      %v1098 = vld [vmem:[%s330 + $0x1a6] sm:$0xff]
      %v1099 = vld [vmem:[%s330 + $0x1ae] sm:$0xff]
      %v1100 = vld [vmem:[%s330 + $0x1c6] sm:$0xff]
      %v1101 = vld [vmem:[%s330 + $0x1ce] sm:$0xff]
      %v1102 = vld [vmem:[%s330 + $0x1e6] sm:$0xff]
      %v1103 = vld [vmem:[%s330 + $0x1ee] sm:$0xff]
      %1136 = vrot.lane.b32.xlu0 %v1072, 16
      %v1137 = vpop.permute.xlu0 %1136
      %1138 = vrot.lane.b32.xlu0 %v1073, 16
      %v1139 = vpop.permute.xlu0 %1138
      %1140 = vrot.lane.b32.xlu0 %v1074, 16
      %v1141 = vpop.permute.xlu0 %1140
      %1142 = vrot.lane.b32.xlu0 %v1075, 16
      %v1143 = vpop.permute.xlu0 %1142
      %1144 = vrot.lane.b32.xlu0 %v1076, 16
      %v1145 = vpop.permute.xlu0 %1144
      %1146 = vrot.lane.b32.xlu0 %v1077, 16
      %v1147 = vpop.permute.xlu0 %1146
      %1148 = vrot.lane.b32.xlu0 %v1078, 16
      %v1149 = vpop.permute.xlu0 %1148
      %1150 = vrot.lane.b32.xlu0 %v1079, 16
      %v1151 = vpop.permute.xlu0 %1150
      %1152 = vrot.lane.b32.xlu0 %v1080, 16
      %v1153 = vpop.permute.xlu0 %1152
      %1154 = vrot.lane.b32.xlu0 %v1081, 16
      %v1155 = vpop.permute.xlu0 %1154
      %1156 = vrot.lane.b32.xlu0 %v1082, 16
      %v1157 = vpop.permute.xlu0 %1156
      %1158 = vrot.lane.b32.xlu0 %v1083, 16
      %v1159 = vpop.permute.xlu0 %1158
      %1160 = vrot.lane.b32.xlu0 %v1084, 16
      %v1161 = vpop.permute.xlu0 %1160
      %1162 = vrot.lane.b32.xlu0 %v1085, 16
      %v1163 = vpop.permute.xlu0 %1162
      %1164 = vrot.lane.b32.xlu0 %v1086, 16
      %v1165 = vpop.permute.xlu0 %1164
      %1166 = vrot.lane.b32.xlu0 %v1087, 16
      %v1167 = vpop.permute.xlu0 %1166
      %1168 = vrot.lane.b32.xlu0 %v1088, 16
      %v1169 = vpop.permute.xlu0 %1168
      %1170 = vrot.lane.b32.xlu0 %v1089, 16
      %v1171 = vpop.permute.xlu0 %1170
      %1172 = vrot.lane.b32.xlu0 %v1090, 16
      %v1173 = vpop.permute.xlu0 %1172
      %1174 = vrot.lane.b32.xlu0 %v1091, 16
      %v1175 = vpop.permute.xlu0 %1174
      %1176 = vrot.lane.b32.xlu0 %v1092, 16
      %v1177 = vpop.permute.xlu0 %1176
      %1178 = vrot.lane.b32.xlu0 %v1093, 16
      %v1179 = vpop.permute.xlu0 %1178
      %1180 = vrot.lane.b32.xlu0 %v1094, 16
      %v1181 = vpop.permute.xlu0 %1180
      %1182 = vrot.lane.b32.xlu0 %v1095, 16
      %v1183 = vpop.permute.xlu0 %1182
      %1184 = vrot.lane.b32.xlu0 %v1096, 16
      %v1185 = vpop.permute.xlu0 %1184
      %1186 = vrot.lane.b32.xlu0 %v1097, 16
      %v1187 = vpop.permute.xlu0 %1186
      %1188 = vrot.lane.b32.xlu0 %v1098, 16
      %v1189 = vpop.permute.xlu0 %1188
      %1190 = vrot.lane.b32.xlu0 %v1099, 16
      %v1191 = vpop.permute.xlu0 %1190
      %1192 = vrot.lane.b32.xlu0 %v1100, 16
      %v1193 = vpop.permute.xlu0 %1192
      %1194 = vrot.lane.b32.xlu0 %v1101, 16
      %v1195 = vpop.permute.xlu0 %1194
      %1196 = vrot.lane.b32.xlu0 %v1102, 16
      %v1197 = vpop.permute.xlu0 %1196
      %1198 = vrot.lane.b32.xlu0 %v1103, 16
      %v1199 = vpop.permute.xlu0 %1198
      %vm1232 = vcmask 162944
      %1233 = vst.msk [vmem:[#allocation3] sm:$0xff] %vm1232, %v1137
      %1234 = vst.msk [vmem:[#allocation3 + $0x8] sm:$0xff] %vm1232, %v1139
      %1235 = vst.msk [vmem:[#allocation3 + $0x10] sm:$0xff] %vm1232, %v1141
      %1236 = vst.msk [vmem:[#allocation3 + $0x18] sm:$0xff] %vm1232, %v1143
      %1237 = vst.msk [vmem:[#allocation3 + $0x20] sm:$0xff] %vm1232, %v1145
      %1238 = vst.msk [vmem:[#allocation3 + $0x28] sm:$0xff] %vm1232, %v1147
      %1239 = vst.msk [vmem:[#allocation3 + $0x30] sm:$0xff] %vm1232, %v1149
      %1240 = vst.msk [vmem:[#allocation3 + $0x38] sm:$0xff] %vm1232, %v1151
      %1241 = vst.msk [vmem:[#allocation3 + $0x40] sm:$0xff] %vm1232, %v1153
      %1242 = vst.msk [vmem:[#allocation3 + $0x48] sm:$0xff] %vm1232, %v1155
      %1243 = vst.msk [vmem:[#allocation3 + $0x50] sm:$0xff] %vm1232, %v1157
      %1244 = vst.msk [vmem:[#allocation3 + $0x58] sm:$0xff] %vm1232, %v1159
      %1245 = vst.msk [vmem:[#allocation3 + $0x60] sm:$0xff] %vm1232, %v1161
      %1246 = vst.msk [vmem:[#allocation3 + $0x68] sm:$0xff] %vm1232, %v1163
      %1247 = vst.msk [vmem:[#allocation3 + $0x70] sm:$0xff] %vm1232, %v1165
      %1248 = vst.msk [vmem:[#allocation3 + $0x78] sm:$0xff] %vm1232, %v1167
      %1249 = vst.msk [vmem:[#allocation3 + $0x80] sm:$0xff] %vm1232, %v1169
      %1250 = vst.msk [vmem:[#allocation3 + $0x88] sm:$0xff] %vm1232, %v1171
      %1251 = vst.msk [vmem:[#allocation3 + $0x90] sm:$0xff] %vm1232, %v1173
      %1252 = vst.msk [vmem:[#allocation3 + $0x98] sm:$0xff] %vm1232, %v1175
      %1253 = vst.msk [vmem:[#allocation3 + $0xa0] sm:$0xff] %vm1232, %v1177
      %1254 = vst.msk [vmem:[#allocation3 + $0xa8] sm:$0xff] %vm1232, %v1179
      %1255 = vst.msk [vmem:[#allocation3 + $0xb0] sm:$0xff] %vm1232, %v1181
      %1256 = vst.msk [vmem:[#allocation3 + $0xb8] sm:$0xff] %vm1232, %v1183
      %1257 = vst.msk [vmem:[#allocation3 + $0xc0] sm:$0xff] %vm1232, %v1185
      %1258 = vst.msk [vmem:[#allocation3 + $0xc8] sm:$0xff] %vm1232, %v1187
      %1259 = vst.msk [vmem:[#allocation3 + $0xd0] sm:$0xff] %vm1232, %v1189
      %1260 = vst.msk [vmem:[#allocation3 + $0xd8] sm:$0xff] %vm1232, %v1191
      %1261 = vst.msk [vmem:[#allocation3 + $0xe0] sm:$0xff] %vm1232, %v1193
      %1262 = vst.msk [vmem:[#allocation3 + $0xe8] sm:$0xff] %vm1232, %v1195
      %1263 = vst.msk [vmem:[#allocation3 + $0xf0] sm:$0xff] %vm1232, %v1197
      %1264 = vst.msk [vmem:[#allocation3 + $0xf8] sm:$0xff] %vm1232, %v1199
      %v1265 = vld [vmem:[%s330 + $0x7] sm:$0xff]
      %v1266 = vld [vmem:[%s330 + $0xf] sm:$0xff]
      %v1267 = vld [vmem:[%s330 + $0x27] sm:$0xff]
      %v1268 = vld [vmem:[%s330 + $0x2f] sm:$0xff]
      %v1269 = vld [vmem:[%s330 + $0x47] sm:$0xff]
      %v1270 = vld [vmem:[%s330 + $0x4f] sm:$0xff]
      %v1271 = vld [vmem:[%s330 + $0x67] sm:$0xff]
      %v1272 = vld [vmem:[%s330 + $0x6f] sm:$0xff]
      %v1273 = vld [vmem:[%s330 + $0x87] sm:$0xff]
      %v1274 = vld [vmem:[%s330 + $0x8f] sm:$0xff]
      %v1275 = vld [vmem:[%s330 + $0xa7] sm:$0xff]
      %v1276 = vld [vmem:[%s330 + $0xaf] sm:$0xff]
      %v1277 = vld [vmem:[%s330 + $0xc7] sm:$0xff]
      %v1278 = vld [vmem:[%s330 + $0xcf] sm:$0xff]
      %v1279 = vld [vmem:[%s330 + $0xe7] sm:$0xff]
      %v1280 = vld [vmem:[%s330 + $0xef] sm:$0xff]
      %v1281 = vld [vmem:[%s330 + $0x107] sm:$0xff]
      %v1282 = vld [vmem:[%s330 + $0x10f] sm:$0xff]
      %v1283 = vld [vmem:[%s330 + $0x127] sm:$0xff]
      %v1284 = vld [vmem:[%s330 + $0x12f] sm:$0xff]
      %v1285 = vld [vmem:[%s330 + $0x147] sm:$0xff]
      %v1286 = vld [vmem:[%s330 + $0x14f] sm:$0xff]
      %v1287 = vld [vmem:[%s330 + $0x167] sm:$0xff]
      %v1288 = vld [vmem:[%s330 + $0x16f] sm:$0xff]
      %v1289 = vld [vmem:[%s330 + $0x187] sm:$0xff]
      %v1290 = vld [vmem:[%s330 + $0x18f] sm:$0xff]
      %v1291 = vld [vmem:[%s330 + $0x1a7] sm:$0xff]
      %v1292 = vld [vmem:[%s330 + $0x1af] sm:$0xff]
      %v1293 = vld [vmem:[%s330 + $0x1c7] sm:$0xff]
      %v1294 = vld [vmem:[%s330 + $0x1cf] sm:$0xff]
      %v1295 = vld [vmem:[%s330 + $0x1e7] sm:$0xff]
      %v1296 = vld [vmem:[%s330 + $0x1ef] sm:$0xff]
      %1329 = vrot.lane.b32.xlu0 %v1265, 20
      %v1330 = vpop.permute.xlu0 %1329
      %1331 = vrot.lane.b32.xlu0 %v1266, 20
      %v1332 = vpop.permute.xlu0 %1331
      %1333 = vrot.lane.b32.xlu0 %v1267, 20
      %v1334 = vpop.permute.xlu0 %1333
      %1335 = vrot.lane.b32.xlu0 %v1268, 20
      %v1336 = vpop.permute.xlu0 %1335
      %1337 = vrot.lane.b32.xlu0 %v1269, 20
      %v1338 = vpop.permute.xlu0 %1337
      %1339 = vrot.lane.b32.xlu0 %v1270, 20
      %v1340 = vpop.permute.xlu0 %1339
      %1341 = vrot.lane.b32.xlu0 %v1271, 20
      %v1342 = vpop.permute.xlu0 %1341
      %1343 = vrot.lane.b32.xlu0 %v1272, 20
      %v1344 = vpop.permute.xlu0 %1343
      %1345 = vrot.lane.b32.xlu0 %v1273, 20
      %v1346 = vpop.permute.xlu0 %1345
      %1347 = vrot.lane.b32.xlu0 %v1274, 20
      %v1348 = vpop.permute.xlu0 %1347
      %1349 = vrot.lane.b32.xlu0 %v1275, 20
      %v1350 = vpop.permute.xlu0 %1349
      %1351 = vrot.lane.b32.xlu0 %v1276, 20
      %v1352 = vpop.permute.xlu0 %1351
      %1353 = vrot.lane.b32.xlu0 %v1277, 20
      %v1354 = vpop.permute.xlu0 %1353
      %1355 = vrot.lane.b32.xlu0 %v1278, 20
      %v1356 = vpop.permute.xlu0 %1355
      %1357 = vrot.lane.b32.xlu0 %v1279, 20
      %v1358 = vpop.permute.xlu0 %1357
      %1359 = vrot.lane.b32.xlu0 %v1280, 20
      %v1360 = vpop.permute.xlu0 %1359
      %1361 = vrot.lane.b32.xlu0 %v1281, 20
      %v1362 = vpop.permute.xlu0 %1361
      %1363 = vrot.lane.b32.xlu0 %v1282, 20
      %v1364 = vpop.permute.xlu0 %1363
      %1365 = vrot.lane.b32.xlu0 %v1283, 20
      %v1366 = vpop.permute.xlu0 %1365
      %1367 = vrot.lane.b32.xlu0 %v1284, 20
      %v1368 = vpop.permute.xlu0 %1367
      %1369 = vrot.lane.b32.xlu0 %v1285, 20
      %v1370 = vpop.permute.xlu0 %1369
      %1371 = vrot.lane.b32.xlu0 %v1286, 20
      %v1372 = vpop.permute.xlu0 %1371
      %1373 = vrot.lane.b32.xlu0 %v1287, 20
      %v1374 = vpop.permute.xlu0 %1373
      %1375 = vrot.lane.b32.xlu0 %v1288, 20
      %v1376 = vpop.permute.xlu0 %1375
      %1377 = vrot.lane.b32.xlu0 %v1289, 20
      %v1378 = vpop.permute.xlu0 %1377
      %1379 = vrot.lane.b32.xlu0 %v1290, 20
      %v1380 = vpop.permute.xlu0 %1379
      %1381 = vrot.lane.b32.xlu0 %v1291, 20
      %v1382 = vpop.permute.xlu0 %1381
      %1383 = vrot.lane.b32.xlu0 %v1292, 20
      %v1384 = vpop.permute.xlu0 %1383
      %1385 = vrot.lane.b32.xlu0 %v1293, 20
      %v1386 = vpop.permute.xlu0 %1385
      %1387 = vrot.lane.b32.xlu0 %v1294, 20
      %v1388 = vpop.permute.xlu0 %1387
      %1389 = vrot.lane.b32.xlu0 %v1295, 20
      %v1390 = vpop.permute.xlu0 %1389
      %1391 = vrot.lane.b32.xlu0 %v1296, 20
      %v1392 = vpop.permute.xlu0 %1391
      %vm1425 = vcmask 195744
      %1426 = vst.msk [vmem:[#allocation3] sm:$0xff] %vm1425, %v1330
      %1427 = vst.msk [vmem:[#allocation3 + $0x8] sm:$0xff] %vm1425, %v1332
      %1428 = vst.msk [vmem:[#allocation3 + $0x10] sm:$0xff] %vm1425, %v1334
      %1429 = vst.msk [vmem:[#allocation3 + $0x18] sm:$0xff] %vm1425, %v1336
      %1430 = vst.msk [vmem:[#allocation3 + $0x20] sm:$0xff] %vm1425, %v1338
      %1431 = vst.msk [vmem:[#allocation3 + $0x28] sm:$0xff] %vm1425, %v1340
      %1432 = vst.msk [vmem:[#allocation3 + $0x30] sm:$0xff] %vm1425, %v1342
      %1433 = vst.msk [vmem:[#allocation3 + $0x38] sm:$0xff] %vm1425, %v1344
      %1434 = vst.msk [vmem:[#allocation3 + $0x40] sm:$0xff] %vm1425, %v1346
      %1435 = vst.msk [vmem:[#allocation3 + $0x48] sm:$0xff] %vm1425, %v1348
      %1436 = vst.msk [vmem:[#allocation3 + $0x50] sm:$0xff] %vm1425, %v1350
      %1437 = vst.msk [vmem:[#allocation3 + $0x58] sm:$0xff] %vm1425, %v1352
      %1438 = vst.msk [vmem:[#allocation3 + $0x60] sm:$0xff] %vm1425, %v1354
      %1439 = vst.msk [vmem:[#allocation3 + $0x68] sm:$0xff] %vm1425, %v1356
      %1440 = vst.msk [vmem:[#allocation3 + $0x70] sm:$0xff] %vm1425, %v1358
      %1441 = vst.msk [vmem:[#allocation3 + $0x78] sm:$0xff] %vm1425, %v1360
      %1442 = vst.msk [vmem:[#allocation3 + $0x80] sm:$0xff] %vm1425, %v1362
      %1443 = vst.msk [vmem:[#allocation3 + $0x88] sm:$0xff] %vm1425, %v1364
      %1444 = vst.msk [vmem:[#allocation3 + $0x90] sm:$0xff] %vm1425, %v1366
      %1445 = vst.msk [vmem:[#allocation3 + $0x98] sm:$0xff] %vm1425, %v1368
      %1446 = vst.msk [vmem:[#allocation3 + $0xa0] sm:$0xff] %vm1425, %v1370
      %1447 = vst.msk [vmem:[#allocation3 + $0xa8] sm:$0xff] %vm1425, %v1372
      %1448 = vst.msk [vmem:[#allocation3 + $0xb0] sm:$0xff] %vm1425, %v1374
      %1449 = vst.msk [vmem:[#allocation3 + $0xb8] sm:$0xff] %vm1425, %v1376
      %1450 = vst.msk [vmem:[#allocation3 + $0xc0] sm:$0xff] %vm1425, %v1378
      %1451 = vst.msk [vmem:[#allocation3 + $0xc8] sm:$0xff] %vm1425, %v1380
      %1452 = vst.msk [vmem:[#allocation3 + $0xd0] sm:$0xff] %vm1425, %v1382
      %1453 = vst.msk [vmem:[#allocation3 + $0xd8] sm:$0xff] %vm1425, %v1384
      %1454 = vst.msk [vmem:[#allocation3 + $0xe0] sm:$0xff] %vm1425, %v1386
      %1455 = vst.msk [vmem:[#allocation3 + $0xe8] sm:$0xff] %vm1425, %v1388
      %1456 = vst.msk [vmem:[#allocation3 + $0xf0] sm:$0xff] %vm1425, %v1390
      %1457 = vst.msk [vmem:[#allocation3 + $0xf8] sm:$0xff] %vm1425, %v1392
      %s1458 = scalar_lea.vmem [#allocation2], 224
      %v1459 = vld [vmem:[%s1458 + $0x5] sm:$0xff]
      %v1460 = vld [vmem:[%s1458 + $0xd] sm:$0xff]
      %v1461 = vld [vmem:[%s1458 + $0x25] sm:$0xff]
      %v1462 = vld [vmem:[%s1458 + $0x2d] sm:$0xff]
      %v1463 = vld [vmem:[%s1458 + $0x45] sm:$0xff]
      %v1464 = vld [vmem:[%s1458 + $0x4d] sm:$0xff]
      %v1465 = vld [vmem:[%s1458 + $0x65] sm:$0xff]
      %v1466 = vld [vmem:[%s1458 + $0x6d] sm:$0xff]
      %v1467 = vld [vmem:[%s1458 + $0x85] sm:$0xff]
      %v1468 = vld [vmem:[%s1458 + $0x8d] sm:$0xff]
      %v1469 = vld [vmem:[%s1458 + $0xa5] sm:$0xff]
      %v1470 = vld [vmem:[%s1458 + $0xad] sm:$0xff]
      %v1471 = vld [vmem:[%s1458 + $0xc5] sm:$0xff]
      %v1472 = vld [vmem:[%s1458 + $0xcd] sm:$0xff]
      %v1473 = vld [vmem:[%s1458 + $0xe5] sm:$0xff]
      %v1474 = vld [vmem:[%s1458 + $0xed] sm:$0xff]
      %v1475 = vld [vmem:[%s1458 + $0x105] sm:$0xff]
      %v1476 = vld [vmem:[%s1458 + $0x10d] sm:$0xff]
      %v1477 = vld [vmem:[%s1458 + $0x125] sm:$0xff]
      %v1478 = vld [vmem:[%s1458 + $0x12d] sm:$0xff]
      %v1479 = vld [vmem:[%s1458 + $0x145] sm:$0xff]
      %v1480 = vld [vmem:[%s1458 + $0x14d] sm:$0xff]
      %v1481 = vld [vmem:[%s1458 + $0x165] sm:$0xff]
      %v1482 = vld [vmem:[%s1458 + $0x16d] sm:$0xff]
      %v1483 = vld [vmem:[%s1458 + $0x185] sm:$0xff]
      %v1484 = vld [vmem:[%s1458 + $0x18d] sm:$0xff]
      %v1485 = vld [vmem:[%s1458 + $0x1a5] sm:$0xff]
      %v1486 = vld [vmem:[%s1458 + $0x1ad] sm:$0xff]
      %v1487 = vld [vmem:[%s1458 + $0x1c5] sm:$0xff]
      %v1488 = vld [vmem:[%s1458 + $0x1cd] sm:$0xff]
      %v1489 = vld [vmem:[%s1458 + $0x1e5] sm:$0xff]
      %v1490 = vld [vmem:[%s1458 + $0x1ed] sm:$0xff]
      %1523 = vrot.lane.b32.xlu0 %v1459, 24
      %v1524 = vpop.permute.xlu0 %1523
      %1525 = vrot.lane.b32.xlu0 %v1460, 24
      %v1526 = vpop.permute.xlu0 %1525
      %1527 = vrot.lane.b32.xlu0 %v1461, 24
      %v1528 = vpop.permute.xlu0 %1527
      %1529 = vrot.lane.b32.xlu0 %v1462, 24
      %v1530 = vpop.permute.xlu0 %1529
      %1531 = vrot.lane.b32.xlu0 %v1463, 24
      %v1532 = vpop.permute.xlu0 %1531
      %1533 = vrot.lane.b32.xlu0 %v1464, 24
      %v1534 = vpop.permute.xlu0 %1533
      %1535 = vrot.lane.b32.xlu0 %v1465, 24
      %v1536 = vpop.permute.xlu0 %1535
      %1537 = vrot.lane.b32.xlu0 %v1466, 24
      %v1538 = vpop.permute.xlu0 %1537
      %1539 = vrot.lane.b32.xlu0 %v1467, 24
      %v1540 = vpop.permute.xlu0 %1539
      %1541 = vrot.lane.b32.xlu0 %v1468, 24
      %v1542 = vpop.permute.xlu0 %1541
      %1543 = vrot.lane.b32.xlu0 %v1469, 24
      %v1544 = vpop.permute.xlu0 %1543
      %1545 = vrot.lane.b32.xlu0 %v1470, 24
      %v1546 = vpop.permute.xlu0 %1545
      %1547 = vrot.lane.b32.xlu0 %v1471, 24
      %v1548 = vpop.permute.xlu0 %1547
      %1549 = vrot.lane.b32.xlu0 %v1472, 24
      %v1550 = vpop.permute.xlu0 %1549
      %1551 = vrot.lane.b32.xlu0 %v1473, 24
      %v1552 = vpop.permute.xlu0 %1551
      %1553 = vrot.lane.b32.xlu0 %v1474, 24
      %v1554 = vpop.permute.xlu0 %1553
      %1555 = vrot.lane.b32.xlu0 %v1475, 24
      %v1556 = vpop.permute.xlu0 %1555
      %1557 = vrot.lane.b32.xlu0 %v1476, 24
      %v1558 = vpop.permute.xlu0 %1557
      %1559 = vrot.lane.b32.xlu0 %v1477, 24
      %v1560 = vpop.permute.xlu0 %1559
      %1561 = vrot.lane.b32.xlu0 %v1478, 24
      %v1562 = vpop.permute.xlu0 %1561
      %1563 = vrot.lane.b32.xlu0 %v1479, 24
      %v1564 = vpop.permute.xlu0 %1563
      %1565 = vrot.lane.b32.xlu0 %v1480, 24
      %v1566 = vpop.permute.xlu0 %1565
      %1567 = vrot.lane.b32.xlu0 %v1481, 24
      %v1568 = vpop.permute.xlu0 %1567
      %1569 = vrot.lane.b32.xlu0 %v1482, 24
      %v1570 = vpop.permute.xlu0 %1569
      %1571 = vrot.lane.b32.xlu0 %v1483, 24
      %v1572 = vpop.permute.xlu0 %1571
      %1573 = vrot.lane.b32.xlu0 %v1484, 24
      %v1574 = vpop.permute.xlu0 %1573
      %1575 = vrot.lane.b32.xlu0 %v1485, 24
      %v1576 = vpop.permute.xlu0 %1575
      %1577 = vrot.lane.b32.xlu0 %v1486, 24
      %v1578 = vpop.permute.xlu0 %1577
      %1579 = vrot.lane.b32.xlu0 %v1487, 24
      %v1580 = vpop.permute.xlu0 %1579
      %1581 = vrot.lane.b32.xlu0 %v1488, 24
      %v1582 = vpop.permute.xlu0 %1581
      %1583 = vrot.lane.b32.xlu0 %v1489, 24
      %v1584 = vpop.permute.xlu0 %1583
      %1585 = vrot.lane.b32.xlu0 %v1490, 24
      %v1586 = vpop.permute.xlu0 %1585
      %vm1619 = vcmask 228544
      %1620 = vst.msk [vmem:[#allocation3] sm:$0xff] %vm1619, %v1524
      %1621 = vst.msk [vmem:[#allocation3 + $0x8] sm:$0xff] %vm1619, %v1526
      %1622 = vst.msk [vmem:[#allocation3 + $0x10] sm:$0xff] %vm1619, %v1528
      %1623 = vst.msk [vmem:[#allocation3 + $0x18] sm:$0xff] %vm1619, %v1530
      %1624 = vst.msk [vmem:[#allocation3 + $0x20] sm:$0xff] %vm1619, %v1532
      %1625 = vst.msk [vmem:[#allocation3 + $0x28] sm:$0xff] %vm1619, %v1534
      %1626 = vst.msk [vmem:[#allocation3 + $0x30] sm:$0xff] %vm1619, %v1536
      %1627 = vst.msk [vmem:[#allocation3 + $0x38] sm:$0xff] %vm1619, %v1538
      %1628 = vst.msk [vmem:[#allocation3 + $0x40] sm:$0xff] %vm1619, %v1540
      %1629 = vst.msk [vmem:[#allocation3 + $0x48] sm:$0xff] %vm1619, %v1542
      %1630 = vst.msk [vmem:[#allocation3 + $0x50] sm:$0xff] %vm1619, %v1544
      %1631 = vst.msk [vmem:[#allocation3 + $0x58] sm:$0xff] %vm1619, %v1546
      %1632 = vst.msk [vmem:[#allocation3 + $0x60] sm:$0xff] %vm1619, %v1548
      %1633 = vst.msk [vmem:[#allocation3 + $0x68] sm:$0xff] %vm1619, %v1550
      %1634 = vst.msk [vmem:[#allocation3 + $0x70] sm:$0xff] %vm1619, %v1552
      %1635 = vst.msk [vmem:[#allocation3 + $0x78] sm:$0xff] %vm1619, %v1554
      %1636 = vst.msk [vmem:[#allocation3 + $0x80] sm:$0xff] %vm1619, %v1556
      %1637 = vst.msk [vmem:[#allocation3 + $0x88] sm:$0xff] %vm1619, %v1558
      %1638 = vst.msk [vmem:[#allocation3 + $0x90] sm:$0xff] %vm1619, %v1560
      %1639 = vst.msk [vmem:[#allocation3 + $0x98] sm:$0xff] %vm1619, %v1562
      %1640 = vst.msk [vmem:[#allocation3 + $0xa0] sm:$0xff] %vm1619, %v1564
      %1641 = vst.msk [vmem:[#allocation3 + $0xa8] sm:$0xff] %vm1619, %v1566
      %1642 = vst.msk [vmem:[#allocation3 + $0xb0] sm:$0xff] %vm1619, %v1568
      %1643 = vst.msk [vmem:[#allocation3 + $0xb8] sm:$0xff] %vm1619, %v1570
      %1644 = vst.msk [vmem:[#allocation3 + $0xc0] sm:$0xff] %vm1619, %v1572
      %1645 = vst.msk [vmem:[#allocation3 + $0xc8] sm:$0xff] %vm1619, %v1574
      %1646 = vst.msk [vmem:[#allocation3 + $0xd0] sm:$0xff] %vm1619, %v1576
      %1647 = vst.msk [vmem:[#allocation3 + $0xd8] sm:$0xff] %vm1619, %v1578
      %1648 = vst.msk [vmem:[#allocation3 + $0xe0] sm:$0xff] %vm1619, %v1580
      %1649 = vst.msk [vmem:[#allocation3 + $0xe8] sm:$0xff] %vm1619, %v1582
      %1650 = vst.msk [vmem:[#allocation3 + $0xf0] sm:$0xff] %vm1619, %v1584
      %1651 = vst.msk [vmem:[#allocation3 + $0xf8] sm:$0xff] %vm1619, %v1586
      %v1652 = vld [vmem:[%s1458 + $0x6] sm:$0xff]
      %v1653 = vld [vmem:[%s1458 + $0xe] sm:$0xff]
      %v1654 = vld [vmem:[%s1458 + $0x26] sm:$0xff]
      %v1655 = vld [vmem:[%s1458 + $0x2e] sm:$0xff]
      %v1656 = vld [vmem:[%s1458 + $0x46] sm:$0xff]
      %v1657 = vld [vmem:[%s1458 + $0x4e] sm:$0xff]
      %v1658 = vld [vmem:[%s1458 + $0x66] sm:$0xff]
      %v1659 = vld [vmem:[%s1458 + $0x6e] sm:$0xff]
      %v1660 = vld [vmem:[%s1458 + $0x86] sm:$0xff]
      %v1661 = vld [vmem:[%s1458 + $0x8e] sm:$0xff]
      %v1662 = vld [vmem:[%s1458 + $0xa6] sm:$0xff]
      %v1663 = vld [vmem:[%s1458 + $0xae] sm:$0xff]
      %v1664 = vld [vmem:[%s1458 + $0xc6] sm:$0xff]
      %v1665 = vld [vmem:[%s1458 + $0xce] sm:$0xff]
      %v1666 = vld [vmem:[%s1458 + $0xe6] sm:$0xff]
      %v1667 = vld [vmem:[%s1458 + $0xee] sm:$0xff]
      %v1668 = vld [vmem:[%s1458 + $0x106] sm:$0xff]
      %v1669 = vld [vmem:[%s1458 + $0x10e] sm:$0xff]
      %v1670 = vld [vmem:[%s1458 + $0x126] sm:$0xff]
      %v1671 = vld [vmem:[%s1458 + $0x12e] sm:$0xff]
      %v1672 = vld [vmem:[%s1458 + $0x146] sm:$0xff]
      %v1673 = vld [vmem:[%s1458 + $0x14e] sm:$0xff]
      %v1674 = vld [vmem:[%s1458 + $0x166] sm:$0xff]
      %v1675 = vld [vmem:[%s1458 + $0x16e] sm:$0xff]
      %v1676 = vld [vmem:[%s1458 + $0x186] sm:$0xff]
      %v1677 = vld [vmem:[%s1458 + $0x18e] sm:$0xff]
      %v1678 = vld [vmem:[%s1458 + $0x1a6] sm:$0xff]
      %v1679 = vld [vmem:[%s1458 + $0x1ae] sm:$0xff]
      %v1680 = vld [vmem:[%s1458 + $0x1c6] sm:$0xff]
      %v1681 = vld [vmem:[%s1458 + $0x1ce] sm:$0xff]
      %v1682 = vld [vmem:[%s1458 + $0x1e6] sm:$0xff]
      %v1683 = vld [vmem:[%s1458 + $0x1ee] sm:$0xff]
      %1716 = vrot.lane.b32.xlu0 %v1652, 28
      %v1717 = vpop.permute.xlu0 %1716
      %1718 = vrot.lane.b32.xlu0 %v1653, 28
      %v1719 = vpop.permute.xlu0 %1718
      %1720 = vrot.lane.b32.xlu0 %v1654, 28
      %v1721 = vpop.permute.xlu0 %1720
      %1722 = vrot.lane.b32.xlu0 %v1655, 28
      %v1723 = vpop.permute.xlu0 %1722
      %1724 = vrot.lane.b32.xlu0 %v1656, 28
      %v1725 = vpop.permute.xlu0 %1724
      %1726 = vrot.lane.b32.xlu0 %v1657, 28
      %v1727 = vpop.permute.xlu0 %1726
      %1728 = vrot.lane.b32.xlu0 %v1658, 28
      %v1729 = vpop.permute.xlu0 %1728
      %1730 = vrot.lane.b32.xlu0 %v1659, 28
      %v1731 = vpop.permute.xlu0 %1730
      %1732 = vrot.lane.b32.xlu0 %v1660, 28
      %v1733 = vpop.permute.xlu0 %1732
      %1734 = vrot.lane.b32.xlu0 %v1661, 28
      %v1735 = vpop.permute.xlu0 %1734
      %1736 = vrot.lane.b32.xlu0 %v1662, 28
      %v1737 = vpop.permute.xlu0 %1736
      %1738 = vrot.lane.b32.xlu0 %v1663, 28
      %v1739 = vpop.permute.xlu0 %1738
      %1740 = vrot.lane.b32.xlu0 %v1664, 28
      %v1741 = vpop.permute.xlu0 %1740
      %1742 = vrot.lane.b32.xlu0 %v1665, 28
      %v1743 = vpop.permute.xlu0 %1742
      %1744 = vrot.lane.b32.xlu0 %v1666, 28
      %v1745 = vpop.permute.xlu0 %1744
      %1746 = vrot.lane.b32.xlu0 %v1667, 28
      %v1747 = vpop.permute.xlu0 %1746
      %1748 = vrot.lane.b32.xlu0 %v1668, 28
      %v1749 = vpop.permute.xlu0 %1748
      %1750 = vrot.lane.b32.xlu0 %v1669, 28
      %v1751 = vpop.permute.xlu0 %1750
      %1752 = vrot.lane.b32.xlu0 %v1670, 28
      %v1753 = vpop.permute.xlu0 %1752
      %1754 = vrot.lane.b32.xlu0 %v1671, 28
      %v1755 = vpop.permute.xlu0 %1754
      %1756 = vrot.lane.b32.xlu0 %v1672, 28
      %v1757 = vpop.permute.xlu0 %1756
      %1758 = vrot.lane.b32.xlu0 %v1673, 28
      %v1759 = vpop.permute.xlu0 %1758
      %1760 = vrot.lane.b32.xlu0 %v1674, 28
      %v1761 = vpop.permute.xlu0 %1760
      %1762 = vrot.lane.b32.xlu0 %v1675, 28
      %v1763 = vpop.permute.xlu0 %1762
      %1764 = vrot.lane.b32.xlu0 %v1676, 28
      %v1765 = vpop.permute.xlu0 %1764
      %1766 = vrot.lane.b32.xlu0 %v1677, 28
      %v1767 = vpop.permute.xlu0 %1766
      %1768 = vrot.lane.b32.xlu0 %v1678, 28
      %v1769 = vpop.permute.xlu0 %1768
      %1770 = vrot.lane.b32.xlu0 %v1679, 28
      %v1771 = vpop.permute.xlu0 %1770
      %1772 = vrot.lane.b32.xlu0 %v1680, 28
      %v1773 = vpop.permute.xlu0 %1772
      %1774 = vrot.lane.b32.xlu0 %v1681, 28
      %v1775 = vpop.permute.xlu0 %1774
      %1776 = vrot.lane.b32.xlu0 %v1682, 28
      %v1777 = vpop.permute.xlu0 %1776
      %1778 = vrot.lane.b32.xlu0 %v1683, 28
      %v1779 = vpop.permute.xlu0 %1778
      %vm1812 = vcmask 261344
      %1813 = vst.msk [vmem:[#allocation3] sm:$0xff] %vm1812, %v1717
      %1814 = vst.msk [vmem:[#allocation3 + $0x8] sm:$0xff] %vm1812, %v1719
      %1815 = vst.msk [vmem:[#allocation3 + $0x10] sm:$0xff] %vm1812, %v1721
      %1816 = vst.msk [vmem:[#allocation3 + $0x18] sm:$0xff] %vm1812, %v1723
      %1817 = vst.msk [vmem:[#allocation3 + $0x20] sm:$0xff] %vm1812, %v1725
      %1818 = vst.msk [vmem:[#allocation3 + $0x28] sm:$0xff] %vm1812, %v1727
      %1819 = vst.msk [vmem:[#allocation3 + $0x30] sm:$0xff] %vm1812, %v1729
      %1820 = vst.msk [vmem:[#allocation3 + $0x38] sm:$0xff] %vm1812, %v1731
      %1821 = vst.msk [vmem:[#allocation3 + $0x40] sm:$0xff] %vm1812, %v1733
      %1822 = vst.msk [vmem:[#allocation3 + $0x48] sm:$0xff] %vm1812, %v1735
      %1823 = vst.msk [vmem:[#allocation3 + $0x50] sm:$0xff] %vm1812, %v1737
      %1824 = vst.msk [vmem:[#allocation3 + $0x58] sm:$0xff] %vm1812, %v1739
      %1825 = vst.msk [vmem:[#allocation3 + $0x60] sm:$0xff] %vm1812, %v1741
      %1826 = vst.msk [vmem:[#allocation3 + $0x68] sm:$0xff] %vm1812, %v1743
      %1827 = vst.msk [vmem:[#allocation3 + $0x70] sm:$0xff] %vm1812, %v1745
      %1828 = vst.msk [vmem:[#allocation3 + $0x78] sm:$0xff] %vm1812, %v1747
      %1829 = vst.msk [vmem:[#allocation3 + $0x80] sm:$0xff] %vm1812, %v1749
      %1830 = vst.msk [vmem:[#allocation3 + $0x88] sm:$0xff] %vm1812, %v1751
      %1831 = vst.msk [vmem:[#allocation3 + $0x90] sm:$0xff] %vm1812, %v1753
      %1832 = vst.msk [vmem:[#allocation3 + $0x98] sm:$0xff] %vm1812, %v1755
      %1833 = vst.msk [vmem:[#allocation3 + $0xa0] sm:$0xff] %vm1812, %v1757
      %1834 = vst.msk [vmem:[#allocation3 + $0xa8] sm:$0xff] %vm1812, %v1759
      %1835 = vst.msk [vmem:[#allocation3 + $0xb0] sm:$0xff] %vm1812, %v1761
      %1836 = vst.msk [vmem:[#allocation3 + $0xb8] sm:$0xff] %vm1812, %v1763
      %1837 = vst.msk [vmem:[#allocation3 + $0xc0] sm:$0xff] %vm1812, %v1765
      %1838 = vst.msk [vmem:[#allocation3 + $0xc8] sm:$0xff] %vm1812, %v1767
      %1839 = vst.msk [vmem:[#allocation3 + $0xd0] sm:$0xff] %vm1812, %v1769
      %1840 = vst.msk [vmem:[#allocation3 + $0xd8] sm:$0xff] %vm1812, %v1771
      %1841 = vst.msk [vmem:[#allocation3 + $0xe0] sm:$0xff] %vm1812, %v1773
      %1842 = vst.msk [vmem:[#allocation3 + $0xe8] sm:$0xff] %vm1812, %v1775
      %1843 = vst.msk [vmem:[#allocation3 + $0xf0] sm:$0xff] %vm1812, %v1777
      %1844 = vst.msk [vmem:[#allocation3 + $0xf8] sm:$0xff] %vm1812, %v1779
      %v1845 = vld [vmem:[%s1458 + $0x7] sm:$0xff]
      %v1846 = vld [vmem:[%s1458 + $0xf] sm:$0xff]
      %v1847 = vld [vmem:[%s1458 + $0x27] sm:$0xff]
      %v1848 = vld [vmem:[%s1458 + $0x2f] sm:$0xff]
      %v1849 = vld [vmem:[%s1458 + $0x47] sm:$0xff]
      %v1850 = vld [vmem:[%s1458 + $0x4f] sm:$0xff]
      %v1851 = vld [vmem:[%s1458 + $0x67] sm:$0xff]
      %v1852 = vld [vmem:[%s1458 + $0x6f] sm:$0xff]
      %v1853 = vld [vmem:[%s1458 + $0x87] sm:$0xff]
      %v1854 = vld [vmem:[%s1458 + $0x8f] sm:$0xff]
      %v1855 = vld [vmem:[%s1458 + $0xa7] sm:$0xff]
      %v1856 = vld [vmem:[%s1458 + $0xaf] sm:$0xff]
      %v1857 = vld [vmem:[%s1458 + $0xc7] sm:$0xff]
      %v1858 = vld [vmem:[%s1458 + $0xcf] sm:$0xff]
      %v1859 = vld [vmem:[%s1458 + $0xe7] sm:$0xff]
      %v1860 = vld [vmem:[%s1458 + $0xef] sm:$0xff]
      %v1861 = vld [vmem:[%s1458 + $0x107] sm:$0xff]
      %v1862 = vld [vmem:[%s1458 + $0x10f] sm:$0xff]
      %v1863 = vld [vmem:[%s1458 + $0x127] sm:$0xff]
      %v1864 = vld [vmem:[%s1458 + $0x12f] sm:$0xff]
      %v1865 = vld [vmem:[%s1458 + $0x147] sm:$0xff]
      %v1866 = vld [vmem:[%s1458 + $0x14f] sm:$0xff]
      %v1867 = vld [vmem:[%s1458 + $0x167] sm:$0xff]
      %v1868 = vld [vmem:[%s1458 + $0x16f] sm:$0xff]
      %v1869 = vld [vmem:[%s1458 + $0x187] sm:$0xff]
      %v1870 = vld [vmem:[%s1458 + $0x18f] sm:$0xff]
      %v1871 = vld [vmem:[%s1458 + $0x1a7] sm:$0xff]
      %v1872 = vld [vmem:[%s1458 + $0x1af] sm:$0xff]
      %v1873 = vld [vmem:[%s1458 + $0x1c7] sm:$0xff]
      %v1874 = vld [vmem:[%s1458 + $0x1cf] sm:$0xff]
      %v1875 = vld [vmem:[%s1458 + $0x1e7] sm:$0xff]
      %v1876 = vld [vmem:[%s1458 + $0x1ef] sm:$0xff]
      %1909 = vrot.lane.b32.xlu0 %v1845, 32
      %v1910 = vpop.permute.xlu0 %1909
      %1911 = vrot.lane.b32.xlu0 %v1846, 32
      %v1912 = vpop.permute.xlu0 %1911
      %1913 = vrot.lane.b32.xlu0 %v1847, 32
      %v1914 = vpop.permute.xlu0 %1913
      %1915 = vrot.lane.b32.xlu0 %v1848, 32
      %v1916 = vpop.permute.xlu0 %1915
      %1917 = vrot.lane.b32.xlu0 %v1849, 32
      %v1918 = vpop.permute.xlu0 %1917
      %1919 = vrot.lane.b32.xlu0 %v1850, 32
      %v1920 = vpop.permute.xlu0 %1919
      %1921 = vrot.lane.b32.xlu0 %v1851, 32
      %v1922 = vpop.permute.xlu0 %1921
      %1923 = vrot.lane.b32.xlu0 %v1852, 32
      %v1924 = vpop.permute.xlu0 %1923
      %1925 = vrot.lane.b32.xlu0 %v1853, 32
      %v1926 = vpop.permute.xlu0 %1925
      %1927 = vrot.lane.b32.xlu0 %v1854, 32
      %v1928 = vpop.permute.xlu0 %1927
      %1929 = vrot.lane.b32.xlu0 %v1855, 32
      %v1930 = vpop.permute.xlu0 %1929
      %1931 = vrot.lane.b32.xlu0 %v1856, 32
      %v1932 = vpop.permute.xlu0 %1931
      %1933 = vrot.lane.b32.xlu0 %v1857, 32
      %v1934 = vpop.permute.xlu0 %1933
      %1935 = vrot.lane.b32.xlu0 %v1858, 32
      %v1936 = vpop.permute.xlu0 %1935
      %1937 = vrot.lane.b32.xlu0 %v1859, 32
      %v1938 = vpop.permute.xlu0 %1937
      %1939 = vrot.lane.b32.xlu0 %v1860, 32
      %v1940 = vpop.permute.xlu0 %1939
      %1941 = vrot.lane.b32.xlu0 %v1861, 32
      %v1942 = vpop.permute.xlu0 %1941
      %1943 = vrot.lane.b32.xlu0 %v1862, 32
      %v1944 = vpop.permute.xlu0 %1943
      %1945 = vrot.lane.b32.xlu0 %v1863, 32
      %v1946 = vpop.permute.xlu0 %1945
      %1947 = vrot.lane.b32.xlu0 %v1864, 32
      %v1948 = vpop.permute.xlu0 %1947
      %1949 = vrot.lane.b32.xlu0 %v1865, 32
      %v1950 = vpop.permute.xlu0 %1949
      %1951 = vrot.lane.b32.xlu0 %v1866, 32
      %v1952 = vpop.permute.xlu0 %1951
      %1953 = vrot.lane.b32.xlu0 %v1867, 32
      %v1954 = vpop.permute.xlu0 %1953
      %1955 = vrot.lane.b32.xlu0 %v1868, 32
      %v1956 = vpop.permute.xlu0 %1955
      %1957 = vrot.lane.b32.xlu0 %v1869, 32
      %v1958 = vpop.permute.xlu0 %1957
      %1959 = vrot.lane.b32.xlu0 %v1870, 32
      %v1960 = vpop.permute.xlu0 %1959
      %1961 = vrot.lane.b32.xlu0 %v1871, 32
      %v1962 = vpop.permute.xlu0 %1961
      %1963 = vrot.lane.b32.xlu0 %v1872, 32
      %v1964 = vpop.permute.xlu0 %1963
      %1965 = vrot.lane.b32.xlu0 %v1873, 32
      %v1966 = vpop.permute.xlu0 %1965
      %1967 = vrot.lane.b32.xlu0 %v1874, 32
      %v1968 = vpop.permute.xlu0 %1967
      %1969 = vrot.lane.b32.xlu0 %v1875, 32
      %v1970 = vpop.permute.xlu0 %1969
      %1971 = vrot.lane.b32.xlu0 %v1876, 32
      %v1972 = vpop.permute.xlu0 %1971
      %vm2005 = vcmask 294144
      %2006 = vst.msk [vmem:[#allocation3] sm:$0xff] %vm2005, %v1910
      %2007 = vst.msk [vmem:[#allocation3 + $0x8] sm:$0xff] %vm2005, %v1912
      %2008 = vst.msk [vmem:[#allocation3 + $0x10] sm:$0xff] %vm2005, %v1914
      %2009 = vst.msk [vmem:[#allocation3 + $0x18] sm:$0xff] %vm2005, %v1916
      %2010 = vst.msk [vmem:[#allocation3 + $0x20] sm:$0xff] %vm2005, %v1918
      %2011 = vst.msk [vmem:[#allocation3 + $0x28] sm:$0xff] %vm2005, %v1920
      %2012 = vst.msk [vmem:[#allocation3 + $0x30] sm:$0xff] %vm2005, %v1922
      %2013 = vst.msk [vmem:[#allocation3 + $0x38] sm:$0xff] %vm2005, %v1924
      %2014 = vst.msk [vmem:[#allocation3 + $0x40] sm:$0xff] %vm2005, %v1926
      %2015 = vst.msk [vmem:[#allocation3 + $0x48] sm:$0xff] %vm2005, %v1928
      %2016 = vst.msk [vmem:[#allocation3 + $0x50] sm:$0xff] %vm2005, %v1930
      %2017 = vst.msk [vmem:[#allocation3 + $0x58] sm:$0xff] %vm2005, %v1932
      %2018 = vst.msk [vmem:[#allocation3 + $0x60] sm:$0xff] %vm2005, %v1934
      %2019 = vst.msk [vmem:[#allocation3 + $0x68] sm:$0xff] %vm2005, %v1936
      %2020 = vst.msk [vmem:[#allocation3 + $0x70] sm:$0xff] %vm2005, %v1938
      %2021 = vst.msk [vmem:[#allocation3 + $0x78] sm:$0xff] %vm2005, %v1940
      %2022 = vst.msk [vmem:[#allocation3 + $0x80] sm:$0xff] %vm2005, %v1942
      %2023 = vst.msk [vmem:[#allocation3 + $0x88] sm:$0xff] %vm2005, %v1944
      %2024 = vst.msk [vmem:[#allocation3 + $0x90] sm:$0xff] %vm2005, %v1946
      %2025 = vst.msk [vmem:[#allocation3 + $0x98] sm:$0xff] %vm2005, %v1948
      %2026 = vst.msk [vmem:[#allocation3 + $0xa0] sm:$0xff] %vm2005, %v1950
      %2027 = vst.msk [vmem:[#allocation3 + $0xa8] sm:$0xff] %vm2005, %v1952
      %2028 = vst.msk [vmem:[#allocation3 + $0xb0] sm:$0xff] %vm2005, %v1954
      %2029 = vst.msk [vmem:[#allocation3 + $0xb8] sm:$0xff] %vm2005, %v1956
      %2030 = vst.msk [vmem:[#allocation3 + $0xc0] sm:$0xff] %vm2005, %v1958
      %2031 = vst.msk [vmem:[#allocation3 + $0xc8] sm:$0xff] %vm2005, %v1960
      %2032 = vst.msk [vmem:[#allocation3 + $0xd0] sm:$0xff] %vm2005, %v1962
      %2033 = vst.msk [vmem:[#allocation3 + $0xd8] sm:$0xff] %vm2005, %v1964
      %2034 = vst.msk [vmem:[#allocation3 + $0xe0] sm:$0xff] %vm2005, %v1966
      %2035 = vst.msk [vmem:[#allocation3 + $0xe8] sm:$0xff] %vm2005, %v1968
      %2036 = vst.msk [vmem:[#allocation3 + $0xf0] sm:$0xff] %vm2005, %v1970
      %2037 = vst.msk [vmem:[#allocation3 + $0xf8] sm:$0xff] %vm2005, %v1972
      %v2038 = vld [vmem:[#allocation3] sm:$0xff]
      %v2039 = vld [vmem:[#allocation3 + $0x8] sm:$0xff]
      %v2040 = vld [vmem:[#allocation3 + $0x10] sm:$0xff]
      %v2041 = vld [vmem:[#allocation3 + $0x18] sm:$0xff]
      %v2042 = vld [vmem:[#allocation3 + $0x20] sm:$0xff]
      %v2043 = vld [vmem:[#allocation3 + $0x28] sm:$0xff]
      %v2044 = vld [vmem:[#allocation3 + $0x30] sm:$0xff]
      %v2045 = vld [vmem:[#allocation3 + $0x38] sm:$0xff]
      %v2046 = vld [vmem:[#allocation3 + $0x40] sm:$0xff]
      %v2047 = vld [vmem:[#allocation3 + $0x48] sm:$0xff]
      %v2048 = vld [vmem:[#allocation3 + $0x50] sm:$0xff]
      %v2049 = vld [vmem:[#allocation3 + $0x58] sm:$0xff]
      %v2050 = vld [vmem:[#allocation3 + $0x60] sm:$0xff]
      %v2051 = vld [vmem:[#allocation3 + $0x68] sm:$0xff]
      %v2052 = vld [vmem:[#allocation3 + $0x70] sm:$0xff]
      %v2053 = vld [vmem:[#allocation3 + $0x78] sm:$0xff]
      %v2054 = vld [vmem:[#allocation3 + $0x80] sm:$0xff]
      %v2055 = vld [vmem:[#allocation3 + $0x88] sm:$0xff]
      %v2056 = vld [vmem:[#allocation3 + $0x90] sm:$0xff]
      %v2057 = vld [vmem:[#allocation3 + $0x98] sm:$0xff]
      %v2058 = vld [vmem:[#allocation3 + $0xa0] sm:$0xff]
      %v2059 = vld [vmem:[#allocation3 + $0xa8] sm:$0xff]
      %v2060 = vld [vmem:[#allocation3 + $0xb0] sm:$0xff]
      %v2061 = vld [vmem:[#allocation3 + $0xb8] sm:$0xff]
      %v2062 = vld [vmem:[#allocation3 + $0xc0] sm:$0xff]
      %v2063 = vld [vmem:[#allocation3 + $0xc8] sm:$0xff]
      %v2064 = vld [vmem:[#allocation3 + $0xd0] sm:$0xff]
      %v2065 = vld [vmem:[#allocation3 + $0xd8] sm:$0xff]
      %v2066 = vld [vmem:[#allocation3 + $0xe0] sm:$0xff]
      %v2067 = vld [vmem:[#allocation3 + $0xe8] sm:$0xff]
      %v2068 = vld [vmem:[#allocation3 + $0xf0] sm:$0xff]
      %v2069 = vld [vmem:[#allocation3 + $0xf8] sm:$0xff]
      %v2070 = vld [vmem:[%s1] sm:$0xff]
      %v2071 = vld [vmem:[%s1 + $0x8] sm:$0xff]
      %v2072 = vld [vmem:[%s1 + $0x10] sm:$0xff]
      %v2073 = vld [vmem:[%s1 + $0x18] sm:$0xff]
      %v2074 = vld [vmem:[%s1 + $0x20] sm:$0xf]
      %v2075 = vld [vmem:[%s2] sm:$0x1]
      %v2077 = vlaneseq
      %v2078 = vshrl.u32 %v2077, 7
      %v2079 = vsub.s32 0, %v2078
      %v2080 = vrot.slane %v2075, %v2079
      %vm2082 = vcmask 293888
      %v2084 = vsel %vm2082, %v2038, 0
      %v2087 = vsel %vm2082, %v2039, 0
      %v2090 = vsel %vm2082, %v2040, 0
      %v2093 = vsel %vm2082, %v2041, 0
      %v2096 = vsel %vm2082, %v2042, 0
      %v2099 = vsel %vm2082, %v2043, 0
      %v2102 = vsel %vm2082, %v2044, 0
      %v2105 = vsel %vm2082, %v2045, 0
      %v2108 = vsel %vm2082, %v2046, 0
      %v2111 = vsel %vm2082, %v2047, 0
      %v2114 = vsel %vm2082, %v2048, 0
      %v2117 = vsel %vm2082, %v2049, 0
      %v2120 = vsel %vm2082, %v2050, 0
      %v2123 = vsel %vm2082, %v2051, 0
      %v2126 = vsel %vm2082, %v2052, 0
      %v2129 = vsel %vm2082, %v2053, 0
      %v2132 = vsel %vm2082, %v2054, 0
      %v2135 = vsel %vm2082, %v2055, 0
      %v2138 = vsel %vm2082, %v2056, 0
      %v2141 = vsel %vm2082, %v2057, 0
      %v2144 = vsel %vm2082, %v2058, 0
      %v2147 = vsel %vm2082, %v2059, 0
      %v2150 = vsel %vm2082, %v2060, 0
      %v2153 = vsel %vm2082, %v2061, 0
      %v2156 = vsel %vm2082, %v2062, 0
      %v2159 = vsel %vm2082, %v2063, 0
      %v2162 = vsel %vm2082, %v2064, 0
      %v2165 = vsel %vm2082, %v2065, 0
      %v2168 = vsel %vm2082, %v2066, 0
      %v2171 = vsel %vm2082, %v2067, 0
      %v2174 = vsel %vm2082, %v2068, 0
      %v2177 = vsel %vm2082, %v2069, 0
      %vm2179 = vcmask 1043456
      %v2181 = vsel %vm2179, %v2074, 0
      %2183 = vmatprep.subr.mxu0 0.0
      %2184 = vmatpush1.msra.mxu0 0.0
      %2185 = vmatprep.subr.mxu0 0.0
      %2186 = vmatpush1.msra.mxu0 0.0
      %2187 = vmatprep.subr.mxu0 0.0
      %2188 = vmatpush1.msra.mxu0 0.0
      %2189 = vmatprep.subr.mxu0 0.0
      %2190 = vmatpush1.msra.mxu0 0.0
      %2191 = vmatprep.subr.mxu0 0.0
      %2192 = vmatpush1.msra.mxu0 0.0
      %2193 = vmatprep.subr.mxu0 0.0
      %2194 = vmatpush1.msra.mxu0 0.0
      %2195 = vmatprep.subr.mxu0 0.0
      %2196 = vmatpush1.msra.mxu0 0.0
      %2197 = vmatprep.subr.mxu0 0.0
      %2198 = vmatpush1.msra.mxu0 0.0
      %2199 = vmatprep.subr.mxu0 0.0
      %2200 = vmatpush1.msra.mxu0 0.0
      %2201 = vmatprep.subr.mxu0 0.0
      %2202 = vmatpush1.msra.mxu0 0.0
      %2203 = vmatprep.subr.mxu0 0.0
      %2204 = vmatpush1.msra.mxu0 0.0
      %2205 = vmatprep.subr.mxu0 0.0
      %2206 = vmatpush1.msra.mxu0 %v2181
      %2207 = vmatprep.subr.mxu0 0.0
      %2208 = vmatpush1.msra.mxu0 %v2073
      %2209 = vmatprep.subr.mxu0 0.0
      %2210 = vmatpush1.msra.mxu0 %v2072
      %2211 = vmatprep.subr.mxu0 0.0
      %2212 = vmatpush1.msra.mxu0 %v2071
      %2213 = vmatprep.subr.mxu0 0.0
      %2214 = vmatpush1.msra.mxu0 %v2070
      %2215 = vmatprep.subr.mxu0 0.0
      %2216 = vmatpush2.msra.mxu0 0.0
      %2217 = vmatprep.subr.mxu0 0.0
      %2218 = vmatpush2.msra.mxu0 0.0
      %2219 = vmatprep.subr.mxu0 0.0
      %2220 = vmatpush2.msra.mxu0 0.0
      %2221 = vmatprep.subr.mxu0 0.0
      %2222 = vmatpush2.msra.mxu0 0.0
      %2223 = vmatprep.subr.mxu0 0.0
      %2224 = vmatpush2.msra.mxu0 0.0
      %2225 = vmatprep.subr.mxu0 0.0
      %2226 = vmatpush2.msra.mxu0 0.0
      %2227 = vmatprep.subr.mxu0 0.0
      %2228 = vmatpush2.msra.mxu0 0.0
      %2229 = vmatprep.subr.mxu0 0.0
      %2230 = vmatpush2.msra.mxu0 0.0
      %2231 = vmatprep.subr.mxu0 0.0
      %2232 = vmatpush2.msra.mxu0 0.0
      %2233 = vmatprep.subr.mxu0 0.0
      %2234 = vmatpush2.msra.mxu0 0.0
      %2235 = vmatprep.subr.mxu0 0.0
      %2236 = vmatpush2.msra.mxu0 0.0
      %2237 = vmatprep.subr.mxu0 0.0
      %2238 = vmatpush2.msra.mxu0 0.0
      %2239 = vmatprep.subr.mxu0 0.0
      %2240 = vmatpush2.msra.mxu0 0.0
      %2241 = vmatprep.subr.mxu0 0.0
      %2242 = vmatpush2.msra.mxu0 0.0
      %2243 = vmatprep.subr.mxu0 0.0
      %2244 = vmatpush2.msra.mxu0 0.0
      %2245 = vmatprep.subr.mxu0 0.0
      %2246 = vmatpush2.msra.mxu0 0.0
      %2247 = vmatprep.mubr.f32.mxu0 0.0
      %2248 = vmatmul.mubr.f32.gmra.mxu0 %v2084
      %v2249 = vpop.f32.mrf.mxu0
      %v2250 = vadd.f32 %v2080, %v2249
      %v2251 = vpop.f32.mrf.mxu0
      %2252 = vmatprep.mubr.f32.mxu0 0.0
      %2253 = vmatmul.mubr.f32.gmra.mxu0 %v2087
      %v2254 = vpop.f32.mrf.mxu0
      %v2255 = vadd.f32 %v2080, %v2254
      %v2256 = vpop.f32.mrf.mxu0
      %2257 = vmatprep.mubr.f32.mxu0 0.0
      %2258 = vmatmul.mubr.f32.gmra.mxu0 %v2090
      %v2259 = vpop.f32.mrf.mxu0
      %v2260 = vadd.f32 %v2080, %v2259
      %v2261 = vpop.f32.mrf.mxu0
      %2262 = vmatprep.mubr.f32.mxu0 0.0
      %2263 = vmatmul.mubr.f32.gmra.mxu0 %v2093
      %v2264 = vpop.f32.mrf.mxu0
      %v2265 = vadd.f32 %v2080, %v2264
      %v2266 = vpop.f32.mrf.mxu0
      %2267 = vmatprep.mubr.f32.mxu0 0.0
      %2268 = vmatmul.mubr.f32.gmra.mxu0 %v2096
      %v2269 = vpop.f32.mrf.mxu0
      %v2270 = vadd.f32 %v2080, %v2269
      %v2271 = vpop.f32.mrf.mxu0
      %2272 = vmatprep.mubr.f32.mxu0 0.0
      %2273 = vmatmul.mubr.f32.gmra.mxu0 %v2099
      %v2274 = vpop.f32.mrf.mxu0
      %v2275 = vadd.f32 %v2080, %v2274
      %v2276 = vpop.f32.mrf.mxu0
      %2277 = vmatprep.mubr.f32.mxu0 0.0
      %2278 = vmatmul.mubr.f32.gmra.mxu0 %v2102
      %v2279 = vpop.f32.mrf.mxu0
      %v2280 = vadd.f32 %v2080, %v2279
      %v2281 = vpop.f32.mrf.mxu0
      %2282 = vmatprep.mubr.f32.mxu0 0.0
      %2283 = vmatmul.mubr.f32.gmra.mxu0 %v2105
      %v2284 = vpop.f32.mrf.mxu0
      %v2285 = vadd.f32 %v2080, %v2284
      %v2286 = vpop.f32.mrf.mxu0
      %2287 = vmatprep.mubr.f32.mxu0 0.0
      %2288 = vmatmul.mubr.f32.gmra.mxu0 %v2108
      %v2289 = vpop.f32.mrf.mxu0
      %v2290 = vadd.f32 %v2080, %v2289
      %v2291 = vpop.f32.mrf.mxu0
      %2292 = vmatprep.mubr.f32.mxu0 0.0
      %2293 = vmatmul.mubr.f32.gmra.mxu0 %v2111
      %v2294 = vpop.f32.mrf.mxu0
      %v2295 = vadd.f32 %v2080, %v2294
      %v2296 = vpop.f32.mrf.mxu0
      %2297 = vmatprep.mubr.f32.mxu0 0.0
      %2298 = vmatmul.mubr.f32.gmra.mxu0 %v2114
      %v2299 = vpop.f32.mrf.mxu0
      %v2300 = vadd.f32 %v2080, %v2299
      %v2301 = vpop.f32.mrf.mxu0
      %2302 = vmatprep.mubr.f32.mxu0 0.0
      %2303 = vmatmul.mubr.f32.gmra.mxu0 %v2117
      %v2304 = vpop.f32.mrf.mxu0
      %v2305 = vadd.f32 %v2080, %v2304
      %v2306 = vpop.f32.mrf.mxu0
      %2307 = vmatprep.mubr.f32.mxu0 0.0
      %2308 = vmatmul.mubr.f32.gmra.mxu0 %v2120
      %v2309 = vpop.f32.mrf.mxu0
      %v2310 = vadd.f32 %v2080, %v2309
      %v2311 = vpop.f32.mrf.mxu0
      %2312 = vmatprep.mubr.f32.mxu0 0.0
      %2313 = vmatmul.mubr.f32.gmra.mxu0 %v2123
      %v2314 = vpop.f32.mrf.mxu0
      %v2315 = vadd.f32 %v2080, %v2314
      %v2316 = vpop.f32.mrf.mxu0
      %2317 = vmatprep.mubr.f32.mxu0 0.0
      %2318 = vmatmul.mubr.f32.gmra.mxu0 %v2126
      %v2319 = vpop.f32.mrf.mxu0
      %v2320 = vadd.f32 %v2080, %v2319
      %v2321 = vpop.f32.mrf.mxu0
      %2322 = vmatprep.mubr.f32.mxu0 0.0
      %2323 = vmatmul.mubr.f32.gmra.mxu0 %v2129
      %v2324 = vpop.f32.mrf.mxu0
      %v2325 = vadd.f32 %v2080, %v2324
      %v2326 = vpop.f32.mrf.mxu0
      %2327 = vmatprep.mubr.f32.mxu0 0.0
      %2328 = vmatmul.mubr.f32.gmra.mxu0 %v2132
      %v2329 = vpop.f32.mrf.mxu0
      %v2330 = vadd.f32 %v2080, %v2329
      %v2331 = vpop.f32.mrf.mxu0
      %2332 = vmatprep.mubr.f32.mxu0 0.0
      %2333 = vmatmul.mubr.f32.gmra.mxu0 %v2135
      %v2334 = vpop.f32.mrf.mxu0
      %v2335 = vadd.f32 %v2080, %v2334
      %v2336 = vpop.f32.mrf.mxu0
      %2337 = vmatprep.mubr.f32.mxu0 0.0
      %2338 = vmatmul.mubr.f32.gmra.mxu0 %v2138
      %v2339 = vpop.f32.mrf.mxu0
      %v2340 = vadd.f32 %v2080, %v2339
      %v2341 = vpop.f32.mrf.mxu0
      %2342 = vmatprep.mubr.f32.mxu0 0.0
      %2343 = vmatmul.mubr.f32.gmra.mxu0 %v2141
      %v2344 = vpop.f32.mrf.mxu0
      %v2345 = vadd.f32 %v2080, %v2344
      %v2346 = vpop.f32.mrf.mxu0
      %2347 = vmatprep.mubr.f32.mxu0 0.0
      %2348 = vmatmul.mubr.f32.gmra.mxu0 %v2144
      %v2349 = vpop.f32.mrf.mxu0
      %v2350 = vadd.f32 %v2080, %v2349
      %v2351 = vpop.f32.mrf.mxu0
      %2352 = vmatprep.mubr.f32.mxu0 0.0
      %2353 = vmatmul.mubr.f32.gmra.mxu0 %v2147
      %v2354 = vpop.f32.mrf.mxu0
      %v2355 = vadd.f32 %v2080, %v2354
      %v2356 = vpop.f32.mrf.mxu0
      %2357 = vmatprep.mubr.f32.mxu0 0.0
      %2358 = vmatmul.mubr.f32.gmra.mxu0 %v2150
      %v2359 = vpop.f32.mrf.mxu0
      %v2360 = vadd.f32 %v2080, %v2359
      %v2361 = vpop.f32.mrf.mxu0
      %2362 = vmatprep.mubr.f32.mxu0 0.0
      %2363 = vmatmul.mubr.f32.gmra.mxu0 %v2153
      %v2364 = vpop.f32.mrf.mxu0
      %v2365 = vadd.f32 %v2080, %v2364
      %v2366 = vpop.f32.mrf.mxu0
      %2367 = vmatprep.mubr.f32.mxu0 0.0
      %2368 = vmatmul.mubr.f32.gmra.mxu0 %v2156
      %v2369 = vpop.f32.mrf.mxu0
      %v2370 = vadd.f32 %v2080, %v2369
      %v2371 = vpop.f32.mrf.mxu0
      %2372 = vmatprep.mubr.f32.mxu0 0.0
      %2373 = vmatmul.mubr.f32.gmra.mxu0 %v2159
      %v2374 = vpop.f32.mrf.mxu0
      %v2375 = vadd.f32 %v2080, %v2374
      %v2376 = vpop.f32.mrf.mxu0
      %2377 = vmatprep.mubr.f32.mxu0 0.0
      %2378 = vmatmul.mubr.f32.gmra.mxu0 %v2162
      %v2379 = vpop.f32.mrf.mxu0
      %v2380 = vadd.f32 %v2080, %v2379
      %v2381 = vpop.f32.mrf.mxu0
      %2382 = vmatprep.mubr.f32.mxu0 0.0
      %2383 = vmatmul.mubr.f32.gmra.mxu0 %v2165
      %v2384 = vpop.f32.mrf.mxu0
      %v2385 = vadd.f32 %v2080, %v2384
      %v2386 = vpop.f32.mrf.mxu0
      %2387 = vmatprep.mubr.f32.mxu0 0.0
      %2388 = vmatmul.mubr.f32.gmra.mxu0 %v2168
      %v2389 = vpop.f32.mrf.mxu0
      %v2390 = vadd.f32 %v2080, %v2389
      %v2391 = vpop.f32.mrf.mxu0
      %2392 = vmatprep.mubr.f32.mxu0 0.0
      %2393 = vmatmul.mubr.f32.gmra.mxu0 %v2171
      %v2394 = vpop.f32.mrf.mxu0
      %v2395 = vadd.f32 %v2080, %v2394
      %v2396 = vpop.f32.mrf.mxu0
      %2397 = vmatprep.mubr.f32.mxu0 0.0
      %2398 = vmatmul.mubr.f32.gmra.mxu0 %v2174
      %v2399 = vpop.f32.mrf.mxu0
      %v2400 = vadd.f32 %v2080, %v2399
      %v2401 = vpop.f32.mrf.mxu0
      %2402 = vmatprep.mubr.f32.mxu0 0.0
      %2403 = vmatmul.mubr.f32.gmra.mxu0 %v2177
      %v2404 = vpop.f32.mrf.mxu0
      %v2405 = vadd.f32 %v2080, %v2404
      %v2406 = vpop.f32.mrf.mxu0
      %2407 = vdwg.mxu0
      %v2408 = vmul.f32 %v2250, 0.5
      %v2409 = vmul.f32 %v2255, 0.5
      %v2410 = vmul.f32 %v2260, 0.5
      %v2411 = vmul.f32 %v2265, 0.5
      %v2412 = vmul.f32 %v2270, 0.5
      %v2413 = vmul.f32 %v2275, 0.5
      %v2414 = vmul.f32 %v2280, 0.5
      %v2415 = vmul.f32 %v2285, 0.5
      %v2416 = vmul.f32 %v2290, 0.5
      %v2417 = vmul.f32 %v2295, 0.5
      %v2418 = vmul.f32 %v2300, 0.5
      %v2419 = vmul.f32 %v2305, 0.5
      %v2420 = vmul.f32 %v2310, 0.5
      %v2421 = vmul.f32 %v2315, 0.5
      %v2422 = vmul.f32 %v2320, 0.5
      %v2423 = vmul.f32 %v2325, 0.5
      %v2424 = vmul.f32 %v2330, 0.5
      %v2425 = vmul.f32 %v2335, 0.5
      %v2426 = vmul.f32 %v2340, 0.5
      %v2427 = vmul.f32 %v2345, 0.5
      %v2428 = vmul.f32 %v2350, 0.5
      %v2429 = vmul.f32 %v2355, 0.5
      %v2430 = vmul.f32 %v2360, 0.5
      %v2431 = vmul.f32 %v2365, 0.5
      %v2432 = vmul.f32 %v2370, 0.5
      %v2433 = vmul.f32 %v2375, 0.5
      %v2434 = vmul.f32 %v2380, 0.5
      %v2435 = vmul.f32 %v2385, 0.5
      %v2436 = vmul.f32 %v2390, 0.5
      %v2437 = vmul.f32 %v2395, 0.5
      %v2438 = vmul.f32 %v2400, 0.5
      %v2439 = vmul.f32 %v2405, 0.5
      %v2440 = vmul.f32 %v2250, 0.044715
      %v2441 = vmul.f32 %v2255, 0.044715
      %v2442 = vmul.f32 %v2260, 0.044715
      %v2443 = vmul.f32 %v2265, 0.044715
      %v2444 = vmul.f32 %v2270, 0.044715
      %v2445 = vmul.f32 %v2275, 0.044715
      %v2446 = vmul.f32 %v2280, 0.044715
      %v2447 = vmul.f32 %v2285, 0.044715
      %v2448 = vmul.f32 %v2290, 0.044715
      %v2449 = vmul.f32 %v2295, 0.044715
      %v2450 = vmul.f32 %v2300, 0.044715
      %v2451 = vmul.f32 %v2305, 0.044715
      %v2452 = vmul.f32 %v2310, 0.044715
      %v2453 = vmul.f32 %v2315, 0.044715
      %v2454 = vmul.f32 %v2320, 0.044715
      %v2455 = vmul.f32 %v2325, 0.044715
      %v2456 = vmul.f32 %v2330, 0.044715
      %v2457 = vmul.f32 %v2335, 0.044715
      %v2458 = vmul.f32 %v2340, 0.044715
      %v2459 = vmul.f32 %v2345, 0.044715
      %v2460 = vmul.f32 %v2350, 0.044715
      %v2461 = vmul.f32 %v2355, 0.044715
      %v2462 = vmul.f32 %v2360, 0.044715
      %v2463 = vmul.f32 %v2365, 0.044715
      %v2464 = vmul.f32 %v2370, 0.044715
      %v2465 = vmul.f32 %v2375, 0.044715
      %v2466 = vmul.f32 %v2380, 0.044715
      %v2467 = vmul.f32 %v2385, 0.044715
      %v2468 = vmul.f32 %v2390, 0.044715
      %v2469 = vmul.f32 %v2395, 0.044715
      %v2470 = vmul.f32 %v2400, 0.044715
      %v2471 = vmul.f32 %v2405, 0.044715
      %v2472 = vmul.f32 %v2440, %v2250
      %v2473 = vmul.f32 %v2441, %v2255
      %v2474 = vmul.f32 %v2442, %v2260
      %v2475 = vmul.f32 %v2443, %v2265
      %v2476 = vmul.f32 %v2444, %v2270
      %v2477 = vmul.f32 %v2445, %v2275
      %v2478 = vmul.f32 %v2446, %v2280
      %v2479 = vmul.f32 %v2447, %v2285
      %v2480 = vmul.f32 %v2448, %v2290
      %v2481 = vmul.f32 %v2449, %v2295
      %v2482 = vmul.f32 %v2450, %v2300
      %v2483 = vmul.f32 %v2451, %v2305
      %v2484 = vmul.f32 %v2452, %v2310
      %v2485 = vmul.f32 %v2453, %v2315
      %v2486 = vmul.f32 %v2454, %v2320
      %v2487 = vmul.f32 %v2455, %v2325
      %v2488 = vmul.f32 %v2456, %v2330
      %v2489 = vmul.f32 %v2457, %v2335
      %v2490 = vmul.f32 %v2458, %v2340
      %v2491 = vmul.f32 %v2459, %v2345
      %v2492 = vmul.f32 %v2460, %v2350
      %v2493 = vmul.f32 %v2461, %v2355
      %v2494 = vmul.f32 %v2462, %v2360
      %v2495 = vmul.f32 %v2463, %v2365
      %v2496 = vmul.f32 %v2464, %v2370
      %v2497 = vmul.f32 %v2465, %v2375
      %v2498 = vmul.f32 %v2466, %v2380
      %v2499 = vmul.f32 %v2467, %v2385
      %v2500 = vmul.f32 %v2468, %v2390
      %v2501 = vmul.f32 %v2469, %v2395
      %v2502 = vmul.f32 %v2470, %v2400
      %v2503 = vmul.f32 %v2471, %v2405
      %v2504 = vmul.f32 %v2472, %v2250
      %v2505 = vmul.f32 %v2473, %v2255
      %v2506 = vmul.f32 %v2474, %v2260
      %v2507 = vmul.f32 %v2475, %v2265
      %v2508 = vmul.f32 %v2476, %v2270
      %v2509 = vmul.f32 %v2477, %v2275
      %v2510 = vmul.f32 %v2478, %v2280
      %v2511 = vmul.f32 %v2479, %v2285
      %v2512 = vmul.f32 %v2480, %v2290
      %v2513 = vmul.f32 %v2481, %v2295
      %v2514 = vmul.f32 %v2482, %v2300
      %v2515 = vmul.f32 %v2483, %v2305
      %v2516 = vmul.f32 %v2484, %v2310
      %v2517 = vmul.f32 %v2485, %v2315
      %v2518 = vmul.f32 %v2486, %v2320
      %v2519 = vmul.f32 %v2487, %v2325
      %v2520 = vmul.f32 %v2488, %v2330
      %v2521 = vmul.f32 %v2489, %v2335
      %v2522 = vmul.f32 %v2490, %v2340
      %v2523 = vmul.f32 %v2491, %v2345
      %v2524 = vmul.f32 %v2492, %v2350
      %v2525 = vmul.f32 %v2493, %v2355
      %v2526 = vmul.f32 %v2494, %v2360
      %v2527 = vmul.f32 %v2495, %v2365
      %v2528 = vmul.f32 %v2496, %v2370
      %v2529 = vmul.f32 %v2497, %v2375
      %v2530 = vmul.f32 %v2498, %v2380
      %v2531 = vmul.f32 %v2499, %v2385
      %v2532 = vmul.f32 %v2500, %v2390
      %v2533 = vmul.f32 %v2501, %v2395
      %v2534 = vmul.f32 %v2502, %v2400
      %v2535 = vmul.f32 %v2503, %v2405
      %v2536 = vadd.f32 %v2250, %v2504
      %v2537 = vadd.f32 %v2255, %v2505
      %v2538 = vadd.f32 %v2260, %v2506
      %v2539 = vadd.f32 %v2265, %v2507
      %v2540 = vadd.f32 %v2270, %v2508
      %v2541 = vadd.f32 %v2275, %v2509
      %v2542 = vadd.f32 %v2280, %v2510
      %v2543 = vadd.f32 %v2285, %v2511
      %v2544 = vadd.f32 %v2290, %v2512
      %v2545 = vadd.f32 %v2295, %v2513
      %v2546 = vadd.f32 %v2300, %v2514
      %v2547 = vadd.f32 %v2305, %v2515
      %v2548 = vadd.f32 %v2310, %v2516
      %v2549 = vadd.f32 %v2315, %v2517
      %v2550 = vadd.f32 %v2320, %v2518
      %v2551 = vadd.f32 %v2325, %v2519
      %v2552 = vadd.f32 %v2330, %v2520
      %v2553 = vadd.f32 %v2335, %v2521
      %v2554 = vadd.f32 %v2340, %v2522
      %v2555 = vadd.f32 %v2345, %v2523
      %v2556 = vadd.f32 %v2350, %v2524
      %v2557 = vadd.f32 %v2355, %v2525
      %v2558 = vadd.f32 %v2360, %v2526
      %v2559 = vadd.f32 %v2365, %v2527
      %v2560 = vadd.f32 %v2370, %v2528
      %v2561 = vadd.f32 %v2375, %v2529
      %v2562 = vadd.f32 %v2380, %v2530
      %v2563 = vadd.f32 %v2385, %v2531
      %v2564 = vadd.f32 %v2390, %v2532
      %v2565 = vadd.f32 %v2395, %v2533
      %v2566 = vadd.f32 %v2400, %v2534
      %v2567 = vadd.f32 %v2405, %v2535
      %v2568 = vmul.f32 %v2536, 0.7978846
      %v2569 = vmul.f32 %v2537, 0.7978846
      %v2570 = vmul.f32 %v2538, 0.7978846
      %v2571 = vmul.f32 %v2539, 0.7978846
      %v2572 = vmul.f32 %v2540, 0.7978846
      %v2573 = vmul.f32 %v2541, 0.7978846
      %v2574 = vmul.f32 %v2542, 0.7978846
      %v2575 = vmul.f32 %v2543, 0.7978846
      %v2576 = vmul.f32 %v2544, 0.7978846
      %v2577 = vmul.f32 %v2545, 0.7978846
      %v2578 = vmul.f32 %v2546, 0.7978846
      %v2579 = vmul.f32 %v2547, 0.7978846
      %v2580 = vmul.f32 %v2548, 0.7978846
      %v2581 = vmul.f32 %v2549, 0.7978846
      %v2582 = vmul.f32 %v2550, 0.7978846
      %v2583 = vmul.f32 %v2551, 0.7978846
      %v2584 = vmul.f32 %v2552, 0.7978846
      %v2585 = vmul.f32 %v2553, 0.7978846
      %v2586 = vmul.f32 %v2554, 0.7978846
      %v2587 = vmul.f32 %v2555, 0.7978846
      %v2588 = vmul.f32 %v2556, 0.7978846
      %v2589 = vmul.f32 %v2557, 0.7978846
      %v2590 = vmul.f32 %v2558, 0.7978846
      %v2591 = vmul.f32 %v2559, 0.7978846
      %v2592 = vmul.f32 %v2560, 0.7978846
      %v2593 = vmul.f32 %v2561, 0.7978846
      %v2594 = vmul.f32 %v2562, 0.7978846
      %v2595 = vmul.f32 %v2563, 0.7978846
      %v2596 = vmul.f32 %v2564, 0.7978846
      %v2597 = vmul.f32 %v2565, 0.7978846
      %v2598 = vmul.f32 %v2566, 0.7978846
      %v2599 = vmul.f32 %v2567, 0.7978846
      %v2600 = vtanh.pop %v2568
      %v2601 = vtanh.pop %v2569
      %v2602 = vtanh.pop %v2570
      %v2603 = vtanh.pop %v2571
      %v2604 = vtanh.pop %v2572
      %v2605 = vtanh.pop %v2573
      %v2606 = vtanh.pop %v2574
      %v2607 = vtanh.pop %v2575
      %v2608 = vtanh.pop %v2576
      %v2609 = vtanh.pop %v2577
      %v2610 = vtanh.pop %v2578
      %v2611 = vtanh.pop %v2579
      %v2612 = vtanh.pop %v2580
      %v2613 = vtanh.pop %v2581
      %v2614 = vtanh.pop %v2582
      %v2615 = vtanh.pop %v2583
      %v2616 = vtanh.pop %v2584
      %v2617 = vtanh.pop %v2585
      %v2618 = vtanh.pop %v2586
      %v2619 = vtanh.pop %v2587
      %v2620 = vtanh.pop %v2588
      %v2621 = vtanh.pop %v2589
      %v2622 = vtanh.pop %v2590
      %v2623 = vtanh.pop %v2591
      %v2624 = vtanh.pop %v2592
      %v2625 = vtanh.pop %v2593
      %v2626 = vtanh.pop %v2594
      %v2627 = vtanh.pop %v2595
      %v2628 = vtanh.pop %v2596
      %v2629 = vtanh.pop %v2597
      %v2630 = vtanh.pop %v2598
      %v2631 = vtanh.pop %v2599
      %v2632 = vadd.f32 %v2600, 1.0
      %v2633 = vadd.f32 %v2601, 1.0
      %v2634 = vadd.f32 %v2602, 1.0
      %v2635 = vadd.f32 %v2603, 1.0
      %v2636 = vadd.f32 %v2604, 1.0
      %v2637 = vadd.f32 %v2605, 1.0
      %v2638 = vadd.f32 %v2606, 1.0
      %v2639 = vadd.f32 %v2607, 1.0
      %v2640 = vadd.f32 %v2608, 1.0
      %v2641 = vadd.f32 %v2609, 1.0
      %v2642 = vadd.f32 %v2610, 1.0
      %v2643 = vadd.f32 %v2611, 1.0
      %v2644 = vadd.f32 %v2612, 1.0
      %v2645 = vadd.f32 %v2613, 1.0
      %v2646 = vadd.f32 %v2614, 1.0
      %v2647 = vadd.f32 %v2615, 1.0
      %v2648 = vadd.f32 %v2616, 1.0
      %v2649 = vadd.f32 %v2617, 1.0
      %v2650 = vadd.f32 %v2618, 1.0
      %v2651 = vadd.f32 %v2619, 1.0
      %v2652 = vadd.f32 %v2620, 1.0
      %v2653 = vadd.f32 %v2621, 1.0
      %v2654 = vadd.f32 %v2622, 1.0
      %v2655 = vadd.f32 %v2623, 1.0
      %v2656 = vadd.f32 %v2624, 1.0
      %v2657 = vadd.f32 %v2625, 1.0
      %v2658 = vadd.f32 %v2626, 1.0
      %v2659 = vadd.f32 %v2627, 1.0
      %v2660 = vadd.f32 %v2628, 1.0
      %v2661 = vadd.f32 %v2629, 1.0
      %v2662 = vadd.f32 %v2630, 1.0
      %v2663 = vadd.f32 %v2631, 1.0
      %v2664 = vmul.f32 %v2408, %v2632
      %v2665 = vmul.f32 %v2409, %v2633
      %v2666 = vmul.f32 %v2410, %v2634
      %v2667 = vmul.f32 %v2411, %v2635
      %v2668 = vmul.f32 %v2412, %v2636
      %v2669 = vmul.f32 %v2413, %v2637
      %v2670 = vmul.f32 %v2414, %v2638
      %v2671 = vmul.f32 %v2415, %v2639
      %v2672 = vmul.f32 %v2416, %v2640
      %v2673 = vmul.f32 %v2417, %v2641
      %v2674 = vmul.f32 %v2418, %v2642
      %v2675 = vmul.f32 %v2419, %v2643
      %v2676 = vmul.f32 %v2420, %v2644
      %v2677 = vmul.f32 %v2421, %v2645
      %v2678 = vmul.f32 %v2422, %v2646
      %v2679 = vmul.f32 %v2423, %v2647
      %v2680 = vmul.f32 %v2424, %v2648
      %v2681 = vmul.f32 %v2425, %v2649
      %v2682 = vmul.f32 %v2426, %v2650
      %v2683 = vmul.f32 %v2427, %v2651
      %v2684 = vmul.f32 %v2428, %v2652
      %v2685 = vmul.f32 %v2429, %v2653
      %v2686 = vmul.f32 %v2430, %v2654
      %v2687 = vmul.f32 %v2431, %v2655
      %v2688 = vmul.f32 %v2432, %v2656
      %v2689 = vmul.f32 %v2433, %v2657
      %v2690 = vmul.f32 %v2434, %v2658
      %v2691 = vmul.f32 %v2435, %v2659
      %v2692 = vmul.f32 %v2436, %v2660
      %v2693 = vmul.f32 %v2437, %v2661
      %v2694 = vmul.f32 %v2438, %v2662
      %v2695 = vmul.f32 %v2439, %v2663
      %2696 = vst.msk [vmem:[%s330 + $0x6] sm:$0xff] %vm279, %v2664
      %2697 = vst.msk [vmem:[%s330 + $0xe] sm:$0xff] %vm279, %v2665
      %2698 = vst.msk [vmem:[%s330 + $0x26] sm:$0xff] %vm279, %v2666
      %2699 = vst.msk [vmem:[%s330 + $0x2e] sm:$0xff] %vm279, %v2667
      %2700 = vst.msk [vmem:[%s330 + $0x46] sm:$0xff] %vm279, %v2668
      %2701 = vst.msk [vmem:[%s330 + $0x4e] sm:$0xff] %vm279, %v2669
      %2702 = vst.msk [vmem:[%s330 + $0x66] sm:$0xff] %vm279, %v2670
      %2703 = vst.msk [vmem:[%s330 + $0x6e] sm:$0xff] %vm279, %v2671
      %2704 = vst.msk [vmem:[%s330 + $0x86] sm:$0xff] %vm279, %v2672
      %2705 = vst.msk [vmem:[%s330 + $0x8e] sm:$0xff] %vm279, %v2673
      %2706 = vst.msk [vmem:[%s330 + $0xa6] sm:$0xff] %vm279, %v2674
      %2707 = vst.msk [vmem:[%s330 + $0xae] sm:$0xff] %vm279, %v2675
      %2708 = vst.msk [vmem:[%s330 + $0xc6] sm:$0xff] %vm279, %v2676
      %2709 = vst.msk [vmem:[%s330 + $0xce] sm:$0xff] %vm279, %v2677
      %2710 = vst.msk [vmem:[%s330 + $0xe6] sm:$0xff] %vm279, %v2678
      %2711 = vst.msk [vmem:[%s330 + $0xee] sm:$0xff] %vm279, %v2679
      %2712 = vst.msk [vmem:[%s330 + $0x106] sm:$0xff] %vm279, %v2680
      %2713 = vst.msk [vmem:[%s330 + $0x10e] sm:$0xff] %vm279, %v2681
      %2714 = vst.msk [vmem:[%s330 + $0x126] sm:$0xff] %vm279, %v2682
      %2715 = vst.msk [vmem:[%s330 + $0x12e] sm:$0xff] %vm279, %v2683
      %2716 = vst.msk [vmem:[%s330 + $0x146] sm:$0xff] %vm279, %v2684
      %2717 = vst.msk [vmem:[%s330 + $0x14e] sm:$0xff] %vm279, %v2685
      %2718 = vst.msk [vmem:[%s330 + $0x166] sm:$0xff] %vm279, %v2686
      %2719 = vst.msk [vmem:[%s330 + $0x16e] sm:$0xff] %vm279, %v2687
      %2720 = vst.msk [vmem:[%s330 + $0x186] sm:$0xff] %vm279, %v2688
      %2721 = vst.msk [vmem:[%s330 + $0x18e] sm:$0xff] %vm279, %v2689
      %2722 = vst.msk [vmem:[%s330 + $0x1a6] sm:$0xff] %vm279, %v2690
      %2723 = vst.msk [vmem:[%s330 + $0x1ae] sm:$0xff] %vm279, %v2691
      %2724 = vst.msk [vmem:[%s330 + $0x1c6] sm:$0xff] %vm279, %v2692
      %2725 = vst.msk [vmem:[%s330 + $0x1ce] sm:$0xff] %vm279, %v2693
      %2726 = vst.msk [vmem:[%s330 + $0x1e6] sm:$0xff] %vm279, %v2694
      %2727 = vst.msk [vmem:[%s330 + $0x1ee] sm:$0xff] %vm279, %v2695
      %v2728 = vld [vmem:[#allocation2] sm:$0xff]
      %v2729 = vld [vmem:[#allocation2 + $0x8] sm:$0xff]
      %v2730 = vld [vmem:[#allocation2 + $0x20] sm:$0xff]
      %v2731 = vld [vmem:[#allocation2 + $0x28] sm:$0xff]
      %v2732 = vld [vmem:[#allocation2 + $0x40] sm:$0xff]
      %v2733 = vld [vmem:[#allocation2 + $0x48] sm:$0xff]
      %v2734 = vld [vmem:[#allocation2 + $0x60] sm:$0xff]
      %v2735 = vld [vmem:[#allocation2 + $0x68] sm:$0xff]
      %v2736 = vld [vmem:[#allocation2 + $0x80] sm:$0xff]
      %v2737 = vld [vmem:[#allocation2 + $0x88] sm:$0xff]
      %v2738 = vld [vmem:[#allocation2 + $0xa0] sm:$0xff]
      %v2739 = vld [vmem:[#allocation2 + $0xa8] sm:$0xff]
      %v2740 = vld [vmem:[#allocation2 + $0xc0] sm:$0xff]
      %v2741 = vld [vmem:[#allocation2 + $0xc8] sm:$0xff]
      %v2742 = vld [vmem:[#allocation2 + $0xe0] sm:$0xff]
      %v2743 = vld [vmem:[#allocation2 + $0xe8] sm:$0xff]
      %v2744 = vld [vmem:[#allocation2 + $0x100] sm:$0xff]
      %v2745 = vld [vmem:[#allocation2 + $0x108] sm:$0xff]
      %v2746 = vld [vmem:[#allocation2 + $0x120] sm:$0xff]
      %v2747 = vld [vmem:[#allocation2 + $0x128] sm:$0xff]
      %v2748 = vld [vmem:[#allocation2 + $0x140] sm:$0xff]
      %v2749 = vld [vmem:[#allocation2 + $0x148] sm:$0xff]
      %v2750 = vld [vmem:[#allocation2 + $0x160] sm:$0xff]
      %v2751 = vld [vmem:[#allocation2 + $0x168] sm:$0xff]
      %v2752 = vld [vmem:[#allocation2 + $0x180] sm:$0xff]
      %v2753 = vld [vmem:[#allocation2 + $0x188] sm:$0xff]
      %v2754 = vld [vmem:[#allocation2 + $0x1a0] sm:$0xff]
      %v2755 = vld [vmem:[#allocation2 + $0x1a8] sm:$0xff]
      %v2756 = vld [vmem:[#allocation2 + $0x1c0] sm:$0xff]
      %v2757 = vld [vmem:[#allocation2 + $0x1c8] sm:$0xff]
      %v2758 = vld [vmem:[#allocation2 + $0x1e0] sm:$0xff]
      %v2759 = vld [vmem:[#allocation2 + $0x1e8] sm:$0xff]
      %2760 = vst.msk [vmem:[#allocation3] sm:$0xff] %vm279, %v2728
      %2761 = vst.msk [vmem:[#allocation3 + $0x8] sm:$0xff] %vm279, %v2729
      %2762 = vst.msk [vmem:[#allocation3 + $0x10] sm:$0xff] %vm279, %v2730
      %2763 = vst.msk [vmem:[#allocation3 + $0x18] sm:$0xff] %vm279, %v2731
      %2764 = vst.msk [vmem:[#allocation3 + $0x20] sm:$0xff] %vm279, %v2732
      %2765 = vst.msk [vmem:[#allocation3 + $0x28] sm:$0xff] %vm279, %v2733
      %2766 = vst.msk [vmem:[#allocation3 + $0x30] sm:$0xff] %vm279, %v2734
      %2767 = vst.msk [vmem:[#allocation3 + $0x38] sm:$0xff] %vm279, %v2735
      %2768 = vst.msk [vmem:[#allocation3 + $0x40] sm:$0xff] %vm279, %v2736
      %2769 = vst.msk [vmem:[#allocation3 + $0x48] sm:$0xff] %vm279, %v2737
      %2770 = vst.msk [vmem:[#allocation3 + $0x50] sm:$0xff] %vm279, %v2738
      %2771 = vst.msk [vmem:[#allocation3 + $0x58] sm:$0xff] %vm279, %v2739
      %2772 = vst.msk [vmem:[#allocation3 + $0x60] sm:$0xff] %vm279, %v2740
      %2773 = vst.msk [vmem:[#allocation3 + $0x68] sm:$0xff] %vm279, %v2741
      %2774 = vst.msk [vmem:[#allocation3 + $0x70] sm:$0xff] %vm279, %v2742
      %2775 = vst.msk [vmem:[#allocation3 + $0x78] sm:$0xff] %vm279, %v2743
      %2776 = vst.msk [vmem:[#allocation3 + $0x80] sm:$0xff] %vm279, %v2744
      %2777 = vst.msk [vmem:[#allocation3 + $0x88] sm:$0xff] %vm279, %v2745
      %2778 = vst.msk [vmem:[#allocation3 + $0x90] sm:$0xff] %vm279, %v2746
      %2779 = vst.msk [vmem:[#allocation3 + $0x98] sm:$0xff] %vm279, %v2747
      %2780 = vst.msk [vmem:[#allocation3 + $0xa0] sm:$0xff] %vm279, %v2748
      %2781 = vst.msk [vmem:[#allocation3 + $0xa8] sm:$0xff] %vm279, %v2749
      %2782 = vst.msk [vmem:[#allocation3 + $0xb0] sm:$0xff] %vm279, %v2750
      %2783 = vst.msk [vmem:[#allocation3 + $0xb8] sm:$0xff] %vm279, %v2751
      %2784 = vst.msk [vmem:[#allocation3 + $0xc0] sm:$0xff] %vm279, %v2752
      %2785 = vst.msk [vmem:[#allocation3 + $0xc8] sm:$0xff] %vm279, %v2753
      %2786 = vst.msk [vmem:[#allocation3 + $0xd0] sm:$0xff] %vm279, %v2754
      %2787 = vst.msk [vmem:[#allocation3 + $0xd8] sm:$0xff] %vm279, %v2755
      %2788 = vst.msk [vmem:[#allocation3 + $0xe0] sm:$0xff] %vm279, %v2756
      %2789 = vst.msk [vmem:[#allocation3 + $0xe8] sm:$0xff] %vm279, %v2757
      %2790 = vst.msk [vmem:[#allocation3 + $0xf0] sm:$0xff] %vm279, %v2758
      %2791 = vst.msk [vmem:[#allocation3 + $0xf8] sm:$0xff] %vm279, %v2759
      %v2792 = vld [vmem:[#allocation2 + $0x6] sm:$0xff]
      %v2793 = vld [vmem:[#allocation2 + $0xe] sm:$0xff]
      %v2794 = vld [vmem:[#allocation2 + $0x26] sm:$0xff]
      %v2795 = vld [vmem:[#allocation2 + $0x2e] sm:$0xff]
      %v2796 = vld [vmem:[#allocation2 + $0x46] sm:$0xff]
      %v2797 = vld [vmem:[#allocation2 + $0x4e] sm:$0xff]
      %v2798 = vld [vmem:[#allocation2 + $0x66] sm:$0xff]
      %v2799 = vld [vmem:[#allocation2 + $0x6e] sm:$0xff]
      %v2800 = vld [vmem:[#allocation2 + $0x86] sm:$0xff]
      %v2801 = vld [vmem:[#allocation2 + $0x8e] sm:$0xff]
      %v2802 = vld [vmem:[#allocation2 + $0xa6] sm:$0xff]
      %v2803 = vld [vmem:[#allocation2 + $0xae] sm:$0xff]
      %v2804 = vld [vmem:[#allocation2 + $0xc6] sm:$0xff]
      %v2805 = vld [vmem:[#allocation2 + $0xce] sm:$0xff]
      %v2806 = vld [vmem:[#allocation2 + $0xe6] sm:$0xff]
      %v2807 = vld [vmem:[#allocation2 + $0xee] sm:$0xff]
      %v2808 = vld [vmem:[#allocation2 + $0x106] sm:$0xff]
      %v2809 = vld [vmem:[#allocation2 + $0x10e] sm:$0xff]
      %v2810 = vld [vmem:[#allocation2 + $0x126] sm:$0xff]
      %v2811 = vld [vmem:[#allocation2 + $0x12e] sm:$0xff]
      %v2812 = vld [vmem:[#allocation2 + $0x146] sm:$0xff]
      %v2813 = vld [vmem:[#allocation2 + $0x14e] sm:$0xff]
      %v2814 = vld [vmem:[#allocation2 + $0x166] sm:$0xff]
      %v2815 = vld [vmem:[#allocation2 + $0x16e] sm:$0xff]
      %v2816 = vld [vmem:[#allocation2 + $0x186] sm:$0xff]
      %v2817 = vld [vmem:[#allocation2 + $0x18e] sm:$0xff]
      %v2818 = vld [vmem:[#allocation2 + $0x1a6] sm:$0xff]
      %v2819 = vld [vmem:[#allocation2 + $0x1ae] sm:$0xff]
      %v2820 = vld [vmem:[#allocation2 + $0x1c6] sm:$0xff]
      %v2821 = vld [vmem:[#allocation2 + $0x1ce] sm:$0xff]
      %v2822 = vld [vmem:[#allocation2 + $0x1e6] sm:$0xff]
      %v2823 = vld [vmem:[#allocation2 + $0x1ee] sm:$0xff]
      %2856 = vrot.lane.b32.xlu0 %v2792, 4
      %v2857 = vpop.permute.xlu0 %2856
      %2858 = vrot.lane.b32.xlu0 %v2793, 4
      %v2859 = vpop.permute.xlu0 %2858
      %2860 = vrot.lane.b32.xlu0 %v2794, 4
      %v2861 = vpop.permute.xlu0 %2860
      %2862 = vrot.lane.b32.xlu0 %v2795, 4
      %v2863 = vpop.permute.xlu0 %2862
      %2864 = vrot.lane.b32.xlu0 %v2796, 4
      %v2865 = vpop.permute.xlu0 %2864
      %2866 = vrot.lane.b32.xlu0 %v2797, 4
      %v2867 = vpop.permute.xlu0 %2866
      %2868 = vrot.lane.b32.xlu0 %v2798, 4
      %v2869 = vpop.permute.xlu0 %2868
      %2870 = vrot.lane.b32.xlu0 %v2799, 4
      %v2871 = vpop.permute.xlu0 %2870
      %2872 = vrot.lane.b32.xlu0 %v2800, 4
      %v2873 = vpop.permute.xlu0 %2872
      %2874 = vrot.lane.b32.xlu0 %v2801, 4
      %v2875 = vpop.permute.xlu0 %2874
      %2876 = vrot.lane.b32.xlu0 %v2802, 4
      %v2877 = vpop.permute.xlu0 %2876
      %2878 = vrot.lane.b32.xlu0 %v2803, 4
      %v2879 = vpop.permute.xlu0 %2878
      %2880 = vrot.lane.b32.xlu0 %v2804, 4
      %v2881 = vpop.permute.xlu0 %2880
      %2882 = vrot.lane.b32.xlu0 %v2805, 4
      %v2883 = vpop.permute.xlu0 %2882
      %2884 = vrot.lane.b32.xlu0 %v2806, 4
      %v2885 = vpop.permute.xlu0 %2884
      %2886 = vrot.lane.b32.xlu0 %v2807, 4
      %v2887 = vpop.permute.xlu0 %2886
      %2888 = vrot.lane.b32.xlu0 %v2808, 4
      %v2889 = vpop.permute.xlu0 %2888
      %2890 = vrot.lane.b32.xlu0 %v2809, 4
      %v2891 = vpop.permute.xlu0 %2890
      %2892 = vrot.lane.b32.xlu0 %v2810, 4
      %v2893 = vpop.permute.xlu0 %2892
      %2894 = vrot.lane.b32.xlu0 %v2811, 4
      %v2895 = vpop.permute.xlu0 %2894
      %2896 = vrot.lane.b32.xlu0 %v2812, 4
      %v2897 = vpop.permute.xlu0 %2896
      %2898 = vrot.lane.b32.xlu0 %v2813, 4
      %v2899 = vpop.permute.xlu0 %2898
      %2900 = vrot.lane.b32.xlu0 %v2814, 4
      %v2901 = vpop.permute.xlu0 %2900
      %2902 = vrot.lane.b32.xlu0 %v2815, 4
      %v2903 = vpop.permute.xlu0 %2902
      %2904 = vrot.lane.b32.xlu0 %v2816, 4
      %v2905 = vpop.permute.xlu0 %2904
      %2906 = vrot.lane.b32.xlu0 %v2817, 4
      %v2907 = vpop.permute.xlu0 %2906
      %2908 = vrot.lane.b32.xlu0 %v2818, 4
      %v2909 = vpop.permute.xlu0 %2908
      %2910 = vrot.lane.b32.xlu0 %v2819, 4
      %v2911 = vpop.permute.xlu0 %2910
      %2912 = vrot.lane.b32.xlu0 %v2820, 4
      %v2913 = vpop.permute.xlu0 %2912
      %2914 = vrot.lane.b32.xlu0 %v2821, 4
      %v2915 = vpop.permute.xlu0 %2914
      %2916 = vrot.lane.b32.xlu0 %v2822, 4
      %v2917 = vpop.permute.xlu0 %2916
      %2918 = vrot.lane.b32.xlu0 %v2823, 4
      %v2919 = vpop.permute.xlu0 %2918
      %2952 = vst.msk [vmem:[#allocation3] sm:$0xff] %vm653, %v2857
      %2953 = vst.msk [vmem:[#allocation3 + $0x8] sm:$0xff] %vm653, %v2859
      %2954 = vst.msk [vmem:[#allocation3 + $0x10] sm:$0xff] %vm653, %v2861
      %2955 = vst.msk [vmem:[#allocation3 + $0x18] sm:$0xff] %vm653, %v2863
      %2956 = vst.msk [vmem:[#allocation3 + $0x20] sm:$0xff] %vm653, %v2865
      %2957 = vst.msk [vmem:[#allocation3 + $0x28] sm:$0xff] %vm653, %v2867
      %2958 = vst.msk [vmem:[#allocation3 + $0x30] sm:$0xff] %vm653, %v2869
      %2959 = vst.msk [vmem:[#allocation3 + $0x38] sm:$0xff] %vm653, %v2871
      %2960 = vst.msk [vmem:[#allocation3 + $0x40] sm:$0xff] %vm653, %v2873
      %2961 = vst.msk [vmem:[#allocation3 + $0x48] sm:$0xff] %vm653, %v2875
      %2962 = vst.msk [vmem:[#allocation3 + $0x50] sm:$0xff] %vm653, %v2877
      %2963 = vst.msk [vmem:[#allocation3 + $0x58] sm:$0xff] %vm653, %v2879
      %2964 = vst.msk [vmem:[#allocation3 + $0x60] sm:$0xff] %vm653, %v2881
      %2965 = vst.msk [vmem:[#allocation3 + $0x68] sm:$0xff] %vm653, %v2883
      %2966 = vst.msk [vmem:[#allocation3 + $0x70] sm:$0xff] %vm653, %v2885
      %2967 = vst.msk [vmem:[#allocation3 + $0x78] sm:$0xff] %vm653, %v2887
      %2968 = vst.msk [vmem:[#allocation3 + $0x80] sm:$0xff] %vm653, %v2889
      %2969 = vst.msk [vmem:[#allocation3 + $0x88] sm:$0xff] %vm653, %v2891
      %2970 = vst.msk [vmem:[#allocation3 + $0x90] sm:$0xff] %vm653, %v2893
      %2971 = vst.msk [vmem:[#allocation3 + $0x98] sm:$0xff] %vm653, %v2895
      %2972 = vst.msk [vmem:[#allocation3 + $0xa0] sm:$0xff] %vm653, %v2897
      %2973 = vst.msk [vmem:[#allocation3 + $0xa8] sm:$0xff] %vm653, %v2899
      %2974 = vst.msk [vmem:[#allocation3 + $0xb0] sm:$0xff] %vm653, %v2901
      %2975 = vst.msk [vmem:[#allocation3 + $0xb8] sm:$0xff] %vm653, %v2903
      %2976 = vst.msk [vmem:[#allocation3 + $0xc0] sm:$0xff] %vm653, %v2905
      %2977 = vst.msk [vmem:[#allocation3 + $0xc8] sm:$0xff] %vm653, %v2907
      %2978 = vst.msk [vmem:[#allocation3 + $0xd0] sm:$0xff] %vm653, %v2909
      %2979 = vst.msk [vmem:[#allocation3 + $0xd8] sm:$0xff] %vm653, %v2911
      %2980 = vst.msk [vmem:[#allocation3 + $0xe0] sm:$0xff] %vm653, %v2913
      %2981 = vst.msk [vmem:[#allocation3 + $0xe8] sm:$0xff] %vm653, %v2915
      %2982 = vst.msk [vmem:[#allocation3 + $0xf0] sm:$0xff] %vm653, %v2917
      %2983 = vst.msk [vmem:[#allocation3 + $0xf8] sm:$0xff] %vm653, %v2919
      %v2984 = vld [vmem:[#allocation2 + $0xc] sm:$0xff]
      %v2985 = vld [vmem:[#allocation2 + $0x14] sm:$0xff]
      %v2986 = vld [vmem:[#allocation2 + $0x2c] sm:$0xff]
      %v2987 = vld [vmem:[#allocation2 + $0x34] sm:$0xff]
      %v2988 = vld [vmem:[#allocation2 + $0x4c] sm:$0xff]
      %v2989 = vld [vmem:[#allocation2 + $0x54] sm:$0xff]
      %v2990 = vld [vmem:[#allocation2 + $0x6c] sm:$0xff]
      %v2991 = vld [vmem:[#allocation2 + $0x74] sm:$0xff]
      %v2992 = vld [vmem:[#allocation2 + $0x8c] sm:$0xff]
      %v2993 = vld [vmem:[#allocation2 + $0x94] sm:$0xff]
      %v2994 = vld [vmem:[#allocation2 + $0xac] sm:$0xff]
      %v2995 = vld [vmem:[#allocation2 + $0xb4] sm:$0xff]
      %v2996 = vld [vmem:[#allocation2 + $0xcc] sm:$0xff]
      %v2997 = vld [vmem:[#allocation2 + $0xd4] sm:$0xff]
      %v2998 = vld [vmem:[#allocation2 + $0xec] sm:$0xff]
      %v2999 = vld [vmem:[#allocation2 + $0xf4] sm:$0xff]
      %v3000 = vld [vmem:[#allocation2 + $0x10c] sm:$0xff]
      %v3001 = vld [vmem:[#allocation2 + $0x114] sm:$0xff]
      %v3002 = vld [vmem:[#allocation2 + $0x12c] sm:$0xff]
      %v3003 = vld [vmem:[#allocation2 + $0x134] sm:$0xff]
      %v3004 = vld [vmem:[#allocation2 + $0x14c] sm:$0xff]
      %v3005 = vld [vmem:[#allocation2 + $0x154] sm:$0xff]
      %v3006 = vld [vmem:[#allocation2 + $0x16c] sm:$0xff]
      %v3007 = vld [vmem:[#allocation2 + $0x174] sm:$0xff]
      %v3008 = vld [vmem:[#allocation2 + $0x18c] sm:$0xff]
      %v3009 = vld [vmem:[#allocation2 + $0x194] sm:$0xff]
      %v3010 = vld [vmem:[#allocation2 + $0x1ac] sm:$0xff]
      %v3011 = vld [vmem:[#allocation2 + $0x1b4] sm:$0xff]
      %v3012 = vld [vmem:[#allocation2 + $0x1cc] sm:$0xff]
      %v3013 = vld [vmem:[#allocation2 + $0x1d4] sm:$0xff]
      %v3014 = vld [vmem:[#allocation2 + $0x1ec] sm:$0xff]
      %v3015 = vld [vmem:[#allocation2 + $0x1f4] sm:$0xff]
      %3048 = vrot.lane.b32.xlu0 %v2984, 8
      %v3049 = vpop.permute.xlu0 %3048
      %3050 = vrot.lane.b32.xlu0 %v2985, 8
      %v3051 = vpop.permute.xlu0 %3050
      %3052 = vrot.lane.b32.xlu0 %v2986, 8
      %v3053 = vpop.permute.xlu0 %3052
      %3054 = vrot.lane.b32.xlu0 %v2987, 8
      %v3055 = vpop.permute.xlu0 %3054
      %3056 = vrot.lane.b32.xlu0 %v2988, 8
      %v3057 = vpop.permute.xlu0 %3056
      %3058 = vrot.lane.b32.xlu0 %v2989, 8
      %v3059 = vpop.permute.xlu0 %3058
      %3060 = vrot.lane.b32.xlu0 %v2990, 8
      %v3061 = vpop.permute.xlu0 %3060
      %3062 = vrot.lane.b32.xlu0 %v2991, 8
      %v3063 = vpop.permute.xlu0 %3062
      %3064 = vrot.lane.b32.xlu0 %v2992, 8
      %v3065 = vpop.permute.xlu0 %3064
      %3066 = vrot.lane.b32.xlu0 %v2993, 8
      %v3067 = vpop.permute.xlu0 %3066
      %3068 = vrot.lane.b32.xlu0 %v2994, 8
      %v3069 = vpop.permute.xlu0 %3068
      %3070 = vrot.lane.b32.xlu0 %v2995, 8
      %v3071 = vpop.permute.xlu0 %3070
      %3072 = vrot.lane.b32.xlu0 %v2996, 8
      %v3073 = vpop.permute.xlu0 %3072
      %3074 = vrot.lane.b32.xlu0 %v2997, 8
      %v3075 = vpop.permute.xlu0 %3074
      %3076 = vrot.lane.b32.xlu0 %v2998, 8
      %v3077 = vpop.permute.xlu0 %3076
      %3078 = vrot.lane.b32.xlu0 %v2999, 8
      %v3079 = vpop.permute.xlu0 %3078
      %3080 = vrot.lane.b32.xlu0 %v3000, 8
      %v3081 = vpop.permute.xlu0 %3080
      %3082 = vrot.lane.b32.xlu0 %v3001, 8
      %v3083 = vpop.permute.xlu0 %3082
      %3084 = vrot.lane.b32.xlu0 %v3002, 8
      %v3085 = vpop.permute.xlu0 %3084
      %3086 = vrot.lane.b32.xlu0 %v3003, 8
      %v3087 = vpop.permute.xlu0 %3086
      %3088 = vrot.lane.b32.xlu0 %v3004, 8
      %v3089 = vpop.permute.xlu0 %3088
      %3090 = vrot.lane.b32.xlu0 %v3005, 8
      %v3091 = vpop.permute.xlu0 %3090
      %3092 = vrot.lane.b32.xlu0 %v3006, 8
      %v3093 = vpop.permute.xlu0 %3092
      %3094 = vrot.lane.b32.xlu0 %v3007, 8
      %v3095 = vpop.permute.xlu0 %3094
      %3096 = vrot.lane.b32.xlu0 %v3008, 8
      %v3097 = vpop.permute.xlu0 %3096
      %3098 = vrot.lane.b32.xlu0 %v3009, 8
      %v3099 = vpop.permute.xlu0 %3098
      %3100 = vrot.lane.b32.xlu0 %v3010, 8
      %v3101 = vpop.permute.xlu0 %3100
      %3102 = vrot.lane.b32.xlu0 %v3011, 8
      %v3103 = vpop.permute.xlu0 %3102
      %3104 = vrot.lane.b32.xlu0 %v3012, 8
      %v3105 = vpop.permute.xlu0 %3104
      %3106 = vrot.lane.b32.xlu0 %v3013, 8
      %v3107 = vpop.permute.xlu0 %3106
      %3108 = vrot.lane.b32.xlu0 %v3014, 8
      %v3109 = vpop.permute.xlu0 %3108
      %3110 = vrot.lane.b32.xlu0 %v3015, 8
      %v3111 = vpop.permute.xlu0 %3110
      %3144 = vst.msk [vmem:[#allocation3] sm:$0xff] %vm846, %v3049
      %3145 = vst.msk [vmem:[#allocation3 + $0x8] sm:$0xff] %vm846, %v3051
      %3146 = vst.msk [vmem:[#allocation3 + $0x10] sm:$0xff] %vm846, %v3053
      %3147 = vst.msk [vmem:[#allocation3 + $0x18] sm:$0xff] %vm846, %v3055
      %3148 = vst.msk [vmem:[#allocation3 + $0x20] sm:$0xff] %vm846, %v3057
      %3149 = vst.msk [vmem:[#allocation3 + $0x28] sm:$0xff] %vm846, %v3059
      %3150 = vst.msk [vmem:[#allocation3 + $0x30] sm:$0xff] %vm846, %v3061
      %3151 = vst.msk [vmem:[#allocation3 + $0x38] sm:$0xff] %vm846, %v3063
      %3152 = vst.msk [vmem:[#allocation3 + $0x40] sm:$0xff] %vm846, %v3065
      %3153 = vst.msk [vmem:[#allocation3 + $0x48] sm:$0xff] %vm846, %v3067
      %3154 = vst.msk [vmem:[#allocation3 + $0x50] sm:$0xff] %vm846, %v3069
      %3155 = vst.msk [vmem:[#allocation3 + $0x58] sm:$0xff] %vm846, %v3071
      %3156 = vst.msk [vmem:[#allocation3 + $0x60] sm:$0xff] %vm846, %v3073
      %3157 = vst.msk [vmem:[#allocation3 + $0x68] sm:$0xff] %vm846, %v3075
      %3158 = vst.msk [vmem:[#allocation3 + $0x70] sm:$0xff] %vm846, %v3077
      %3159 = vst.msk [vmem:[#allocation3 + $0x78] sm:$0xff] %vm846, %v3079
      %3160 = vst.msk [vmem:[#allocation3 + $0x80] sm:$0xff] %vm846, %v3081
      %3161 = vst.msk [vmem:[#allocation3 + $0x88] sm:$0xff] %vm846, %v3083
      %3162 = vst.msk [vmem:[#allocation3 + $0x90] sm:$0xff] %vm846, %v3085
      %3163 = vst.msk [vmem:[#allocation3 + $0x98] sm:$0xff] %vm846, %v3087
      %3164 = vst.msk [vmem:[#allocation3 + $0xa0] sm:$0xff] %vm846, %v3089
      %3165 = vst.msk [vmem:[#allocation3 + $0xa8] sm:$0xff] %vm846, %v3091
      %3166 = vst.msk [vmem:[#allocation3 + $0xb0] sm:$0xff] %vm846, %v3093
      %3167 = vst.msk [vmem:[#allocation3 + $0xb8] sm:$0xff] %vm846, %v3095
      %3168 = vst.msk [vmem:[#allocation3 + $0xc0] sm:$0xff] %vm846, %v3097
      %3169 = vst.msk [vmem:[#allocation3 + $0xc8] sm:$0xff] %vm846, %v3099
      %3170 = vst.msk [vmem:[#allocation3 + $0xd0] sm:$0xff] %vm846, %v3101
      %3171 = vst.msk [vmem:[#allocation3 + $0xd8] sm:$0xff] %vm846, %v3103
      %3172 = vst.msk [vmem:[#allocation3 + $0xe0] sm:$0xff] %vm846, %v3105
      %3173 = vst.msk [vmem:[#allocation3 + $0xe8] sm:$0xff] %vm846, %v3107
      %3174 = vst.msk [vmem:[#allocation3 + $0xf0] sm:$0xff] %vm846, %v3109
      %3175 = vst.msk [vmem:[#allocation3 + $0xf8] sm:$0xff] %vm846, %v3111
      %v3176 = vld [vmem:[%s330] sm:$0xff]
      %v3177 = vld [vmem:[%s330 + $0x8] sm:$0xff]
      %v3178 = vld [vmem:[%s330 + $0x20] sm:$0xff]
      %v3179 = vld [vmem:[%s330 + $0x28] sm:$0xff]
      %v3180 = vld [vmem:[%s330 + $0x40] sm:$0xff]
      %v3181 = vld [vmem:[%s330 + $0x48] sm:$0xff]
      %v3182 = vld [vmem:[%s330 + $0x60] sm:$0xff]
      %v3183 = vld [vmem:[%s330 + $0x68] sm:$0xff]
      %v3184 = vld [vmem:[%s330 + $0x80] sm:$0xff]
      %v3185 = vld [vmem:[%s330 + $0x88] sm:$0xff]
      %v3186 = vld [vmem:[%s330 + $0xa0] sm:$0xff]
      %v3187 = vld [vmem:[%s330 + $0xa8] sm:$0xff]
      %v3188 = vld [vmem:[%s330 + $0xc0] sm:$0xff]
      %v3189 = vld [vmem:[%s330 + $0xc8] sm:$0xff]
      %v3190 = vld [vmem:[%s330 + $0xe0] sm:$0xff]
      %v3191 = vld [vmem:[%s330 + $0xe8] sm:$0xff]
      %v3192 = vld [vmem:[%s330 + $0x100] sm:$0xff]
      %v3193 = vld [vmem:[%s330 + $0x108] sm:$0xff]
      %v3194 = vld [vmem:[%s330 + $0x120] sm:$0xff]
      %v3195 = vld [vmem:[%s330 + $0x128] sm:$0xff]
      %v3196 = vld [vmem:[%s330 + $0x140] sm:$0xff]
      %v3197 = vld [vmem:[%s330 + $0x148] sm:$0xff]
      %v3198 = vld [vmem:[%s330 + $0x160] sm:$0xff]
      %v3199 = vld [vmem:[%s330 + $0x168] sm:$0xff]
      %v3200 = vld [vmem:[%s330 + $0x180] sm:$0xff]
      %v3201 = vld [vmem:[%s330 + $0x188] sm:$0xff]
      %v3202 = vld [vmem:[%s330 + $0x1a0] sm:$0xff]
      %v3203 = vld [vmem:[%s330 + $0x1a8] sm:$0xff]
      %v3204 = vld [vmem:[%s330 + $0x1c0] sm:$0xff]
      %v3205 = vld [vmem:[%s330 + $0x1c8] sm:$0xff]
      %v3206 = vld [vmem:[%s330 + $0x1e0] sm:$0xff]
      %v3207 = vld [vmem:[%s330 + $0x1e8] sm:$0xff]
      %3240 = vrot.lane.b32.xlu0 %v3176, 12
      %v3241 = vpop.permute.xlu0 %3240
      %3242 = vrot.lane.b32.xlu0 %v3177, 12
      %v3243 = vpop.permute.xlu0 %3242
      %3244 = vrot.lane.b32.xlu0 %v3178, 12
      %v3245 = vpop.permute.xlu0 %3244
      %3246 = vrot.lane.b32.xlu0 %v3179, 12
      %v3247 = vpop.permute.xlu0 %3246
      %3248 = vrot.lane.b32.xlu0 %v3180, 12
      %v3249 = vpop.permute.xlu0 %3248
      %3250 = vrot.lane.b32.xlu0 %v3181, 12
      %v3251 = vpop.permute.xlu0 %3250
      %3252 = vrot.lane.b32.xlu0 %v3182, 12
      %v3253 = vpop.permute.xlu0 %3252
      %3254 = vrot.lane.b32.xlu0 %v3183, 12
      %v3255 = vpop.permute.xlu0 %3254
      %3256 = vrot.lane.b32.xlu0 %v3184, 12
      %v3257 = vpop.permute.xlu0 %3256
      %3258 = vrot.lane.b32.xlu0 %v3185, 12
      %v3259 = vpop.permute.xlu0 %3258
      %3260 = vrot.lane.b32.xlu0 %v3186, 12
      %v3261 = vpop.permute.xlu0 %3260
      %3262 = vrot.lane.b32.xlu0 %v3187, 12
      %v3263 = vpop.permute.xlu0 %3262
      %3264 = vrot.lane.b32.xlu0 %v3188, 12
      %v3265 = vpop.permute.xlu0 %3264
      %3266 = vrot.lane.b32.xlu0 %v3189, 12
      %v3267 = vpop.permute.xlu0 %3266
      %3268 = vrot.lane.b32.xlu0 %v3190, 12
      %v3269 = vpop.permute.xlu0 %3268
      %3270 = vrot.lane.b32.xlu0 %v3191, 12
      %v3271 = vpop.permute.xlu0 %3270
      %3272 = vrot.lane.b32.xlu0 %v3192, 12
      %v3273 = vpop.permute.xlu0 %3272
      %3274 = vrot.lane.b32.xlu0 %v3193, 12
      %v3275 = vpop.permute.xlu0 %3274
      %3276 = vrot.lane.b32.xlu0 %v3194, 12
      %v3277 = vpop.permute.xlu0 %3276
      %3278 = vrot.lane.b32.xlu0 %v3195, 12
      %v3279 = vpop.permute.xlu0 %3278
      %3280 = vrot.lane.b32.xlu0 %v3196, 12
      %v3281 = vpop.permute.xlu0 %3280
      %3282 = vrot.lane.b32.xlu0 %v3197, 12
      %v3283 = vpop.permute.xlu0 %3282
      %3284 = vrot.lane.b32.xlu0 %v3198, 12
      %v3285 = vpop.permute.xlu0 %3284
      %3286 = vrot.lane.b32.xlu0 %v3199, 12
      %v3287 = vpop.permute.xlu0 %3286
      %3288 = vrot.lane.b32.xlu0 %v3200, 12
      %v3289 = vpop.permute.xlu0 %3288
      %3290 = vrot.lane.b32.xlu0 %v3201, 12
      %v3291 = vpop.permute.xlu0 %3290
      %3292 = vrot.lane.b32.xlu0 %v3202, 12
      %v3293 = vpop.permute.xlu0 %3292
      %3294 = vrot.lane.b32.xlu0 %v3203, 12
      %v3295 = vpop.permute.xlu0 %3294
      %3296 = vrot.lane.b32.xlu0 %v3204, 12
      %v3297 = vpop.permute.xlu0 %3296
      %3298 = vrot.lane.b32.xlu0 %v3205, 12
      %v3299 = vpop.permute.xlu0 %3298
      %3300 = vrot.lane.b32.xlu0 %v3206, 12
      %v3301 = vpop.permute.xlu0 %3300
      %3302 = vrot.lane.b32.xlu0 %v3207, 12
      %v3303 = vpop.permute.xlu0 %3302
      %3336 = vst.msk [vmem:[#allocation3] sm:$0xff] %vm1039, %v3241
      %3337 = vst.msk [vmem:[#allocation3 + $0x8] sm:$0xff] %vm1039, %v3243
      %3338 = vst.msk [vmem:[#allocation3 + $0x10] sm:$0xff] %vm1039, %v3245
      %3339 = vst.msk [vmem:[#allocation3 + $0x18] sm:$0xff] %vm1039, %v3247
      %3340 = vst.msk [vmem:[#allocation3 + $0x20] sm:$0xff] %vm1039, %v3249
      %3341 = vst.msk [vmem:[#allocation3 + $0x28] sm:$0xff] %vm1039, %v3251
      %3342 = vst.msk [vmem:[#allocation3 + $0x30] sm:$0xff] %vm1039, %v3253
      %3343 = vst.msk [vmem:[#allocation3 + $0x38] sm:$0xff] %vm1039, %v3255
      %3344 = vst.msk [vmem:[#allocation3 + $0x40] sm:$0xff] %vm1039, %v3257
      %3345 = vst.msk [vmem:[#allocation3 + $0x48] sm:$0xff] %vm1039, %v3259
      %3346 = vst.msk [vmem:[#allocation3 + $0x50] sm:$0xff] %vm1039, %v3261
      %3347 = vst.msk [vmem:[#allocation3 + $0x58] sm:$0xff] %vm1039, %v3263
      %3348 = vst.msk [vmem:[#allocation3 + $0x60] sm:$0xff] %vm1039, %v3265
      %3349 = vst.msk [vmem:[#allocation3 + $0x68] sm:$0xff] %vm1039, %v3267
      %3350 = vst.msk [vmem:[#allocation3 + $0x70] sm:$0xff] %vm1039, %v3269
      %3351 = vst.msk [vmem:[#allocation3 + $0x78] sm:$0xff] %vm1039, %v3271
      %3352 = vst.msk [vmem:[#allocation3 + $0x80] sm:$0xff] %vm1039, %v3273
      %3353 = vst.msk [vmem:[#allocation3 + $0x88] sm:$0xff] %vm1039, %v3275
      %3354 = vst.msk [vmem:[#allocation3 + $0x90] sm:$0xff] %vm1039, %v3277
      %3355 = vst.msk [vmem:[#allocation3 + $0x98] sm:$0xff] %vm1039, %v3279
      %3356 = vst.msk [vmem:[#allocation3 + $0xa0] sm:$0xff] %vm1039, %v3281
      %3357 = vst.msk [vmem:[#allocation3 + $0xa8] sm:$0xff] %vm1039, %v3283
      %3358 = vst.msk [vmem:[#allocation3 + $0xb0] sm:$0xff] %vm1039, %v3285
      %3359 = vst.msk [vmem:[#allocation3 + $0xb8] sm:$0xff] %vm1039, %v3287
      %3360 = vst.msk [vmem:[#allocation3 + $0xc0] sm:$0xff] %vm1039, %v3289
      %3361 = vst.msk [vmem:[#allocation3 + $0xc8] sm:$0xff] %vm1039, %v3291
      %3362 = vst.msk [vmem:[#allocation3 + $0xd0] sm:$0xff] %vm1039, %v3293
      %3363 = vst.msk [vmem:[#allocation3 + $0xd8] sm:$0xff] %vm1039, %v3295
      %3364 = vst.msk [vmem:[#allocation3 + $0xe0] sm:$0xff] %vm1039, %v3297
      %3365 = vst.msk [vmem:[#allocation3 + $0xe8] sm:$0xff] %vm1039, %v3299
      %3366 = vst.msk [vmem:[#allocation3 + $0xf0] sm:$0xff] %vm1039, %v3301
      %3367 = vst.msk [vmem:[#allocation3 + $0xf8] sm:$0xff] %vm1039, %v3303
      %v3368 = vld [vmem:[%s330 + $0x6] sm:$0xff]
      %v3369 = vld [vmem:[%s330 + $0xe] sm:$0xff]
      %v3370 = vld [vmem:[%s330 + $0x26] sm:$0xff]
      %v3371 = vld [vmem:[%s330 + $0x2e] sm:$0xff]
      %v3372 = vld [vmem:[%s330 + $0x46] sm:$0xff]
      %v3373 = vld [vmem:[%s330 + $0x4e] sm:$0xff]
      %v3374 = vld [vmem:[%s330 + $0x66] sm:$0xff]
      %v3375 = vld [vmem:[%s330 + $0x6e] sm:$0xff]
      %v3376 = vld [vmem:[%s330 + $0x86] sm:$0xff]
      %v3377 = vld [vmem:[%s330 + $0x8e] sm:$0xff]
      %v3378 = vld [vmem:[%s330 + $0xa6] sm:$0xff]
      %v3379 = vld [vmem:[%s330 + $0xae] sm:$0xff]
      %v3380 = vld [vmem:[%s330 + $0xc6] sm:$0xff]
      %v3381 = vld [vmem:[%s330 + $0xce] sm:$0xff]
      %v3382 = vld [vmem:[%s330 + $0xe6] sm:$0xff]
      %v3383 = vld [vmem:[%s330 + $0xee] sm:$0xff]
      %v3384 = vld [vmem:[%s330 + $0x106] sm:$0xff]
      %v3385 = vld [vmem:[%s330 + $0x10e] sm:$0xff]
      %v3386 = vld [vmem:[%s330 + $0x126] sm:$0xff]
      %v3387 = vld [vmem:[%s330 + $0x12e] sm:$0xff]
      %v3388 = vld [vmem:[%s330 + $0x146] sm:$0xff]
      %v3389 = vld [vmem:[%s330 + $0x14e] sm:$0xff]
      %v3390 = vld [vmem:[%s330 + $0x166] sm:$0xff]
      %v3391 = vld [vmem:[%s330 + $0x16e] sm:$0xff]
      %v3392 = vld [vmem:[%s330 + $0x186] sm:$0xff]
      %v3393 = vld [vmem:[%s330 + $0x18e] sm:$0xff]
      %v3394 = vld [vmem:[%s330 + $0x1a6] sm:$0xff]
      %v3395 = vld [vmem:[%s330 + $0x1ae] sm:$0xff]
      %v3396 = vld [vmem:[%s330 + $0x1c6] sm:$0xff]
      %v3397 = vld [vmem:[%s330 + $0x1ce] sm:$0xff]
      %v3398 = vld [vmem:[%s330 + $0x1e6] sm:$0xff]
      %v3399 = vld [vmem:[%s330 + $0x1ee] sm:$0xff]
      %3432 = vrot.lane.b32.xlu0 %v3368, 16
      %v3433 = vpop.permute.xlu0 %3432
      %3434 = vrot.lane.b32.xlu0 %v3369, 16
      %v3435 = vpop.permute.xlu0 %3434
      %3436 = vrot.lane.b32.xlu0 %v3370, 16
      %v3437 = vpop.permute.xlu0 %3436
      %3438 = vrot.lane.b32.xlu0 %v3371, 16
      %v3439 = vpop.permute.xlu0 %3438
      %3440 = vrot.lane.b32.xlu0 %v3372, 16
      %v3441 = vpop.permute.xlu0 %3440
      %3442 = vrot.lane.b32.xlu0 %v3373, 16
      %v3443 = vpop.permute.xlu0 %3442
      %3444 = vrot.lane.b32.xlu0 %v3374, 16
      %v3445 = vpop.permute.xlu0 %3444
      %3446 = vrot.lane.b32.xlu0 %v3375, 16
      %v3447 = vpop.permute.xlu0 %3446
      %3448 = vrot.lane.b32.xlu0 %v3376, 16
      %v3449 = vpop.permute.xlu0 %3448
      %3450 = vrot.lane.b32.xlu0 %v3377, 16
      %v3451 = vpop.permute.xlu0 %3450
      %3452 = vrot.lane.b32.xlu0 %v3378, 16
      %v3453 = vpop.permute.xlu0 %3452
      %3454 = vrot.lane.b32.xlu0 %v3379, 16
      %v3455 = vpop.permute.xlu0 %3454
      %3456 = vrot.lane.b32.xlu0 %v3380, 16
      %v3457 = vpop.permute.xlu0 %3456
      %3458 = vrot.lane.b32.xlu0 %v3381, 16
      %v3459 = vpop.permute.xlu0 %3458
      %3460 = vrot.lane.b32.xlu0 %v3382, 16
      %v3461 = vpop.permute.xlu0 %3460
      %3462 = vrot.lane.b32.xlu0 %v3383, 16
      %v3463 = vpop.permute.xlu0 %3462
      %3464 = vrot.lane.b32.xlu0 %v3384, 16
      %v3465 = vpop.permute.xlu0 %3464
      %3466 = vrot.lane.b32.xlu0 %v3385, 16
      %v3467 = vpop.permute.xlu0 %3466
      %3468 = vrot.lane.b32.xlu0 %v3386, 16
      %v3469 = vpop.permute.xlu0 %3468
      %3470 = vrot.lane.b32.xlu0 %v3387, 16
      %v3471 = vpop.permute.xlu0 %3470
      %3472 = vrot.lane.b32.xlu0 %v3388, 16
      %v3473 = vpop.permute.xlu0 %3472
      %3474 = vrot.lane.b32.xlu0 %v3389, 16
      %v3475 = vpop.permute.xlu0 %3474
      %3476 = vrot.lane.b32.xlu0 %v3390, 16
      %v3477 = vpop.permute.xlu0 %3476
      %3478 = vrot.lane.b32.xlu0 %v3391, 16
      %v3479 = vpop.permute.xlu0 %3478
      %3480 = vrot.lane.b32.xlu0 %v3392, 16
      %v3481 = vpop.permute.xlu0 %3480
      %3482 = vrot.lane.b32.xlu0 %v3393, 16
      %v3483 = vpop.permute.xlu0 %3482
      %3484 = vrot.lane.b32.xlu0 %v3394, 16
      %v3485 = vpop.permute.xlu0 %3484
      %3486 = vrot.lane.b32.xlu0 %v3395, 16
      %v3487 = vpop.permute.xlu0 %3486
      %3488 = vrot.lane.b32.xlu0 %v3396, 16
      %v3489 = vpop.permute.xlu0 %3488
      %3490 = vrot.lane.b32.xlu0 %v3397, 16
      %v3491 = vpop.permute.xlu0 %3490
      %3492 = vrot.lane.b32.xlu0 %v3398, 16
      %v3493 = vpop.permute.xlu0 %3492
      %3494 = vrot.lane.b32.xlu0 %v3399, 16
      %v3495 = vpop.permute.xlu0 %3494
      %3528 = vst.msk [vmem:[#allocation3] sm:$0xff] %vm1232, %v3433
      %3529 = vst.msk [vmem:[#allocation3 + $0x8] sm:$0xff] %vm1232, %v3435
      %3530 = vst.msk [vmem:[#allocation3 + $0x10] sm:$0xff] %vm1232, %v3437
      %3531 = vst.msk [vmem:[#allocation3 + $0x18] sm:$0xff] %vm1232, %v3439
      %3532 = vst.msk [vmem:[#allocation3 + $0x20] sm:$0xff] %vm1232, %v3441
      %3533 = vst.msk [vmem:[#allocation3 + $0x28] sm:$0xff] %vm1232, %v3443
      %3534 = vst.msk [vmem:[#allocation3 + $0x30] sm:$0xff] %vm1232, %v3445
      %3535 = vst.msk [vmem:[#allocation3 + $0x38] sm:$0xff] %vm1232, %v3447
      %3536 = vst.msk [vmem:[#allocation3 + $0x40] sm:$0xff] %vm1232, %v3449
      %3537 = vst.msk [vmem:[#allocation3 + $0x48] sm:$0xff] %vm1232, %v3451
      %3538 = vst.msk [vmem:[#allocation3 + $0x50] sm:$0xff] %vm1232, %v3453
      %3539 = vst.msk [vmem:[#allocation3 + $0x58] sm:$0xff] %vm1232, %v3455
      %3540 = vst.msk [vmem:[#allocation3 + $0x60] sm:$0xff] %vm1232, %v3457
      %3541 = vst.msk [vmem:[#allocation3 + $0x68] sm:$0xff] %vm1232, %v3459
      %3542 = vst.msk [vmem:[#allocation3 + $0x70] sm:$0xff] %vm1232, %v3461
      %3543 = vst.msk [vmem:[#allocation3 + $0x78] sm:$0xff] %vm1232, %v3463
      %3544 = vst.msk [vmem:[#allocation3 + $0x80] sm:$0xff] %vm1232, %v3465
      %3545 = vst.msk [vmem:[#allocation3 + $0x88] sm:$0xff] %vm1232, %v3467
      %3546 = vst.msk [vmem:[#allocation3 + $0x90] sm:$0xff] %vm1232, %v3469
      %3547 = vst.msk [vmem:[#allocation3 + $0x98] sm:$0xff] %vm1232, %v3471
      %3548 = vst.msk [vmem:[#allocation3 + $0xa0] sm:$0xff] %vm1232, %v3473
      %3549 = vst.msk [vmem:[#allocation3 + $0xa8] sm:$0xff] %vm1232, %v3475
      %3550 = vst.msk [vmem:[#allocation3 + $0xb0] sm:$0xff] %vm1232, %v3477
      %3551 = vst.msk [vmem:[#allocation3 + $0xb8] sm:$0xff] %vm1232, %v3479
      %3552 = vst.msk [vmem:[#allocation3 + $0xc0] sm:$0xff] %vm1232, %v3481
      %3553 = vst.msk [vmem:[#allocation3 + $0xc8] sm:$0xff] %vm1232, %v3483
      %3554 = vst.msk [vmem:[#allocation3 + $0xd0] sm:$0xff] %vm1232, %v3485
      %3555 = vst.msk [vmem:[#allocation3 + $0xd8] sm:$0xff] %vm1232, %v3487
      %3556 = vst.msk [vmem:[#allocation3 + $0xe0] sm:$0xff] %vm1232, %v3489
      %3557 = vst.msk [vmem:[#allocation3 + $0xe8] sm:$0xff] %vm1232, %v3491
      %3558 = vst.msk [vmem:[#allocation3 + $0xf0] sm:$0xff] %vm1232, %v3493
      %3559 = vst.msk [vmem:[#allocation3 + $0xf8] sm:$0xff] %vm1232, %v3495
      %v3560 = vld [vmem:[%s330 + $0xc] sm:$0xff]
      %v3561 = vld [vmem:[%s330 + $0x14] sm:$0xff]
      %v3562 = vld [vmem:[%s330 + $0x2c] sm:$0xff]
      %v3563 = vld [vmem:[%s330 + $0x34] sm:$0xff]
      %v3564 = vld [vmem:[%s330 + $0x4c] sm:$0xff]
      %v3565 = vld [vmem:[%s330 + $0x54] sm:$0xff]
      %v3566 = vld [vmem:[%s330 + $0x6c] sm:$0xff]
      %v3567 = vld [vmem:[%s330 + $0x74] sm:$0xff]
      %v3568 = vld [vmem:[%s330 + $0x8c] sm:$0xff]
      %v3569 = vld [vmem:[%s330 + $0x94] sm:$0xff]
      %v3570 = vld [vmem:[%s330 + $0xac] sm:$0xff]
      %v3571 = vld [vmem:[%s330 + $0xb4] sm:$0xff]
      %v3572 = vld [vmem:[%s330 + $0xcc] sm:$0xff]
      %v3573 = vld [vmem:[%s330 + $0xd4] sm:$0xff]
      %v3574 = vld [vmem:[%s330 + $0xec] sm:$0xff]
      %v3575 = vld [vmem:[%s330 + $0xf4] sm:$0xff]
      %v3576 = vld [vmem:[%s330 + $0x10c] sm:$0xff]
      %v3577 = vld [vmem:[%s330 + $0x114] sm:$0xff]
      %v3578 = vld [vmem:[%s330 + $0x12c] sm:$0xff]
      %v3579 = vld [vmem:[%s330 + $0x134] sm:$0xff]
      %v3580 = vld [vmem:[%s330 + $0x14c] sm:$0xff]
      %v3581 = vld [vmem:[%s330 + $0x154] sm:$0xff]
      %v3582 = vld [vmem:[%s330 + $0x16c] sm:$0xff]
      %v3583 = vld [vmem:[%s330 + $0x174] sm:$0xff]
      %v3584 = vld [vmem:[%s330 + $0x18c] sm:$0xff]
      %v3585 = vld [vmem:[%s330 + $0x194] sm:$0xff]
      %v3586 = vld [vmem:[%s330 + $0x1ac] sm:$0xff]
      %v3587 = vld [vmem:[%s330 + $0x1b4] sm:$0xff]
      %v3588 = vld [vmem:[%s330 + $0x1cc] sm:$0xff]
      %v3589 = vld [vmem:[%s330 + $0x1d4] sm:$0xff]
      %v3590 = vld [vmem:[%s330 + $0x1ec] sm:$0xff]
      %v3591 = vld [vmem:[%s330 + $0x1f4] sm:$0xff]
      %3624 = vrot.lane.b32.xlu0 %v3560, 20
      %v3625 = vpop.permute.xlu0 %3624
      %3626 = vrot.lane.b32.xlu0 %v3561, 20
      %v3627 = vpop.permute.xlu0 %3626
      %3628 = vrot.lane.b32.xlu0 %v3562, 20
      %v3629 = vpop.permute.xlu0 %3628
      %3630 = vrot.lane.b32.xlu0 %v3563, 20
      %v3631 = vpop.permute.xlu0 %3630
      %3632 = vrot.lane.b32.xlu0 %v3564, 20
      %v3633 = vpop.permute.xlu0 %3632
      %3634 = vrot.lane.b32.xlu0 %v3565, 20
      %v3635 = vpop.permute.xlu0 %3634
      %3636 = vrot.lane.b32.xlu0 %v3566, 20
      %v3637 = vpop.permute.xlu0 %3636
      %3638 = vrot.lane.b32.xlu0 %v3567, 20
      %v3639 = vpop.permute.xlu0 %3638
      %3640 = vrot.lane.b32.xlu0 %v3568, 20
      %v3641 = vpop.permute.xlu0 %3640
      %3642 = vrot.lane.b32.xlu0 %v3569, 20
      %v3643 = vpop.permute.xlu0 %3642
      %3644 = vrot.lane.b32.xlu0 %v3570, 20
      %v3645 = vpop.permute.xlu0 %3644
      %3646 = vrot.lane.b32.xlu0 %v3571, 20
      %v3647 = vpop.permute.xlu0 %3646
      %3648 = vrot.lane.b32.xlu0 %v3572, 20
      %v3649 = vpop.permute.xlu0 %3648
      %3650 = vrot.lane.b32.xlu0 %v3573, 20
      %v3651 = vpop.permute.xlu0 %3650
      %3652 = vrot.lane.b32.xlu0 %v3574, 20
      %v3653 = vpop.permute.xlu0 %3652
      %3654 = vrot.lane.b32.xlu0 %v3575, 20
      %v3655 = vpop.permute.xlu0 %3654
      %3656 = vrot.lane.b32.xlu0 %v3576, 20
      %v3657 = vpop.permute.xlu0 %3656
      %3658 = vrot.lane.b32.xlu0 %v3577, 20
      %v3659 = vpop.permute.xlu0 %3658
      %3660 = vrot.lane.b32.xlu0 %v3578, 20
      %v3661 = vpop.permute.xlu0 %3660
      %3662 = vrot.lane.b32.xlu0 %v3579, 20
      %v3663 = vpop.permute.xlu0 %3662
      %3664 = vrot.lane.b32.xlu0 %v3580, 20
      %v3665 = vpop.permute.xlu0 %3664
      %3666 = vrot.lane.b32.xlu0 %v3581, 20
      %v3667 = vpop.permute.xlu0 %3666
      %3668 = vrot.lane.b32.xlu0 %v3582, 20
      %v3669 = vpop.permute.xlu0 %3668
      %3670 = vrot.lane.b32.xlu0 %v3583, 20
      %v3671 = vpop.permute.xlu0 %3670
      %3672 = vrot.lane.b32.xlu0 %v3584, 20
      %v3673 = vpop.permute.xlu0 %3672
      %3674 = vrot.lane.b32.xlu0 %v3585, 20
      %v3675 = vpop.permute.xlu0 %3674
      %3676 = vrot.lane.b32.xlu0 %v3586, 20
      %v3677 = vpop.permute.xlu0 %3676
      %3678 = vrot.lane.b32.xlu0 %v3587, 20
      %v3679 = vpop.permute.xlu0 %3678
      %3680 = vrot.lane.b32.xlu0 %v3588, 20
      %v3681 = vpop.permute.xlu0 %3680
      %3682 = vrot.lane.b32.xlu0 %v3589, 20
      %v3683 = vpop.permute.xlu0 %3682
      %3684 = vrot.lane.b32.xlu0 %v3590, 20
      %v3685 = vpop.permute.xlu0 %3684
      %3686 = vrot.lane.b32.xlu0 %v3591, 20
      %v3687 = vpop.permute.xlu0 %3686
      %3720 = vst.msk [vmem:[#allocation3] sm:$0xff] %vm1425, %v3625
      %3721 = vst.msk [vmem:[#allocation3 + $0x8] sm:$0xff] %vm1425, %v3627
      %3722 = vst.msk [vmem:[#allocation3 + $0x10] sm:$0xff] %vm1425, %v3629
      %3723 = vst.msk [vmem:[#allocation3 + $0x18] sm:$0xff] %vm1425, %v3631
      %3724 = vst.msk [vmem:[#allocation3 + $0x20] sm:$0xff] %vm1425, %v3633
      %3725 = vst.msk [vmem:[#allocation3 + $0x28] sm:$0xff] %vm1425, %v3635
      %3726 = vst.msk [vmem:[#allocation3 + $0x30] sm:$0xff] %vm1425, %v3637
      %3727 = vst.msk [vmem:[#allocation3 + $0x38] sm:$0xff] %vm1425, %v3639
      %3728 = vst.msk [vmem:[#allocation3 + $0x40] sm:$0xff] %vm1425, %v3641
      %3729 = vst.msk [vmem:[#allocation3 + $0x48] sm:$0xff] %vm1425, %v3643
      %3730 = vst.msk [vmem:[#allocation3 + $0x50] sm:$0xff] %vm1425, %v3645
      %3731 = vst.msk [vmem:[#allocation3 + $0x58] sm:$0xff] %vm1425, %v3647
      %3732 = vst.msk [vmem:[#allocation3 + $0x60] sm:$0xff] %vm1425, %v3649
      %3733 = vst.msk [vmem:[#allocation3 + $0x68] sm:$0xff] %vm1425, %v3651
      %3734 = vst.msk [vmem:[#allocation3 + $0x70] sm:$0xff] %vm1425, %v3653
      %3735 = vst.msk [vmem:[#allocation3 + $0x78] sm:$0xff] %vm1425, %v3655
      %3736 = vst.msk [vmem:[#allocation3 + $0x80] sm:$0xff] %vm1425, %v3657
      %3737 = vst.msk [vmem:[#allocation3 + $0x88] sm:$0xff] %vm1425, %v3659
      %3738 = vst.msk [vmem:[#allocation3 + $0x90] sm:$0xff] %vm1425, %v3661
      %3739 = vst.msk [vmem:[#allocation3 + $0x98] sm:$0xff] %vm1425, %v3663
      %3740 = vst.msk [vmem:[#allocation3 + $0xa0] sm:$0xff] %vm1425, %v3665
      %3741 = vst.msk [vmem:[#allocation3 + $0xa8] sm:$0xff] %vm1425, %v3667
      %3742 = vst.msk [vmem:[#allocation3 + $0xb0] sm:$0xff] %vm1425, %v3669
      %3743 = vst.msk [vmem:[#allocation3 + $0xb8] sm:$0xff] %vm1425, %v3671
      %3744 = vst.msk [vmem:[#allocation3 + $0xc0] sm:$0xff] %vm1425, %v3673
      %3745 = vst.msk [vmem:[#allocation3 + $0xc8] sm:$0xff] %vm1425, %v3675
      %3746 = vst.msk [vmem:[#allocation3 + $0xd0] sm:$0xff] %vm1425, %v3677
      %3747 = vst.msk [vmem:[#allocation3 + $0xd8] sm:$0xff] %vm1425, %v3679
      %3748 = vst.msk [vmem:[#allocation3 + $0xe0] sm:$0xff] %vm1425, %v3681
      %3749 = vst.msk [vmem:[#allocation3 + $0xe8] sm:$0xff] %vm1425, %v3683
      %3750 = vst.msk [vmem:[#allocation3 + $0xf0] sm:$0xff] %vm1425, %v3685
      %3751 = vst.msk [vmem:[#allocation3 + $0xf8] sm:$0xff] %vm1425, %v3687
      %s3752 = scalar_lea.vmem [#allocation2], 384
      %v3753 = vld [vmem:[%s3752] sm:$0xff]
      %v3754 = vld [vmem:[%s3752 + $0x8] sm:$0xff]
      %v3755 = vld [vmem:[%s3752 + $0x20] sm:$0xff]
      %v3756 = vld [vmem:[%s3752 + $0x28] sm:$0xff]
      %v3757 = vld [vmem:[%s3752 + $0x40] sm:$0xff]
      %v3758 = vld [vmem:[%s3752 + $0x48] sm:$0xff]
      %v3759 = vld [vmem:[%s3752 + $0x60] sm:$0xff]
      %v3760 = vld [vmem:[%s3752 + $0x68] sm:$0xff]
      %v3761 = vld [vmem:[%s3752 + $0x80] sm:$0xff]
      %v3762 = vld [vmem:[%s3752 + $0x88] sm:$0xff]
      %v3763 = vld [vmem:[%s3752 + $0xa0] sm:$0xff]
      %v3764 = vld [vmem:[%s3752 + $0xa8] sm:$0xff]
      %v3765 = vld [vmem:[%s3752 + $0xc0] sm:$0xff]
      %v3766 = vld [vmem:[%s3752 + $0xc8] sm:$0xff]
      %v3767 = vld [vmem:[%s3752 + $0xe0] sm:$0xff]
      %v3768 = vld [vmem:[%s3752 + $0xe8] sm:$0xff]
      %v3769 = vld [vmem:[%s3752 + $0x100] sm:$0xff]
      %v3770 = vld [vmem:[%s3752 + $0x108] sm:$0xff]
      %v3771 = vld [vmem:[%s3752 + $0x120] sm:$0xff]
      %v3772 = vld [vmem:[%s3752 + $0x128] sm:$0xff]
      %v3773 = vld [vmem:[%s3752 + $0x140] sm:$0xff]
      %v3774 = vld [vmem:[%s3752 + $0x148] sm:$0xff]
      %v3775 = vld [vmem:[%s3752 + $0x160] sm:$0xff]
      %v3776 = vld [vmem:[%s3752 + $0x168] sm:$0xff]
      %v3777 = vld [vmem:[%s3752 + $0x180] sm:$0xff]
      %v3778 = vld [vmem:[%s3752 + $0x188] sm:$0xff]
      %v3779 = vld [vmem:[%s3752 + $0x1a0] sm:$0xff]
      %v3780 = vld [vmem:[%s3752 + $0x1a8] sm:$0xff]
      %v3781 = vld [vmem:[%s3752 + $0x1c0] sm:$0xff]
      %v3782 = vld [vmem:[%s3752 + $0x1c8] sm:$0xff]
      %v3783 = vld [vmem:[%s3752 + $0x1e0] sm:$0xff]
      %v3784 = vld [vmem:[%s3752 + $0x1e8] sm:$0xff]
      %3817 = vrot.lane.b32.xlu0 %v3753, 24
      %v3818 = vpop.permute.xlu0 %3817
      %3819 = vrot.lane.b32.xlu0 %v3754, 24
      %v3820 = vpop.permute.xlu0 %3819
      %3821 = vrot.lane.b32.xlu0 %v3755, 24
      %v3822 = vpop.permute.xlu0 %3821
      %3823 = vrot.lane.b32.xlu0 %v3756, 24
      %v3824 = vpop.permute.xlu0 %3823
      %3825 = vrot.lane.b32.xlu0 %v3757, 24
      %v3826 = vpop.permute.xlu0 %3825
      %3827 = vrot.lane.b32.xlu0 %v3758, 24
      %v3828 = vpop.permute.xlu0 %3827
      %3829 = vrot.lane.b32.xlu0 %v3759, 24
      %v3830 = vpop.permute.xlu0 %3829
      %3831 = vrot.lane.b32.xlu0 %v3760, 24
      %v3832 = vpop.permute.xlu0 %3831
      %3833 = vrot.lane.b32.xlu0 %v3761, 24
      %v3834 = vpop.permute.xlu0 %3833
      %3835 = vrot.lane.b32.xlu0 %v3762, 24
      %v3836 = vpop.permute.xlu0 %3835
      %3837 = vrot.lane.b32.xlu0 %v3763, 24
      %v3838 = vpop.permute.xlu0 %3837
      %3839 = vrot.lane.b32.xlu0 %v3764, 24
      %v3840 = vpop.permute.xlu0 %3839
      %3841 = vrot.lane.b32.xlu0 %v3765, 24
      %v3842 = vpop.permute.xlu0 %3841
      %3843 = vrot.lane.b32.xlu0 %v3766, 24
      %v3844 = vpop.permute.xlu0 %3843
      %3845 = vrot.lane.b32.xlu0 %v3767, 24
      %v3846 = vpop.permute.xlu0 %3845
      %3847 = vrot.lane.b32.xlu0 %v3768, 24
      %v3848 = vpop.permute.xlu0 %3847
      %3849 = vrot.lane.b32.xlu0 %v3769, 24
      %v3850 = vpop.permute.xlu0 %3849
      %3851 = vrot.lane.b32.xlu0 %v3770, 24
      %v3852 = vpop.permute.xlu0 %3851
      %3853 = vrot.lane.b32.xlu0 %v3771, 24
      %v3854 = vpop.permute.xlu0 %3853
      %3855 = vrot.lane.b32.xlu0 %v3772, 24
      %v3856 = vpop.permute.xlu0 %3855
      %3857 = vrot.lane.b32.xlu0 %v3773, 24
      %v3858 = vpop.permute.xlu0 %3857
      %3859 = vrot.lane.b32.xlu0 %v3774, 24
      %v3860 = vpop.permute.xlu0 %3859
      %3861 = vrot.lane.b32.xlu0 %v3775, 24
      %v3862 = vpop.permute.xlu0 %3861
      %3863 = vrot.lane.b32.xlu0 %v3776, 24
      %v3864 = vpop.permute.xlu0 %3863
      %3865 = vrot.lane.b32.xlu0 %v3777, 24
      %v3866 = vpop.permute.xlu0 %3865
      %3867 = vrot.lane.b32.xlu0 %v3778, 24
      %v3868 = vpop.permute.xlu0 %3867
      %3869 = vrot.lane.b32.xlu0 %v3779, 24
      %v3870 = vpop.permute.xlu0 %3869
      %3871 = vrot.lane.b32.xlu0 %v3780, 24
      %v3872 = vpop.permute.xlu0 %3871
      %3873 = vrot.lane.b32.xlu0 %v3781, 24
      %v3874 = vpop.permute.xlu0 %3873
      %3875 = vrot.lane.b32.xlu0 %v3782, 24
      %v3876 = vpop.permute.xlu0 %3875
      %3877 = vrot.lane.b32.xlu0 %v3783, 24
      %v3878 = vpop.permute.xlu0 %3877
      %3879 = vrot.lane.b32.xlu0 %v3784, 24
      %v3880 = vpop.permute.xlu0 %3879
      %3913 = vst.msk [vmem:[#allocation3] sm:$0xff] %vm1619, %v3818
      %3914 = vst.msk [vmem:[#allocation3 + $0x8] sm:$0xff] %vm1619, %v3820
      %3915 = vst.msk [vmem:[#allocation3 + $0x10] sm:$0xff] %vm1619, %v3822
      %3916 = vst.msk [vmem:[#allocation3 + $0x18] sm:$0xff] %vm1619, %v3824
      %3917 = vst.msk [vmem:[#allocation3 + $0x20] sm:$0xff] %vm1619, %v3826
      %3918 = vst.msk [vmem:[#allocation3 + $0x28] sm:$0xff] %vm1619, %v3828
      %3919 = vst.msk [vmem:[#allocation3 + $0x30] sm:$0xff] %vm1619, %v3830
      %3920 = vst.msk [vmem:[#allocation3 + $0x38] sm:$0xff] %vm1619, %v3832
      %3921 = vst.msk [vmem:[#allocation3 + $0x40] sm:$0xff] %vm1619, %v3834
      %3922 = vst.msk [vmem:[#allocation3 + $0x48] sm:$0xff] %vm1619, %v3836
      %3923 = vst.msk [vmem:[#allocation3 + $0x50] sm:$0xff] %vm1619, %v3838
      %3924 = vst.msk [vmem:[#allocation3 + $0x58] sm:$0xff] %vm1619, %v3840
      %3925 = vst.msk [vmem:[#allocation3 + $0x60] sm:$0xff] %vm1619, %v3842
      %3926 = vst.msk [vmem:[#allocation3 + $0x68] sm:$0xff] %vm1619, %v3844
      %3927 = vst.msk [vmem:[#allocation3 + $0x70] sm:$0xff] %vm1619, %v3846
      %3928 = vst.msk [vmem:[#allocation3 + $0x78] sm:$0xff] %vm1619, %v3848
      %3929 = vst.msk [vmem:[#allocation3 + $0x80] sm:$0xff] %vm1619, %v3850
      %3930 = vst.msk [vmem:[#allocation3 + $0x88] sm:$0xff] %vm1619, %v3852
      %3931 = vst.msk [vmem:[#allocation3 + $0x90] sm:$0xff] %vm1619, %v3854
      %3932 = vst.msk [vmem:[#allocation3 + $0x98] sm:$0xff] %vm1619, %v3856
      %3933 = vst.msk [vmem:[#allocation3 + $0xa0] sm:$0xff] %vm1619, %v3858
      %3934 = vst.msk [vmem:[#allocation3 + $0xa8] sm:$0xff] %vm1619, %v3860
      %3935 = vst.msk [vmem:[#allocation3 + $0xb0] sm:$0xff] %vm1619, %v3862
      %3936 = vst.msk [vmem:[#allocation3 + $0xb8] sm:$0xff] %vm1619, %v3864
      %3937 = vst.msk [vmem:[#allocation3 + $0xc0] sm:$0xff] %vm1619, %v3866
      %3938 = vst.msk [vmem:[#allocation3 + $0xc8] sm:$0xff] %vm1619, %v3868
      %3939 = vst.msk [vmem:[#allocation3 + $0xd0] sm:$0xff] %vm1619, %v3870
      %3940 = vst.msk [vmem:[#allocation3 + $0xd8] sm:$0xff] %vm1619, %v3872
      %3941 = vst.msk [vmem:[#allocation3 + $0xe0] sm:$0xff] %vm1619, %v3874
      %3942 = vst.msk [vmem:[#allocation3 + $0xe8] sm:$0xff] %vm1619, %v3876
      %3943 = vst.msk [vmem:[#allocation3 + $0xf0] sm:$0xff] %vm1619, %v3878
      %3944 = vst.msk [vmem:[#allocation3 + $0xf8] sm:$0xff] %vm1619, %v3880
      %v3945 = vld [vmem:[%s3752 + $0x6] sm:$0xff]
      %v3946 = vld [vmem:[%s3752 + $0xe] sm:$0xff]
      %v3947 = vld [vmem:[%s3752 + $0x26] sm:$0xff]
      %v3948 = vld [vmem:[%s3752 + $0x2e] sm:$0xff]
      %v3949 = vld [vmem:[%s3752 + $0x46] sm:$0xff]
      %v3950 = vld [vmem:[%s3752 + $0x4e] sm:$0xff]
      %v3951 = vld [vmem:[%s3752 + $0x66] sm:$0xff]
      %v3952 = vld [vmem:[%s3752 + $0x6e] sm:$0xff]
      %v3953 = vld [vmem:[%s3752 + $0x86] sm:$0xff]
      %v3954 = vld [vmem:[%s3752 + $0x8e] sm:$0xff]
      %v3955 = vld [vmem:[%s3752 + $0xa6] sm:$0xff]
      %v3956 = vld [vmem:[%s3752 + $0xae] sm:$0xff]
      %v3957 = vld [vmem:[%s3752 + $0xc6] sm:$0xff]
      %v3958 = vld [vmem:[%s3752 + $0xce] sm:$0xff]
      %v3959 = vld [vmem:[%s3752 + $0xe6] sm:$0xff]
      %v3960 = vld [vmem:[%s3752 + $0xee] sm:$0xff]
      %v3961 = vld [vmem:[%s3752 + $0x106] sm:$0xff]
      %v3962 = vld [vmem:[%s3752 + $0x10e] sm:$0xff]
      %v3963 = vld [vmem:[%s3752 + $0x126] sm:$0xff]
      %v3964 = vld [vmem:[%s3752 + $0x12e] sm:$0xff]
      %v3965 = vld [vmem:[%s3752 + $0x146] sm:$0xff]
      %v3966 = vld [vmem:[%s3752 + $0x14e] sm:$0xff]
      %v3967 = vld [vmem:[%s3752 + $0x166] sm:$0xff]
      %v3968 = vld [vmem:[%s3752 + $0x16e] sm:$0xff]
      %v3969 = vld [vmem:[%s3752 + $0x186] sm:$0xff]
      %v3970 = vld [vmem:[%s3752 + $0x18e] sm:$0xff]
      %v3971 = vld [vmem:[%s3752 + $0x1a6] sm:$0xff]
      %v3972 = vld [vmem:[%s3752 + $0x1ae] sm:$0xff]
      %v3973 = vld [vmem:[%s3752 + $0x1c6] sm:$0xff]
      %v3974 = vld [vmem:[%s3752 + $0x1ce] sm:$0xff]
      %v3975 = vld [vmem:[%s3752 + $0x1e6] sm:$0xff]
      %v3976 = vld [vmem:[%s3752 + $0x1ee] sm:$0xff]
      %4009 = vrot.lane.b32.xlu0 %v3945, 28
      %v4010 = vpop.permute.xlu0 %4009
      %4011 = vrot.lane.b32.xlu0 %v3946, 28
      %v4012 = vpop.permute.xlu0 %4011
      %4013 = vrot.lane.b32.xlu0 %v3947, 28
      %v4014 = vpop.permute.xlu0 %4013
      %4015 = vrot.lane.b32.xlu0 %v3948, 28
      %v4016 = vpop.permute.xlu0 %4015
      %4017 = vrot.lane.b32.xlu0 %v3949, 28
      %v4018 = vpop.permute.xlu0 %4017
      %4019 = vrot.lane.b32.xlu0 %v3950, 28
      %v4020 = vpop.permute.xlu0 %4019
      %4021 = vrot.lane.b32.xlu0 %v3951, 28
      %v4022 = vpop.permute.xlu0 %4021
      %4023 = vrot.lane.b32.xlu0 %v3952, 28
      %v4024 = vpop.permute.xlu0 %4023
      %4025 = vrot.lane.b32.xlu0 %v3953, 28
      %v4026 = vpop.permute.xlu0 %4025
      %4027 = vrot.lane.b32.xlu0 %v3954, 28
      %v4028 = vpop.permute.xlu0 %4027
      %4029 = vrot.lane.b32.xlu0 %v3955, 28
      %v4030 = vpop.permute.xlu0 %4029
      %4031 = vrot.lane.b32.xlu0 %v3956, 28
      %v4032 = vpop.permute.xlu0 %4031
      %4033 = vrot.lane.b32.xlu0 %v3957, 28
      %v4034 = vpop.permute.xlu0 %4033
      %4035 = vrot.lane.b32.xlu0 %v3958, 28
      %v4036 = vpop.permute.xlu0 %4035
      %4037 = vrot.lane.b32.xlu0 %v3959, 28
      %v4038 = vpop.permute.xlu0 %4037
      %4039 = vrot.lane.b32.xlu0 %v3960, 28
      %v4040 = vpop.permute.xlu0 %4039
      %4041 = vrot.lane.b32.xlu0 %v3961, 28
      %v4042 = vpop.permute.xlu0 %4041
      %4043 = vrot.lane.b32.xlu0 %v3962, 28
      %v4044 = vpop.permute.xlu0 %4043
      %4045 = vrot.lane.b32.xlu0 %v3963, 28
      %v4046 = vpop.permute.xlu0 %4045
      %4047 = vrot.lane.b32.xlu0 %v3964, 28
      %v4048 = vpop.permute.xlu0 %4047
      %4049 = vrot.lane.b32.xlu0 %v3965, 28
      %v4050 = vpop.permute.xlu0 %4049
      %4051 = vrot.lane.b32.xlu0 %v3966, 28
      %v4052 = vpop.permute.xlu0 %4051
      %4053 = vrot.lane.b32.xlu0 %v3967, 28
      %v4054 = vpop.permute.xlu0 %4053
      %4055 = vrot.lane.b32.xlu0 %v3968, 28
      %v4056 = vpop.permute.xlu0 %4055
      %4057 = vrot.lane.b32.xlu0 %v3969, 28
      %v4058 = vpop.permute.xlu0 %4057
      %4059 = vrot.lane.b32.xlu0 %v3970, 28
      %v4060 = vpop.permute.xlu0 %4059
      %4061 = vrot.lane.b32.xlu0 %v3971, 28
      %v4062 = vpop.permute.xlu0 %4061
      %4063 = vrot.lane.b32.xlu0 %v3972, 28
      %v4064 = vpop.permute.xlu0 %4063
      %4065 = vrot.lane.b32.xlu0 %v3973, 28
      %v4066 = vpop.permute.xlu0 %4065
      %4067 = vrot.lane.b32.xlu0 %v3974, 28
      %v4068 = vpop.permute.xlu0 %4067
      %4069 = vrot.lane.b32.xlu0 %v3975, 28
      %v4070 = vpop.permute.xlu0 %4069
      %4071 = vrot.lane.b32.xlu0 %v3976, 28
      %v4072 = vpop.permute.xlu0 %4071
      %4105 = vst.msk [vmem:[#allocation3] sm:$0xff] %vm1812, %v4010
      %4106 = vst.msk [vmem:[#allocation3 + $0x8] sm:$0xff] %vm1812, %v4012
      %4107 = vst.msk [vmem:[#allocation3 + $0x10] sm:$0xff] %vm1812, %v4014
      %4108 = vst.msk [vmem:[#allocation3 + $0x18] sm:$0xff] %vm1812, %v4016
      %4109 = vst.msk [vmem:[#allocation3 + $0x20] sm:$0xff] %vm1812, %v4018
      %4110 = vst.msk [vmem:[#allocation3 + $0x28] sm:$0xff] %vm1812, %v4020
      %4111 = vst.msk [vmem:[#allocation3 + $0x30] sm:$0xff] %vm1812, %v4022
      %4112 = vst.msk [vmem:[#allocation3 + $0x38] sm:$0xff] %vm1812, %v4024
      %4113 = vst.msk [vmem:[#allocation3 + $0x40] sm:$0xff] %vm1812, %v4026
      %4114 = vst.msk [vmem:[#allocation3 + $0x48] sm:$0xff] %vm1812, %v4028
      %4115 = vst.msk [vmem:[#allocation3 + $0x50] sm:$0xff] %vm1812, %v4030
      %4116 = vst.msk [vmem:[#allocation3 + $0x58] sm:$0xff] %vm1812, %v4032
      %4117 = vst.msk [vmem:[#allocation3 + $0x60] sm:$0xff] %vm1812, %v4034
      %4118 = vst.msk [vmem:[#allocation3 + $0x68] sm:$0xff] %vm1812, %v4036
      %4119 = vst.msk [vmem:[#allocation3 + $0x70] sm:$0xff] %vm1812, %v4038
      %4120 = vst.msk [vmem:[#allocation3 + $0x78] sm:$0xff] %vm1812, %v4040
      %4121 = vst.msk [vmem:[#allocation3 + $0x80] sm:$0xff] %vm1812, %v4042
      %4122 = vst.msk [vmem:[#allocation3 + $0x88] sm:$0xff] %vm1812, %v4044
      %4123 = vst.msk [vmem:[#allocation3 + $0x90] sm:$0xff] %vm1812, %v4046
      %4124 = vst.msk [vmem:[#allocation3 + $0x98] sm:$0xff] %vm1812, %v4048
      %4125 = vst.msk [vmem:[#allocation3 + $0xa0] sm:$0xff] %vm1812, %v4050
      %4126 = vst.msk [vmem:[#allocation3 + $0xa8] sm:$0xff] %vm1812, %v4052
      %4127 = vst.msk [vmem:[#allocation3 + $0xb0] sm:$0xff] %vm1812, %v4054
      %4128 = vst.msk [vmem:[#allocation3 + $0xb8] sm:$0xff] %vm1812, %v4056
      %4129 = vst.msk [vmem:[#allocation3 + $0xc0] sm:$0xff] %vm1812, %v4058
      %4130 = vst.msk [vmem:[#allocation3 + $0xc8] sm:$0xff] %vm1812, %v4060
      %4131 = vst.msk [vmem:[#allocation3 + $0xd0] sm:$0xff] %vm1812, %v4062
      %4132 = vst.msk [vmem:[#allocation3 + $0xd8] sm:$0xff] %vm1812, %v4064
      %4133 = vst.msk [vmem:[#allocation3 + $0xe0] sm:$0xff] %vm1812, %v4066
      %4134 = vst.msk [vmem:[#allocation3 + $0xe8] sm:$0xff] %vm1812, %v4068
      %4135 = vst.msk [vmem:[#allocation3 + $0xf0] sm:$0xff] %vm1812, %v4070
      %4136 = vst.msk [vmem:[#allocation3 + $0xf8] sm:$0xff] %vm1812, %v4072
      %v4137 = vld [vmem:[%s3752 + $0xc] sm:$0xff]
      %v4138 = vld [vmem:[%s3752 + $0x14] sm:$0xff]
      %v4139 = vld [vmem:[%s3752 + $0x2c] sm:$0xff]
      %v4140 = vld [vmem:[%s3752 + $0x34] sm:$0xff]
      %v4141 = vld [vmem:[%s3752 + $0x4c] sm:$0xff]
      %v4142 = vld [vmem:[%s3752 + $0x54] sm:$0xff]
      %v4143 = vld [vmem:[%s3752 + $0x6c] sm:$0xff]
      %v4144 = vld [vmem:[%s3752 + $0x74] sm:$0xff]
      %v4145 = vld [vmem:[%s3752 + $0x8c] sm:$0xff]
      %v4146 = vld [vmem:[%s3752 + $0x94] sm:$0xff]
      %v4147 = vld [vmem:[%s3752 + $0xac] sm:$0xff]
      %v4148 = vld [vmem:[%s3752 + $0xb4] sm:$0xff]
      %v4149 = vld [vmem:[%s3752 + $0xcc] sm:$0xff]
      %v4150 = vld [vmem:[%s3752 + $0xd4] sm:$0xff]
      %v4151 = vld [vmem:[%s3752 + $0xec] sm:$0xff]
      %v4152 = vld [vmem:[%s3752 + $0xf4] sm:$0xff]
      %v4153 = vld [vmem:[%s3752 + $0x10c] sm:$0xff]
      %v4154 = vld [vmem:[%s3752 + $0x114] sm:$0xff]
      %v4155 = vld [vmem:[%s3752 + $0x12c] sm:$0xff]
      %v4156 = vld [vmem:[%s3752 + $0x134] sm:$0xff]
      %v4157 = vld [vmem:[%s3752 + $0x14c] sm:$0xff]
      %v4158 = vld [vmem:[%s3752 + $0x154] sm:$0xff]
      %v4159 = vld [vmem:[%s3752 + $0x16c] sm:$0xff]
      %v4160 = vld [vmem:[%s3752 + $0x174] sm:$0xff]
      %v4161 = vld [vmem:[%s3752 + $0x18c] sm:$0xff]
      %v4162 = vld [vmem:[%s3752 + $0x194] sm:$0xff]
      %v4163 = vld [vmem:[%s3752 + $0x1ac] sm:$0xff]
      %v4164 = vld [vmem:[%s3752 + $0x1b4] sm:$0xff]
      %v4165 = vld [vmem:[%s3752 + $0x1cc] sm:$0xff]
      %v4166 = vld [vmem:[%s3752 + $0x1d4] sm:$0xff]
      %v4167 = vld [vmem:[%s3752 + $0x1ec] sm:$0xff]
      %v4168 = vld [vmem:[%s3752 + $0x1f4] sm:$0xff]
      %4201 = vrot.lane.b32.xlu0 %v4137, 32
      %v4202 = vpop.permute.xlu0 %4201
      %4203 = vrot.lane.b32.xlu0 %v4138, 32
      %v4204 = vpop.permute.xlu0 %4203
      %4205 = vrot.lane.b32.xlu0 %v4139, 32
      %v4206 = vpop.permute.xlu0 %4205
      %4207 = vrot.lane.b32.xlu0 %v4140, 32
      %v4208 = vpop.permute.xlu0 %4207
      %4209 = vrot.lane.b32.xlu0 %v4141, 32
      %v4210 = vpop.permute.xlu0 %4209
      %4211 = vrot.lane.b32.xlu0 %v4142, 32
      %v4212 = vpop.permute.xlu0 %4211
      %4213 = vrot.lane.b32.xlu0 %v4143, 32
      %v4214 = vpop.permute.xlu0 %4213
      %4215 = vrot.lane.b32.xlu0 %v4144, 32
      %v4216 = vpop.permute.xlu0 %4215
      %4217 = vrot.lane.b32.xlu0 %v4145, 32
      %v4218 = vpop.permute.xlu0 %4217
      %4219 = vrot.lane.b32.xlu0 %v4146, 32
      %v4220 = vpop.permute.xlu0 %4219
      %4221 = vrot.lane.b32.xlu0 %v4147, 32
      %v4222 = vpop.permute.xlu0 %4221
      %4223 = vrot.lane.b32.xlu0 %v4148, 32
      %v4224 = vpop.permute.xlu0 %4223
      %4225 = vrot.lane.b32.xlu0 %v4149, 32
      %v4226 = vpop.permute.xlu0 %4225
      %4227 = vrot.lane.b32.xlu0 %v4150, 32
      %v4228 = vpop.permute.xlu0 %4227
      %4229 = vrot.lane.b32.xlu0 %v4151, 32
      %v4230 = vpop.permute.xlu0 %4229
      %4231 = vrot.lane.b32.xlu0 %v4152, 32
      %v4232 = vpop.permute.xlu0 %4231
      %4233 = vrot.lane.b32.xlu0 %v4153, 32
      %v4234 = vpop.permute.xlu0 %4233
      %4235 = vrot.lane.b32.xlu0 %v4154, 32
      %v4236 = vpop.permute.xlu0 %4235
      %4237 = vrot.lane.b32.xlu0 %v4155, 32
      %v4238 = vpop.permute.xlu0 %4237
      %4239 = vrot.lane.b32.xlu0 %v4156, 32
      %v4240 = vpop.permute.xlu0 %4239
      %4241 = vrot.lane.b32.xlu0 %v4157, 32
      %v4242 = vpop.permute.xlu0 %4241
      %4243 = vrot.lane.b32.xlu0 %v4158, 32
      %v4244 = vpop.permute.xlu0 %4243
      %4245 = vrot.lane.b32.xlu0 %v4159, 32
      %v4246 = vpop.permute.xlu0 %4245
      %4247 = vrot.lane.b32.xlu0 %v4160, 32
      %v4248 = vpop.permute.xlu0 %4247
      %4249 = vrot.lane.b32.xlu0 %v4161, 32
      %v4250 = vpop.permute.xlu0 %4249
      %4251 = vrot.lane.b32.xlu0 %v4162, 32
      %v4252 = vpop.permute.xlu0 %4251
      %4253 = vrot.lane.b32.xlu0 %v4163, 32
      %v4254 = vpop.permute.xlu0 %4253
      %4255 = vrot.lane.b32.xlu0 %v4164, 32
      %v4256 = vpop.permute.xlu0 %4255
      %4257 = vrot.lane.b32.xlu0 %v4165, 32
      %v4258 = vpop.permute.xlu0 %4257
      %4259 = vrot.lane.b32.xlu0 %v4166, 32
      %v4260 = vpop.permute.xlu0 %4259
      %4261 = vrot.lane.b32.xlu0 %v4167, 32
      %v4262 = vpop.permute.xlu0 %4261
      %4263 = vrot.lane.b32.xlu0 %v4168, 32
      %v4264 = vpop.permute.xlu0 %4263
      %4297 = vst.msk [vmem:[#allocation3] sm:$0xff] %vm2005, %v4202
      %4298 = vst.msk [vmem:[#allocation3 + $0x8] sm:$0xff] %vm2005, %v4204
      %4299 = vst.msk [vmem:[#allocation3 + $0x10] sm:$0xff] %vm2005, %v4206
      %4300 = vst.msk [vmem:[#allocation3 + $0x18] sm:$0xff] %vm2005, %v4208
      %4301 = vst.msk [vmem:[#allocation3 + $0x20] sm:$0xff] %vm2005, %v4210
      %4302 = vst.msk [vmem:[#allocation3 + $0x28] sm:$0xff] %vm2005, %v4212
      %4303 = vst.msk [vmem:[#allocation3 + $0x30] sm:$0xff] %vm2005, %v4214
      %4304 = vst.msk [vmem:[#allocation3 + $0x38] sm:$0xff] %vm2005, %v4216
      %4305 = vst.msk [vmem:[#allocation3 + $0x40] sm:$0xff] %vm2005, %v4218
      %4306 = vst.msk [vmem:[#allocation3 + $0x48] sm:$0xff] %vm2005, %v4220
      %4307 = vst.msk [vmem:[#allocation3 + $0x50] sm:$0xff] %vm2005, %v4222
      %4308 = vst.msk [vmem:[#allocation3 + $0x58] sm:$0xff] %vm2005, %v4224
      %4309 = vst.msk [vmem:[#allocation3 + $0x60] sm:$0xff] %vm2005, %v4226
      %4310 = vst.msk [vmem:[#allocation3 + $0x68] sm:$0xff] %vm2005, %v4228
      %4311 = vst.msk [vmem:[#allocation3 + $0x70] sm:$0xff] %vm2005, %v4230
      %4312 = vst.msk [vmem:[#allocation3 + $0x78] sm:$0xff] %vm2005, %v4232
      %4313 = vst.msk [vmem:[#allocation3 + $0x80] sm:$0xff] %vm2005, %v4234
      %4314 = vst.msk [vmem:[#allocation3 + $0x88] sm:$0xff] %vm2005, %v4236
      %4315 = vst.msk [vmem:[#allocation3 + $0x90] sm:$0xff] %vm2005, %v4238
      %4316 = vst.msk [vmem:[#allocation3 + $0x98] sm:$0xff] %vm2005, %v4240
      %4317 = vst.msk [vmem:[#allocation3 + $0xa0] sm:$0xff] %vm2005, %v4242
      %4318 = vst.msk [vmem:[#allocation3 + $0xa8] sm:$0xff] %vm2005, %v4244
      %4319 = vst.msk [vmem:[#allocation3 + $0xb0] sm:$0xff] %vm2005, %v4246
      %4320 = vst.msk [vmem:[#allocation3 + $0xb8] sm:$0xff] %vm2005, %v4248
      %4321 = vst.msk [vmem:[#allocation3 + $0xc0] sm:$0xff] %vm2005, %v4250
      %4322 = vst.msk [vmem:[#allocation3 + $0xc8] sm:$0xff] %vm2005, %v4252
      %4323 = vst.msk [vmem:[#allocation3 + $0xd0] sm:$0xff] %vm2005, %v4254
      %4324 = vst.msk [vmem:[#allocation3 + $0xd8] sm:$0xff] %vm2005, %v4256
      %4325 = vst.msk [vmem:[#allocation3 + $0xe0] sm:$0xff] %vm2005, %v4258
      %4326 = vst.msk [vmem:[#allocation3 + $0xe8] sm:$0xff] %vm2005, %v4260
      %4327 = vst.msk [vmem:[#allocation3 + $0xf0] sm:$0xff] %vm2005, %v4262
      %4328 = vst.msk [vmem:[#allocation3 + $0xf8] sm:$0xff] %vm2005, %v4264
      %v4329 = vld [vmem:[#allocation3] sm:$0xff]
      %v4330 = vld [vmem:[#allocation3 + $0x8] sm:$0xff]
      %v4331 = vld [vmem:[#allocation3 + $0x10] sm:$0xff]
      %v4332 = vld [vmem:[#allocation3 + $0x18] sm:$0xff]
      %v4333 = vld [vmem:[#allocation3 + $0x20] sm:$0xff]
      %v4334 = vld [vmem:[#allocation3 + $0x28] sm:$0xff]
      %v4335 = vld [vmem:[#allocation3 + $0x30] sm:$0xff]
      %v4336 = vld [vmem:[#allocation3 + $0x38] sm:$0xff]
      %v4337 = vld [vmem:[#allocation3 + $0x40] sm:$0xff]
      %v4338 = vld [vmem:[#allocation3 + $0x48] sm:$0xff]
      %v4339 = vld [vmem:[#allocation3 + $0x50] sm:$0xff]
      %v4340 = vld [vmem:[#allocation3 + $0x58] sm:$0xff]
      %v4341 = vld [vmem:[#allocation3 + $0x60] sm:$0xff]
      %v4342 = vld [vmem:[#allocation3 + $0x68] sm:$0xff]
      %v4343 = vld [vmem:[#allocation3 + $0x70] sm:$0xff]
      %v4344 = vld [vmem:[#allocation3 + $0x78] sm:$0xff]
      %v4345 = vld [vmem:[#allocation3 + $0x80] sm:$0xff]
      %v4346 = vld [vmem:[#allocation3 + $0x88] sm:$0xff]
      %v4347 = vld [vmem:[#allocation3 + $0x90] sm:$0xff]
      %v4348 = vld [vmem:[#allocation3 + $0x98] sm:$0xff]
      %v4349 = vld [vmem:[#allocation3 + $0xa0] sm:$0xff]
      %v4350 = vld [vmem:[#allocation3 + $0xa8] sm:$0xff]
      %v4351 = vld [vmem:[#allocation3 + $0xb0] sm:$0xff]
      %v4352 = vld [vmem:[#allocation3 + $0xb8] sm:$0xff]
      %v4353 = vld [vmem:[#allocation3 + $0xc0] sm:$0xff]
      %v4354 = vld [vmem:[#allocation3 + $0xc8] sm:$0xff]
      %v4355 = vld [vmem:[#allocation3 + $0xd0] sm:$0xff]
      %v4356 = vld [vmem:[#allocation3 + $0xd8] sm:$0xff]
      %v4357 = vld [vmem:[#allocation3 + $0xe0] sm:$0xff]
      %v4358 = vld [vmem:[#allocation3 + $0xe8] sm:$0xff]
      %v4359 = vld [vmem:[#allocation3 + $0xf0] sm:$0xff]
      %v4360 = vld [vmem:[#allocation3 + $0xf8] sm:$0xff]
      %v4361 = vld [vmem:[%s3] sm:$0xff]
      %v4362 = vld [vmem:[%s3 + $0x8] sm:$0xff]
      %v4363 = vld [vmem:[%s3 + $0x10] sm:$0xff]
      %v4364 = vld [vmem:[%s3 + $0x18] sm:$0xff]
      %v4365 = vld [vmem:[%s3 + $0x20] sm:$0xf]
      %v4366 = vld [vmem:[%s4] sm:$0x1]
      %v4368 = vlaneseq
      %v4369 = vshrl.u32 %v4368, 7
      %v4370 = vsub.s32 0, %v4369
      %v4371 = vrot.slane %v4366, %v4370
      %v4374 = vsel %vm2082, %v4329, 0
      %v4377 = vsel %vm2082, %v4330, 0
      %v4380 = vsel %vm2082, %v4331, 0
      %v4383 = vsel %vm2082, %v4332, 0
      %v4386 = vsel %vm2082, %v4333, 0
      %v4389 = vsel %vm2082, %v4334, 0
      %v4392 = vsel %vm2082, %v4335, 0
      %v4395 = vsel %vm2082, %v4336, 0
      %v4398 = vsel %vm2082, %v4337, 0
      %v4401 = vsel %vm2082, %v4338, 0
      %v4404 = vsel %vm2082, %v4339, 0
      %v4407 = vsel %vm2082, %v4340, 0
      %v4410 = vsel %vm2082, %v4341, 0
      %v4413 = vsel %vm2082, %v4342, 0
      %v4416 = vsel %vm2082, %v4343, 0
      %v4419 = vsel %vm2082, %v4344, 0
      %v4422 = vsel %vm2082, %v4345, 0
      %v4425 = vsel %vm2082, %v4346, 0
      %v4428 = vsel %vm2082, %v4347, 0
      %v4431 = vsel %vm2082, %v4348, 0
      %v4434 = vsel %vm2082, %v4349, 0
      %v4437 = vsel %vm2082, %v4350, 0
      %v4440 = vsel %vm2082, %v4351, 0
      %v4443 = vsel %vm2082, %v4352, 0
      %v4446 = vsel %vm2082, %v4353, 0
      %v4449 = vsel %vm2082, %v4354, 0
      %v4452 = vsel %vm2082, %v4355, 0
      %v4455 = vsel %vm2082, %v4356, 0
      %v4458 = vsel %vm2082, %v4357, 0
      %v4461 = vsel %vm2082, %v4358, 0
      %v4464 = vsel %vm2082, %v4359, 0
      %v4467 = vsel %vm2082, %v4360, 0
      %v4470 = vsel %vm2179, %v4365, 0
      %4472 = vmatprep.subr.mxu0 0.0
      %4473 = vmatpush1.msra.mxu0 0.0
      %4474 = vmatprep.subr.mxu0 0.0
      %4475 = vmatpush1.msra.mxu0 0.0
      %4476 = vmatprep.subr.mxu0 0.0
      %4477 = vmatpush1.msra.mxu0 0.0
      %4478 = vmatprep.subr.mxu0 0.0
      %4479 = vmatpush1.msra.mxu0 0.0
      %4480 = vmatprep.subr.mxu0 0.0
      %4481 = vmatpush1.msra.mxu0 0.0
      %4482 = vmatprep.subr.mxu0 0.0
      %4483 = vmatpush1.msra.mxu0 0.0
      %4484 = vmatprep.subr.mxu0 0.0
      %4485 = vmatpush1.msra.mxu0 0.0
      %4486 = vmatprep.subr.mxu0 0.0
      %4487 = vmatpush1.msra.mxu0 0.0
      %4488 = vmatprep.subr.mxu0 0.0
      %4489 = vmatpush1.msra.mxu0 0.0
      %4490 = vmatprep.subr.mxu0 0.0
      %4491 = vmatpush1.msra.mxu0 0.0
      %4492 = vmatprep.subr.mxu0 0.0
      %4493 = vmatpush1.msra.mxu0 0.0
      %4494 = vmatprep.subr.mxu0 0.0
      %4495 = vmatpush1.msra.mxu0 %v4470
      %4496 = vmatprep.subr.mxu0 0.0
      %4497 = vmatpush1.msra.mxu0 %v4364
      %4498 = vmatprep.subr.mxu0 0.0
      %4499 = vmatpush1.msra.mxu0 %v4363
      %4500 = vmatprep.subr.mxu0 0.0
      %4501 = vmatpush1.msra.mxu0 %v4362
      %4502 = vmatprep.subr.mxu0 0.0
      %4503 = vmatpush1.msra.mxu0 %v4361
      %4504 = vmatprep.subr.mxu0 0.0
      %4505 = vmatpush2.msra.mxu0 0.0
      %4506 = vmatprep.subr.mxu0 0.0
      %4507 = vmatpush2.msra.mxu0 0.0
      %4508 = vmatprep.subr.mxu0 0.0
      %4509 = vmatpush2.msra.mxu0 0.0
      %4510 = vmatprep.subr.mxu0 0.0
      %4511 = vmatpush2.msra.mxu0 0.0
      %4512 = vmatprep.subr.mxu0 0.0
      %4513 = vmatpush2.msra.mxu0 0.0
      %4514 = vmatprep.subr.mxu0 0.0
      %4515 = vmatpush2.msra.mxu0 0.0
      %4516 = vmatprep.subr.mxu0 0.0
      %4517 = vmatpush2.msra.mxu0 0.0
      %4518 = vmatprep.subr.mxu0 0.0
      %4519 = vmatpush2.msra.mxu0 0.0
      %4520 = vmatprep.subr.mxu0 0.0
      %4521 = vmatpush2.msra.mxu0 0.0
      %4522 = vmatprep.subr.mxu0 0.0
      %4523 = vmatpush2.msra.mxu0 0.0
      %4524 = vmatprep.subr.mxu0 0.0
      %4525 = vmatpush2.msra.mxu0 0.0
      %4526 = vmatprep.subr.mxu0 0.0
      %4527 = vmatpush2.msra.mxu0 0.0
      %4528 = vmatprep.subr.mxu0 0.0
      %4529 = vmatpush2.msra.mxu0 0.0
      %4530 = vmatprep.subr.mxu0 0.0
      %4531 = vmatpush2.msra.mxu0 0.0
      %4532 = vmatprep.subr.mxu0 0.0
      %4533 = vmatpush2.msra.mxu0 0.0
      %4534 = vmatprep.subr.mxu0 0.0
      %4535 = vmatpush2.msra.mxu0 0.0
      %4536 = vmatprep.mubr.f32.mxu0 0.0
      %4537 = vmatmul.mubr.f32.gmra.mxu0 %v4374
      %v4538 = vpop.f32.mrf.mxu0
      %v4539 = vadd.f32 %v4371, %v4538
      %v4540 = vpop.f32.mrf.mxu0
      %4541 = vmatprep.mubr.f32.mxu0 0.0
      %4542 = vmatmul.mubr.f32.gmra.mxu0 %v4377
      %v4543 = vpop.f32.mrf.mxu0
      %v4544 = vadd.f32 %v4371, %v4543
      %v4545 = vpop.f32.mrf.mxu0
      %4546 = vmatprep.mubr.f32.mxu0 0.0
      %4547 = vmatmul.mubr.f32.gmra.mxu0 %v4380
      %v4548 = vpop.f32.mrf.mxu0
      %v4549 = vadd.f32 %v4371, %v4548
      %v4550 = vpop.f32.mrf.mxu0
      %4551 = vmatprep.mubr.f32.mxu0 0.0
      %4552 = vmatmul.mubr.f32.gmra.mxu0 %v4383
      %v4553 = vpop.f32.mrf.mxu0
      %v4554 = vadd.f32 %v4371, %v4553
      %v4555 = vpop.f32.mrf.mxu0
      %4556 = vmatprep.mubr.f32.mxu0 0.0
      %4557 = vmatmul.mubr.f32.gmra.mxu0 %v4386
      %v4558 = vpop.f32.mrf.mxu0
      %v4559 = vadd.f32 %v4371, %v4558
      %v4560 = vpop.f32.mrf.mxu0
      %4561 = vmatprep.mubr.f32.mxu0 0.0
      %4562 = vmatmul.mubr.f32.gmra.mxu0 %v4389
      %v4563 = vpop.f32.mrf.mxu0
      %v4564 = vadd.f32 %v4371, %v4563
      %v4565 = vpop.f32.mrf.mxu0
      %4566 = vmatprep.mubr.f32.mxu0 0.0
      %4567 = vmatmul.mubr.f32.gmra.mxu0 %v4392
      %v4568 = vpop.f32.mrf.mxu0
      %v4569 = vadd.f32 %v4371, %v4568
      %v4570 = vpop.f32.mrf.mxu0
      %4571 = vmatprep.mubr.f32.mxu0 0.0
      %4572 = vmatmul.mubr.f32.gmra.mxu0 %v4395
      %v4573 = vpop.f32.mrf.mxu0
      %v4574 = vadd.f32 %v4371, %v4573
      %v4575 = vpop.f32.mrf.mxu0
      %4576 = vmatprep.mubr.f32.mxu0 0.0
      %4577 = vmatmul.mubr.f32.gmra.mxu0 %v4398
      %v4578 = vpop.f32.mrf.mxu0
      %v4579 = vadd.f32 %v4371, %v4578
      %v4580 = vpop.f32.mrf.mxu0
      %4581 = vmatprep.mubr.f32.mxu0 0.0
      %4582 = vmatmul.mubr.f32.gmra.mxu0 %v4401
      %v4583 = vpop.f32.mrf.mxu0
      %v4584 = vadd.f32 %v4371, %v4583
      %v4585 = vpop.f32.mrf.mxu0
      %4586 = vmatprep.mubr.f32.mxu0 0.0
      %4587 = vmatmul.mubr.f32.gmra.mxu0 %v4404
      %v4588 = vpop.f32.mrf.mxu0
      %v4589 = vadd.f32 %v4371, %v4588
      %v4590 = vpop.f32.mrf.mxu0
      %4591 = vmatprep.mubr.f32.mxu0 0.0
      %4592 = vmatmul.mubr.f32.gmra.mxu0 %v4407
      %v4593 = vpop.f32.mrf.mxu0
      %v4594 = vadd.f32 %v4371, %v4593
      %v4595 = vpop.f32.mrf.mxu0
      %4596 = vmatprep.mubr.f32.mxu0 0.0
      %4597 = vmatmul.mubr.f32.gmra.mxu0 %v4410
      %v4598 = vpop.f32.mrf.mxu0
      %v4599 = vadd.f32 %v4371, %v4598
      %v4600 = vpop.f32.mrf.mxu0
      %4601 = vmatprep.mubr.f32.mxu0 0.0
      %4602 = vmatmul.mubr.f32.gmra.mxu0 %v4413
      %v4603 = vpop.f32.mrf.mxu0
      %v4604 = vadd.f32 %v4371, %v4603
      %v4605 = vpop.f32.mrf.mxu0
      %4606 = vmatprep.mubr.f32.mxu0 0.0
      %4607 = vmatmul.mubr.f32.gmra.mxu0 %v4416
      %v4608 = vpop.f32.mrf.mxu0
      %v4609 = vadd.f32 %v4371, %v4608
      %v4610 = vpop.f32.mrf.mxu0
      %4611 = vmatprep.mubr.f32.mxu0 0.0
      %4612 = vmatmul.mubr.f32.gmra.mxu0 %v4419
      %v4613 = vpop.f32.mrf.mxu0
      %v4614 = vadd.f32 %v4371, %v4613
      %v4615 = vpop.f32.mrf.mxu0
      %4616 = vmatprep.mubr.f32.mxu0 0.0
      %4617 = vmatmul.mubr.f32.gmra.mxu0 %v4422
      %v4618 = vpop.f32.mrf.mxu0
      %v4619 = vadd.f32 %v4371, %v4618
      %v4620 = vpop.f32.mrf.mxu0
      %4621 = vmatprep.mubr.f32.mxu0 0.0
      %4622 = vmatmul.mubr.f32.gmra.mxu0 %v4425
      %v4623 = vpop.f32.mrf.mxu0
      %v4624 = vadd.f32 %v4371, %v4623
      %v4625 = vpop.f32.mrf.mxu0
      %4626 = vmatprep.mubr.f32.mxu0 0.0
      %4627 = vmatmul.mubr.f32.gmra.mxu0 %v4428
      %v4628 = vpop.f32.mrf.mxu0
      %v4629 = vadd.f32 %v4371, %v4628
      %v4630 = vpop.f32.mrf.mxu0
      %4631 = vmatprep.mubr.f32.mxu0 0.0
      %4632 = vmatmul.mubr.f32.gmra.mxu0 %v4431
      %v4633 = vpop.f32.mrf.mxu0
      %v4634 = vadd.f32 %v4371, %v4633
      %v4635 = vpop.f32.mrf.mxu0
      %4636 = vmatprep.mubr.f32.mxu0 0.0
      %4637 = vmatmul.mubr.f32.gmra.mxu0 %v4434
      %v4638 = vpop.f32.mrf.mxu0
      %v4639 = vadd.f32 %v4371, %v4638
      %v4640 = vpop.f32.mrf.mxu0
      %4641 = vmatprep.mubr.f32.mxu0 0.0
      %4642 = vmatmul.mubr.f32.gmra.mxu0 %v4437
      %v4643 = vpop.f32.mrf.mxu0
      %v4644 = vadd.f32 %v4371, %v4643
      %v4645 = vpop.f32.mrf.mxu0
      %4646 = vmatprep.mubr.f32.mxu0 0.0
      %4647 = vmatmul.mubr.f32.gmra.mxu0 %v4440
      %v4648 = vpop.f32.mrf.mxu0
      %v4649 = vadd.f32 %v4371, %v4648
      %v4650 = vpop.f32.mrf.mxu0
      %4651 = vmatprep.mubr.f32.mxu0 0.0
      %4652 = vmatmul.mubr.f32.gmra.mxu0 %v4443
      %v4653 = vpop.f32.mrf.mxu0
      %v4654 = vadd.f32 %v4371, %v4653
      %v4655 = vpop.f32.mrf.mxu0
      %4656 = vmatprep.mubr.f32.mxu0 0.0
      %4657 = vmatmul.mubr.f32.gmra.mxu0 %v4446
      %v4658 = vpop.f32.mrf.mxu0
      %v4659 = vadd.f32 %v4371, %v4658
      %v4660 = vpop.f32.mrf.mxu0
      %4661 = vmatprep.mubr.f32.mxu0 0.0
      %4662 = vmatmul.mubr.f32.gmra.mxu0 %v4449
      %v4663 = vpop.f32.mrf.mxu0
      %v4664 = vadd.f32 %v4371, %v4663
      %v4665 = vpop.f32.mrf.mxu0
      %4666 = vmatprep.mubr.f32.mxu0 0.0
      %4667 = vmatmul.mubr.f32.gmra.mxu0 %v4452
      %v4668 = vpop.f32.mrf.mxu0
      %v4669 = vadd.f32 %v4371, %v4668
      %v4670 = vpop.f32.mrf.mxu0
      %4671 = vmatprep.mubr.f32.mxu0 0.0
      %4672 = vmatmul.mubr.f32.gmra.mxu0 %v4455
      %v4673 = vpop.f32.mrf.mxu0
      %v4674 = vadd.f32 %v4371, %v4673
      %v4675 = vpop.f32.mrf.mxu0
      %4676 = vmatprep.mubr.f32.mxu0 0.0
      %4677 = vmatmul.mubr.f32.gmra.mxu0 %v4458
      %v4678 = vpop.f32.mrf.mxu0
      %v4679 = vadd.f32 %v4371, %v4678
      %v4680 = vpop.f32.mrf.mxu0
      %4681 = vmatprep.mubr.f32.mxu0 0.0
      %4682 = vmatmul.mubr.f32.gmra.mxu0 %v4461
      %v4683 = vpop.f32.mrf.mxu0
      %v4684 = vadd.f32 %v4371, %v4683
      %v4685 = vpop.f32.mrf.mxu0
      %4686 = vmatprep.mubr.f32.mxu0 0.0
      %4687 = vmatmul.mubr.f32.gmra.mxu0 %v4464
      %v4688 = vpop.f32.mrf.mxu0
      %v4689 = vadd.f32 %v4371, %v4688
      %v4690 = vpop.f32.mrf.mxu0
      %4691 = vmatprep.mubr.f32.mxu0 0.0
      %4692 = vmatmul.mubr.f32.gmra.mxu0 %v4467
      %v4693 = vpop.f32.mrf.mxu0
      %v4694 = vadd.f32 %v4371, %v4693
      %v4695 = vpop.f32.mrf.mxu0
      %4696 = vdwg.mxu0
      %v4697 = vmul.f32 %v4539, 0.5
      %v4698 = vmul.f32 %v4544, 0.5
      %v4699 = vmul.f32 %v4549, 0.5
      %v4700 = vmul.f32 %v4554, 0.5
      %v4701 = vmul.f32 %v4559, 0.5
      %v4702 = vmul.f32 %v4564, 0.5
      %v4703 = vmul.f32 %v4569, 0.5
      %v4704 = vmul.f32 %v4574, 0.5
      %v4705 = vmul.f32 %v4579, 0.5
      %v4706 = vmul.f32 %v4584, 0.5
      %v4707 = vmul.f32 %v4589, 0.5
      %v4708 = vmul.f32 %v4594, 0.5
      %v4709 = vmul.f32 %v4599, 0.5
      %v4710 = vmul.f32 %v4604, 0.5
      %v4711 = vmul.f32 %v4609, 0.5
      %v4712 = vmul.f32 %v4614, 0.5
      %v4713 = vmul.f32 %v4619, 0.5
      %v4714 = vmul.f32 %v4624, 0.5
      %v4715 = vmul.f32 %v4629, 0.5
      %v4716 = vmul.f32 %v4634, 0.5
      %v4717 = vmul.f32 %v4639, 0.5
      %v4718 = vmul.f32 %v4644, 0.5
      %v4719 = vmul.f32 %v4649, 0.5
      %v4720 = vmul.f32 %v4654, 0.5
      %v4721 = vmul.f32 %v4659, 0.5
      %v4722 = vmul.f32 %v4664, 0.5
      %v4723 = vmul.f32 %v4669, 0.5
      %v4724 = vmul.f32 %v4674, 0.5
      %v4725 = vmul.f32 %v4679, 0.5
      %v4726 = vmul.f32 %v4684, 0.5
      %v4727 = vmul.f32 %v4689, 0.5
      %v4728 = vmul.f32 %v4694, 0.5
      %v4729 = vmul.f32 %v4539, 0.044715
      %v4730 = vmul.f32 %v4544, 0.044715
      %v4731 = vmul.f32 %v4549, 0.044715
      %v4732 = vmul.f32 %v4554, 0.044715
      %v4733 = vmul.f32 %v4559, 0.044715
      %v4734 = vmul.f32 %v4564, 0.044715
      %v4735 = vmul.f32 %v4569, 0.044715
      %v4736 = vmul.f32 %v4574, 0.044715
      %v4737 = vmul.f32 %v4579, 0.044715
      %v4738 = vmul.f32 %v4584, 0.044715
      %v4739 = vmul.f32 %v4589, 0.044715
      %v4740 = vmul.f32 %v4594, 0.044715
      %v4741 = vmul.f32 %v4599, 0.044715
      %v4742 = vmul.f32 %v4604, 0.044715
      %v4743 = vmul.f32 %v4609, 0.044715
      %v4744 = vmul.f32 %v4614, 0.044715
      %v4745 = vmul.f32 %v4619, 0.044715
      %v4746 = vmul.f32 %v4624, 0.044715
      %v4747 = vmul.f32 %v4629, 0.044715
      %v4748 = vmul.f32 %v4634, 0.044715
      %v4749 = vmul.f32 %v4639, 0.044715
      %v4750 = vmul.f32 %v4644, 0.044715
      %v4751 = vmul.f32 %v4649, 0.044715
      %v4752 = vmul.f32 %v4654, 0.044715
      %v4753 = vmul.f32 %v4659, 0.044715
      %v4754 = vmul.f32 %v4664, 0.044715
      %v4755 = vmul.f32 %v4669, 0.044715
      %v4756 = vmul.f32 %v4674, 0.044715
      %v4757 = vmul.f32 %v4679, 0.044715
      %v4758 = vmul.f32 %v4684, 0.044715
      %v4759 = vmul.f32 %v4689, 0.044715
      %v4760 = vmul.f32 %v4694, 0.044715
      %v4761 = vmul.f32 %v4729, %v4539
      %v4762 = vmul.f32 %v4730, %v4544
      %v4763 = vmul.f32 %v4731, %v4549
      %v4764 = vmul.f32 %v4732, %v4554
      %v4765 = vmul.f32 %v4733, %v4559
      %v4766 = vmul.f32 %v4734, %v4564
      %v4767 = vmul.f32 %v4735, %v4569
      %v4768 = vmul.f32 %v4736, %v4574
      %v4769 = vmul.f32 %v4737, %v4579
      %v4770 = vmul.f32 %v4738, %v4584
      %v4771 = vmul.f32 %v4739, %v4589
      %v4772 = vmul.f32 %v4740, %v4594
      %v4773 = vmul.f32 %v4741, %v4599
      %v4774 = vmul.f32 %v4742, %v4604
      %v4775 = vmul.f32 %v4743, %v4609
      %v4776 = vmul.f32 %v4744, %v4614
      %v4777 = vmul.f32 %v4745, %v4619
      %v4778 = vmul.f32 %v4746, %v4624
      %v4779 = vmul.f32 %v4747, %v4629
      %v4780 = vmul.f32 %v4748, %v4634
      %v4781 = vmul.f32 %v4749, %v4639
      %v4782 = vmul.f32 %v4750, %v4644
      %v4783 = vmul.f32 %v4751, %v4649
      %v4784 = vmul.f32 %v4752, %v4654
      %v4785 = vmul.f32 %v4753, %v4659
      %v4786 = vmul.f32 %v4754, %v4664
      %v4787 = vmul.f32 %v4755, %v4669
      %v4788 = vmul.f32 %v4756, %v4674
      %v4789 = vmul.f32 %v4757, %v4679
      %v4790 = vmul.f32 %v4758, %v4684
      %v4791 = vmul.f32 %v4759, %v4689
      %v4792 = vmul.f32 %v4760, %v4694
      %v4793 = vmul.f32 %v4761, %v4539
      %v4794 = vmul.f32 %v4762, %v4544
      %v4795 = vmul.f32 %v4763, %v4549
      %v4796 = vmul.f32 %v4764, %v4554
      %v4797 = vmul.f32 %v4765, %v4559
      %v4798 = vmul.f32 %v4766, %v4564
      %v4799 = vmul.f32 %v4767, %v4569
      %v4800 = vmul.f32 %v4768, %v4574
      %v4801 = vmul.f32 %v4769, %v4579
      %v4802 = vmul.f32 %v4770, %v4584
      %v4803 = vmul.f32 %v4771, %v4589
      %v4804 = vmul.f32 %v4772, %v4594
      %v4805 = vmul.f32 %v4773, %v4599
      %v4806 = vmul.f32 %v4774, %v4604
      %v4807 = vmul.f32 %v4775, %v4609
      %v4808 = vmul.f32 %v4776, %v4614
      %v4809 = vmul.f32 %v4777, %v4619
      %v4810 = vmul.f32 %v4778, %v4624
      %v4811 = vmul.f32 %v4779, %v4629
      %v4812 = vmul.f32 %v4780, %v4634
      %v4813 = vmul.f32 %v4781, %v4639
      %v4814 = vmul.f32 %v4782, %v4644
      %v4815 = vmul.f32 %v4783, %v4649
      %v4816 = vmul.f32 %v4784, %v4654
      %v4817 = vmul.f32 %v4785, %v4659
      %v4818 = vmul.f32 %v4786, %v4664
      %v4819 = vmul.f32 %v4787, %v4669
      %v4820 = vmul.f32 %v4788, %v4674
      %v4821 = vmul.f32 %v4789, %v4679
      %v4822 = vmul.f32 %v4790, %v4684
      %v4823 = vmul.f32 %v4791, %v4689
      %v4824 = vmul.f32 %v4792, %v4694
      %v4825 = vadd.f32 %v4539, %v4793
      %v4826 = vadd.f32 %v4544, %v4794
      %v4827 = vadd.f32 %v4549, %v4795
      %v4828 = vadd.f32 %v4554, %v4796
      %v4829 = vadd.f32 %v4559, %v4797
      %v4830 = vadd.f32 %v4564, %v4798
      %v4831 = vadd.f32 %v4569, %v4799
      %v4832 = vadd.f32 %v4574, %v4800
      %v4833 = vadd.f32 %v4579, %v4801
      %v4834 = vadd.f32 %v4584, %v4802
      %v4835 = vadd.f32 %v4589, %v4803
      %v4836 = vadd.f32 %v4594, %v4804
      %v4837 = vadd.f32 %v4599, %v4805
      %v4838 = vadd.f32 %v4604, %v4806
      %v4839 = vadd.f32 %v4609, %v4807
      %v4840 = vadd.f32 %v4614, %v4808
      %v4841 = vadd.f32 %v4619, %v4809
      %v4842 = vadd.f32 %v4624, %v4810
      %v4843 = vadd.f32 %v4629, %v4811
      %v4844 = vadd.f32 %v4634, %v4812
      %v4845 = vadd.f32 %v4639, %v4813
      %v4846 = vadd.f32 %v4644, %v4814
      %v4847 = vadd.f32 %v4649, %v4815
      %v4848 = vadd.f32 %v4654, %v4816
      %v4849 = vadd.f32 %v4659, %v4817
      %v4850 = vadd.f32 %v4664, %v4818
      %v4851 = vadd.f32 %v4669, %v4819
      %v4852 = vadd.f32 %v4674, %v4820
      %v4853 = vadd.f32 %v4679, %v4821
      %v4854 = vadd.f32 %v4684, %v4822
      %v4855 = vadd.f32 %v4689, %v4823
      %v4856 = vadd.f32 %v4694, %v4824
      %v4857 = vmul.f32 %v4825, 0.7978846
      %v4858 = vmul.f32 %v4826, 0.7978846
      %v4859 = vmul.f32 %v4827, 0.7978846
      %v4860 = vmul.f32 %v4828, 0.7978846
      %v4861 = vmul.f32 %v4829, 0.7978846
      %v4862 = vmul.f32 %v4830, 0.7978846
      %v4863 = vmul.f32 %v4831, 0.7978846
      %v4864 = vmul.f32 %v4832, 0.7978846
      %v4865 = vmul.f32 %v4833, 0.7978846
      %v4866 = vmul.f32 %v4834, 0.7978846
      %v4867 = vmul.f32 %v4835, 0.7978846
      %v4868 = vmul.f32 %v4836, 0.7978846
      %v4869 = vmul.f32 %v4837, 0.7978846
      %v4870 = vmul.f32 %v4838, 0.7978846
      %v4871 = vmul.f32 %v4839, 0.7978846
      %v4872 = vmul.f32 %v4840, 0.7978846
      %v4873 = vmul.f32 %v4841, 0.7978846
      %v4874 = vmul.f32 %v4842, 0.7978846
      %v4875 = vmul.f32 %v4843, 0.7978846
      %v4876 = vmul.f32 %v4844, 0.7978846
      %v4877 = vmul.f32 %v4845, 0.7978846
      %v4878 = vmul.f32 %v4846, 0.7978846
      %v4879 = vmul.f32 %v4847, 0.7978846
      %v4880 = vmul.f32 %v4848, 0.7978846
      %v4881 = vmul.f32 %v4849, 0.7978846
      %v4882 = vmul.f32 %v4850, 0.7978846
      %v4883 = vmul.f32 %v4851, 0.7978846
      %v4884 = vmul.f32 %v4852, 0.7978846
      %v4885 = vmul.f32 %v4853, 0.7978846
      %v4886 = vmul.f32 %v4854, 0.7978846
      %v4887 = vmul.f32 %v4855, 0.7978846
      %v4888 = vmul.f32 %v4856, 0.7978846
      %v4889 = vtanh.pop %v4857
      %v4890 = vtanh.pop %v4858
      %v4891 = vtanh.pop %v4859
      %v4892 = vtanh.pop %v4860
      %v4893 = vtanh.pop %v4861
      %v4894 = vtanh.pop %v4862
      %v4895 = vtanh.pop %v4863
      %v4896 = vtanh.pop %v4864
      %v4897 = vtanh.pop %v4865
      %v4898 = vtanh.pop %v4866
      %v4899 = vtanh.pop %v4867
      %v4900 = vtanh.pop %v4868
      %v4901 = vtanh.pop %v4869
      %v4902 = vtanh.pop %v4870
      %v4903 = vtanh.pop %v4871
      %v4904 = vtanh.pop %v4872
      %v4905 = vtanh.pop %v4873
      %v4906 = vtanh.pop %v4874
      %v4907 = vtanh.pop %v4875
      %v4908 = vtanh.pop %v4876
      %v4909 = vtanh.pop %v4877
      %v4910 = vtanh.pop %v4878
      %v4911 = vtanh.pop %v4879
      %v4912 = vtanh.pop %v4880
      %v4913 = vtanh.pop %v4881
      %v4914 = vtanh.pop %v4882
      %v4915 = vtanh.pop %v4883
      %v4916 = vtanh.pop %v4884
      %v4917 = vtanh.pop %v4885
      %v4918 = vtanh.pop %v4886
      %v4919 = vtanh.pop %v4887
      %v4920 = vtanh.pop %v4888
      %v4921 = vadd.f32 %v4889, 1.0
      %v4922 = vadd.f32 %v4890, 1.0
      %v4923 = vadd.f32 %v4891, 1.0
      %v4924 = vadd.f32 %v4892, 1.0
      %v4925 = vadd.f32 %v4893, 1.0
      %v4926 = vadd.f32 %v4894, 1.0
      %v4927 = vadd.f32 %v4895, 1.0
      %v4928 = vadd.f32 %v4896, 1.0
      %v4929 = vadd.f32 %v4897, 1.0
      %v4930 = vadd.f32 %v4898, 1.0
      %v4931 = vadd.f32 %v4899, 1.0
      %v4932 = vadd.f32 %v4900, 1.0
      %v4933 = vadd.f32 %v4901, 1.0
      %v4934 = vadd.f32 %v4902, 1.0
      %v4935 = vadd.f32 %v4903, 1.0
      %v4936 = vadd.f32 %v4904, 1.0
      %v4937 = vadd.f32 %v4905, 1.0
      %v4938 = vadd.f32 %v4906, 1.0
      %v4939 = vadd.f32 %v4907, 1.0
      %v4940 = vadd.f32 %v4908, 1.0
      %v4941 = vadd.f32 %v4909, 1.0
      %v4942 = vadd.f32 %v4910, 1.0
      %v4943 = vadd.f32 %v4911, 1.0
      %v4944 = vadd.f32 %v4912, 1.0
      %v4945 = vadd.f32 %v4913, 1.0
      %v4946 = vadd.f32 %v4914, 1.0
      %v4947 = vadd.f32 %v4915, 1.0
      %v4948 = vadd.f32 %v4916, 1.0
      %v4949 = vadd.f32 %v4917, 1.0
      %v4950 = vadd.f32 %v4918, 1.0
      %v4951 = vadd.f32 %v4919, 1.0
      %v4952 = vadd.f32 %v4920, 1.0
      %v4953 = vmul.f32 %v4697, %v4921
      %v4954 = vmul.f32 %v4698, %v4922
      %v4955 = vmul.f32 %v4699, %v4923
      %v4956 = vmul.f32 %v4700, %v4924
      %v4957 = vmul.f32 %v4701, %v4925
      %v4958 = vmul.f32 %v4702, %v4926
      %v4959 = vmul.f32 %v4703, %v4927
      %v4960 = vmul.f32 %v4704, %v4928
      %v4961 = vmul.f32 %v4705, %v4929
      %v4962 = vmul.f32 %v4706, %v4930
      %v4963 = vmul.f32 %v4707, %v4931
      %v4964 = vmul.f32 %v4708, %v4932
      %v4965 = vmul.f32 %v4709, %v4933
      %v4966 = vmul.f32 %v4710, %v4934
      %v4967 = vmul.f32 %v4711, %v4935
      %v4968 = vmul.f32 %v4712, %v4936
      %v4969 = vmul.f32 %v4713, %v4937
      %v4970 = vmul.f32 %v4714, %v4938
      %v4971 = vmul.f32 %v4715, %v4939
      %v4972 = vmul.f32 %v4716, %v4940
      %v4973 = vmul.f32 %v4717, %v4941
      %v4974 = vmul.f32 %v4718, %v4942
      %v4975 = vmul.f32 %v4719, %v4943
      %v4976 = vmul.f32 %v4720, %v4944
      %v4977 = vmul.f32 %v4721, %v4945
      %v4978 = vmul.f32 %v4722, %v4946
      %v4979 = vmul.f32 %v4723, %v4947
      %v4980 = vmul.f32 %v4724, %v4948
      %v4981 = vmul.f32 %v4725, %v4949
      %v4982 = vmul.f32 %v4726, %v4950
      %v4983 = vmul.f32 %v4727, %v4951
      %v4984 = vmul.f32 %v4728, %v4952
      %v4985 = vld [vmem:[%s5] sm:$0xf]
      %v4986 = vld [vmem:[%s6] sm:$0x1]
      %v4988 = vlaneseq
      %v4989 = vshrl.u32 %v4988, 7
      %v4990 = vsub.s32 0, %v4989
      %v4991 = vrot.slane %v4986, %v4990
      %v4994 = vsel %vm279, %v4953, 0
      %v4997 = vsel %vm279, %v4954, 0
      %v5000 = vsel %vm279, %v4955, 0
      %v5003 = vsel %vm279, %v4956, 0
      %v5006 = vsel %vm279, %v4957, 0
      %v5009 = vsel %vm279, %v4958, 0
      %v5012 = vsel %vm279, %v4959, 0
      %v5015 = vsel %vm279, %v4960, 0
      %v5018 = vsel %vm279, %v4961, 0
      %v5021 = vsel %vm279, %v4962, 0
      %v5024 = vsel %vm279, %v4963, 0
      %v5027 = vsel %vm279, %v4964, 0
      %v5030 = vsel %vm279, %v4965, 0
      %v5033 = vsel %vm279, %v4966, 0
      %v5036 = vsel %vm279, %v4967, 0
      %v5039 = vsel %vm279, %v4968, 0
      %v5042 = vsel %vm279, %v4969, 0
      %v5045 = vsel %vm279, %v4970, 0
      %v5048 = vsel %vm279, %v4971, 0
      %v5051 = vsel %vm279, %v4972, 0
      %v5054 = vsel %vm279, %v4973, 0
      %v5057 = vsel %vm279, %v4974, 0
      %v5060 = vsel %vm279, %v4975, 0
      %v5063 = vsel %vm279, %v4976, 0
      %v5066 = vsel %vm279, %v4977, 0
      %v5069 = vsel %vm279, %v4978, 0
      %v5072 = vsel %vm279, %v4979, 0
      %v5075 = vsel %vm279, %v4980, 0
      %v5078 = vsel %vm279, %v4981, 0
      %v5081 = vsel %vm279, %v4982, 0
      %v5084 = vsel %vm279, %v4983, 0
      %v5087 = vsel %vm279, %v4984, 0
      %v5090 = vsel %vm2179, %v4985, 0
      %5092 = vmatprep.subr.mxu0 0.0
      %5093 = vmatpush1.msra.mxu0 0.0
      %5094 = vmatprep.subr.mxu0 0.0
      %5095 = vmatpush1.msra.mxu0 0.0
      %5096 = vmatprep.subr.mxu0 0.0
      %5097 = vmatpush1.msra.mxu0 0.0
      %5098 = vmatprep.subr.mxu0 0.0
      %5099 = vmatpush1.msra.mxu0 0.0
      %5100 = vmatprep.subr.mxu0 0.0
      %5101 = vmatpush1.msra.mxu0 0.0
      %5102 = vmatprep.subr.mxu0 0.0
      %5103 = vmatpush1.msra.mxu0 0.0
      %5104 = vmatprep.subr.mxu0 0.0
      %5105 = vmatpush1.msra.mxu0 0.0
      %5106 = vmatprep.subr.mxu0 0.0
      %5107 = vmatpush1.msra.mxu0 0.0
      %5108 = vmatprep.subr.mxu0 0.0
      %5109 = vmatpush1.msra.mxu0 0.0
      %5110 = vmatprep.subr.mxu0 0.0
      %5111 = vmatpush1.msra.mxu0 0.0
      %5112 = vmatprep.subr.mxu0 0.0
      %5113 = vmatpush1.msra.mxu0 0.0
      %5114 = vmatprep.subr.mxu0 0.0
      %5115 = vmatpush1.msra.mxu0 0.0
      %5116 = vmatprep.subr.mxu0 0.0
      %5117 = vmatpush1.msra.mxu0 0.0
      %5118 = vmatprep.subr.mxu0 0.0
      %5119 = vmatpush1.msra.mxu0 0.0
      %5120 = vmatprep.subr.mxu0 0.0
      %5121 = vmatpush1.msra.mxu0 0.0
      %5122 = vmatprep.subr.mxu0 0.0
      %5123 = vmatpush1.msra.mxu0 %v5090
      %5124 = vmatprep.subr.mxu0 0.0
      %5125 = vmatpush2.msra.mxu0 0.0
      %5126 = vmatprep.subr.mxu0 0.0
      %5127 = vmatpush2.msra.mxu0 0.0
      %5128 = vmatprep.subr.mxu0 0.0
      %5129 = vmatpush2.msra.mxu0 0.0
      %5130 = vmatprep.subr.mxu0 0.0
      %5131 = vmatpush2.msra.mxu0 0.0
      %5132 = vmatprep.subr.mxu0 0.0
      %5133 = vmatpush2.msra.mxu0 0.0
      %5134 = vmatprep.subr.mxu0 0.0
      %5135 = vmatpush2.msra.mxu0 0.0
      %5136 = vmatprep.subr.mxu0 0.0
      %5137 = vmatpush2.msra.mxu0 0.0
      %5138 = vmatprep.subr.mxu0 0.0
      %5139 = vmatpush2.msra.mxu0 0.0
      %5140 = vmatprep.subr.mxu0 0.0
      %5141 = vmatpush2.msra.mxu0 0.0
      %5142 = vmatprep.subr.mxu0 0.0
      %5143 = vmatpush2.msra.mxu0 0.0
      %5144 = vmatprep.subr.mxu0 0.0
      %5145 = vmatpush2.msra.mxu0 0.0
      %5146 = vmatprep.subr.mxu0 0.0
      %5147 = vmatpush2.msra.mxu0 0.0
      %5148 = vmatprep.subr.mxu0 0.0
      %5149 = vmatpush2.msra.mxu0 0.0
      %5150 = vmatprep.subr.mxu0 0.0
      %5151 = vmatpush2.msra.mxu0 0.0
      %5152 = vmatprep.subr.mxu0 0.0
      %5153 = vmatpush2.msra.mxu0 0.0
      %5154 = vmatprep.subr.mxu0 0.0
      %5155 = vmatpush2.msra.mxu0 0.0
      %5156 = vmatprep.mubr.f32.mxu0 0.0
      %5157 = vmatmul.mubr.f32.gmra.mxu0 %v4994
      %v5158 = vpop.f32.mrf.mxu0
      %v5159 = vadd.f32 %v4991, %v5158
      %v5160 = vpop.f32.mrf.mxu0
      %5161 = vmatprep.mubr.f32.mxu0 0.0
      %5162 = vmatmul.mubr.f32.gmra.mxu0 %v4997
      %v5163 = vpop.f32.mrf.mxu0
      %v5164 = vadd.f32 %v4991, %v5163
      %v5165 = vpop.f32.mrf.mxu0
      %5166 = vmatprep.mubr.f32.mxu0 0.0
      %5167 = vmatmul.mubr.f32.gmra.mxu0 %v5000
      %v5168 = vpop.f32.mrf.mxu0
      %v5169 = vadd.f32 %v4991, %v5168
      %v5170 = vpop.f32.mrf.mxu0
      %5171 = vmatprep.mubr.f32.mxu0 0.0
      %5172 = vmatmul.mubr.f32.gmra.mxu0 %v5003
      %v5173 = vpop.f32.mrf.mxu0
      %v5174 = vadd.f32 %v4991, %v5173
      %v5175 = vpop.f32.mrf.mxu0
      %5176 = vmatprep.mubr.f32.mxu0 0.0
      %5177 = vmatmul.mubr.f32.gmra.mxu0 %v5006
      %v5178 = vpop.f32.mrf.mxu0
      %v5179 = vadd.f32 %v4991, %v5178
      %v5180 = vpop.f32.mrf.mxu0
      %5181 = vmatprep.mubr.f32.mxu0 0.0
      %5182 = vmatmul.mubr.f32.gmra.mxu0 %v5009
      %v5183 = vpop.f32.mrf.mxu0
      %v5184 = vadd.f32 %v4991, %v5183
      %v5185 = vpop.f32.mrf.mxu0
      %5186 = vmatprep.mubr.f32.mxu0 0.0
      %5187 = vmatmul.mubr.f32.gmra.mxu0 %v5012
      %v5188 = vpop.f32.mrf.mxu0
      %v5189 = vadd.f32 %v4991, %v5188
      %v5190 = vpop.f32.mrf.mxu0
      %5191 = vmatprep.mubr.f32.mxu0 0.0
      %5192 = vmatmul.mubr.f32.gmra.mxu0 %v5015
      %v5193 = vpop.f32.mrf.mxu0
      %v5194 = vadd.f32 %v4991, %v5193
      %v5195 = vpop.f32.mrf.mxu0
      %5196 = vmatprep.mubr.f32.mxu0 0.0
      %5197 = vmatmul.mubr.f32.gmra.mxu0 %v5018
      %v5198 = vpop.f32.mrf.mxu0
      %v5199 = vadd.f32 %v4991, %v5198
      %v5200 = vpop.f32.mrf.mxu0
      %5201 = vmatprep.mubr.f32.mxu0 0.0
      %5202 = vmatmul.mubr.f32.gmra.mxu0 %v5021
      %v5203 = vpop.f32.mrf.mxu0
      %v5204 = vadd.f32 %v4991, %v5203
      %v5205 = vpop.f32.mrf.mxu0
      %5206 = vmatprep.mubr.f32.mxu0 0.0
      %5207 = vmatmul.mubr.f32.gmra.mxu0 %v5024
      %v5208 = vpop.f32.mrf.mxu0
      %v5209 = vadd.f32 %v4991, %v5208
      %v5210 = vpop.f32.mrf.mxu0
      %5211 = vmatprep.mubr.f32.mxu0 0.0
      %5212 = vmatmul.mubr.f32.gmra.mxu0 %v5027
      %v5213 = vpop.f32.mrf.mxu0
      %v5214 = vadd.f32 %v4991, %v5213
      %v5215 = vpop.f32.mrf.mxu0
      %5216 = vmatprep.mubr.f32.mxu0 0.0
      %5217 = vmatmul.mubr.f32.gmra.mxu0 %v5030
      %v5218 = vpop.f32.mrf.mxu0
      %v5219 = vadd.f32 %v4991, %v5218
      %v5220 = vpop.f32.mrf.mxu0
      %5221 = vmatprep.mubr.f32.mxu0 0.0
      %5222 = vmatmul.mubr.f32.gmra.mxu0 %v5033
      %v5223 = vpop.f32.mrf.mxu0
      %v5224 = vadd.f32 %v4991, %v5223
      %v5225 = vpop.f32.mrf.mxu0
      %5226 = vmatprep.mubr.f32.mxu0 0.0
      %5227 = vmatmul.mubr.f32.gmra.mxu0 %v5036
      %v5228 = vpop.f32.mrf.mxu0
      %v5229 = vadd.f32 %v4991, %v5228
      %v5230 = vpop.f32.mrf.mxu0
      %5231 = vmatprep.mubr.f32.mxu0 0.0
      %5232 = vmatmul.mubr.f32.gmra.mxu0 %v5039
      %v5233 = vpop.f32.mrf.mxu0
      %v5234 = vadd.f32 %v4991, %v5233
      %v5235 = vpop.f32.mrf.mxu0
      %5236 = vmatprep.mubr.f32.mxu0 0.0
      %5237 = vmatmul.mubr.f32.gmra.mxu0 %v5042
      %v5238 = vpop.f32.mrf.mxu0
      %v5239 = vadd.f32 %v4991, %v5238
      %v5240 = vpop.f32.mrf.mxu0
      %5241 = vmatprep.mubr.f32.mxu0 0.0
      %5242 = vmatmul.mubr.f32.gmra.mxu0 %v5045
      %v5243 = vpop.f32.mrf.mxu0
      %v5244 = vadd.f32 %v4991, %v5243
      %v5245 = vpop.f32.mrf.mxu0
      %5246 = vmatprep.mubr.f32.mxu0 0.0
      %5247 = vmatmul.mubr.f32.gmra.mxu0 %v5048
      %v5248 = vpop.f32.mrf.mxu0
      %v5249 = vadd.f32 %v4991, %v5248
      %v5250 = vpop.f32.mrf.mxu0
      %5251 = vmatprep.mubr.f32.mxu0 0.0
      %5252 = vmatmul.mubr.f32.gmra.mxu0 %v5051
      %v5253 = vpop.f32.mrf.mxu0
      %v5254 = vadd.f32 %v4991, %v5253
      %v5255 = vpop.f32.mrf.mxu0
      %5256 = vmatprep.mubr.f32.mxu0 0.0
      %5257 = vmatmul.mubr.f32.gmra.mxu0 %v5054
      %v5258 = vpop.f32.mrf.mxu0
      %v5259 = vadd.f32 %v4991, %v5258
      %v5260 = vpop.f32.mrf.mxu0
      %5261 = vmatprep.mubr.f32.mxu0 0.0
      %5262 = vmatmul.mubr.f32.gmra.mxu0 %v5057
      %v5263 = vpop.f32.mrf.mxu0
      %v5264 = vadd.f32 %v4991, %v5263
      %v5265 = vpop.f32.mrf.mxu0
      %5266 = vmatprep.mubr.f32.mxu0 0.0
      %5267 = vmatmul.mubr.f32.gmra.mxu0 %v5060
      %v5268 = vpop.f32.mrf.mxu0
      %v5269 = vadd.f32 %v4991, %v5268
      %v5270 = vpop.f32.mrf.mxu0
      %5271 = vmatprep.mubr.f32.mxu0 0.0
      %5272 = vmatmul.mubr.f32.gmra.mxu0 %v5063
      %v5273 = vpop.f32.mrf.mxu0
      %v5274 = vadd.f32 %v4991, %v5273
      %v5275 = vpop.f32.mrf.mxu0
      %5276 = vmatprep.mubr.f32.mxu0 0.0
      %5277 = vmatmul.mubr.f32.gmra.mxu0 %v5066
      %v5278 = vpop.f32.mrf.mxu0
      %v5279 = vadd.f32 %v4991, %v5278
      %v5280 = vpop.f32.mrf.mxu0
      %5281 = vmatprep.mubr.f32.mxu0 0.0
      %5282 = vmatmul.mubr.f32.gmra.mxu0 %v5069
      %v5283 = vpop.f32.mrf.mxu0
      %v5284 = vadd.f32 %v4991, %v5283
      %v5285 = vpop.f32.mrf.mxu0
      %5286 = vmatprep.mubr.f32.mxu0 0.0
      %5287 = vmatmul.mubr.f32.gmra.mxu0 %v5072
      %v5288 = vpop.f32.mrf.mxu0
      %v5289 = vadd.f32 %v4991, %v5288
      %v5290 = vpop.f32.mrf.mxu0
      %5291 = vmatprep.mubr.f32.mxu0 0.0
      %5292 = vmatmul.mubr.f32.gmra.mxu0 %v5075
      %v5293 = vpop.f32.mrf.mxu0
      %v5294 = vadd.f32 %v4991, %v5293
      %v5295 = vpop.f32.mrf.mxu0
      %5296 = vmatprep.mubr.f32.mxu0 0.0
      %5297 = vmatmul.mubr.f32.gmra.mxu0 %v5078
      %v5298 = vpop.f32.mrf.mxu0
      %v5299 = vadd.f32 %v4991, %v5298
      %v5300 = vpop.f32.mrf.mxu0
      %5301 = vmatprep.mubr.f32.mxu0 0.0
      %5302 = vmatmul.mubr.f32.gmra.mxu0 %v5081
      %v5303 = vpop.f32.mrf.mxu0
      %v5304 = vadd.f32 %v4991, %v5303
      %v5305 = vpop.f32.mrf.mxu0
      %5306 = vmatprep.mubr.f32.mxu0 0.0
      %5307 = vmatmul.mubr.f32.gmra.mxu0 %v5084
      %v5308 = vpop.f32.mrf.mxu0
      %v5309 = vadd.f32 %v4991, %v5308
      %v5310 = vpop.f32.mrf.mxu0
      %5311 = vmatprep.mubr.f32.mxu0 0.0
      %5312 = vmatmul.mubr.f32.gmra.mxu0 %v5087
      %v5313 = vpop.f32.mrf.mxu0
      %v5314 = vadd.f32 %v4991, %v5313
      %v5315 = vpop.f32.mrf.mxu0
      %5316 = vdwg.mxu0
      %v5317 = vmul.f32 %v5159, 0.5
      %v5318 = vmul.f32 %v5164, 0.5
      %v5319 = vmul.f32 %v5169, 0.5
      %v5320 = vmul.f32 %v5174, 0.5
      %v5321 = vmul.f32 %v5179, 0.5
      %v5322 = vmul.f32 %v5184, 0.5
      %v5323 = vmul.f32 %v5189, 0.5
      %v5324 = vmul.f32 %v5194, 0.5
      %v5325 = vmul.f32 %v5199, 0.5
      %v5326 = vmul.f32 %v5204, 0.5
      %v5327 = vmul.f32 %v5209, 0.5
      %v5328 = vmul.f32 %v5214, 0.5
      %v5329 = vmul.f32 %v5219, 0.5
      %v5330 = vmul.f32 %v5224, 0.5
      %v5331 = vmul.f32 %v5229, 0.5
      %v5332 = vmul.f32 %v5234, 0.5
      %v5333 = vmul.f32 %v5239, 0.5
      %v5334 = vmul.f32 %v5244, 0.5
      %v5335 = vmul.f32 %v5249, 0.5
      %v5336 = vmul.f32 %v5254, 0.5
      %v5337 = vmul.f32 %v5259, 0.5
      %v5338 = vmul.f32 %v5264, 0.5
      %v5339 = vmul.f32 %v5269, 0.5
      %v5340 = vmul.f32 %v5274, 0.5
      %v5341 = vmul.f32 %v5279, 0.5
      %v5342 = vmul.f32 %v5284, 0.5
      %v5343 = vmul.f32 %v5289, 0.5
      %v5344 = vmul.f32 %v5294, 0.5
      %v5345 = vmul.f32 %v5299, 0.5
      %v5346 = vmul.f32 %v5304, 0.5
      %v5347 = vmul.f32 %v5309, 0.5
      %v5348 = vmul.f32 %v5314, 0.5
      %v5349 = vmul.f32 %v5159, 0.044715
      %v5350 = vmul.f32 %v5164, 0.044715
      %v5351 = vmul.f32 %v5169, 0.044715
      %v5352 = vmul.f32 %v5174, 0.044715
      %v5353 = vmul.f32 %v5179, 0.044715
      %v5354 = vmul.f32 %v5184, 0.044715
      %v5355 = vmul.f32 %v5189, 0.044715
      %v5356 = vmul.f32 %v5194, 0.044715
      %v5357 = vmul.f32 %v5199, 0.044715
      %v5358 = vmul.f32 %v5204, 0.044715
      %v5359 = vmul.f32 %v5209, 0.044715
      %v5360 = vmul.f32 %v5214, 0.044715
      %v5361 = vmul.f32 %v5219, 0.044715
      %v5362 = vmul.f32 %v5224, 0.044715
      %v5363 = vmul.f32 %v5229, 0.044715
      %v5364 = vmul.f32 %v5234, 0.044715
      %v5365 = vmul.f32 %v5239, 0.044715
      %v5366 = vmul.f32 %v5244, 0.044715
      %v5367 = vmul.f32 %v5249, 0.044715
      %v5368 = vmul.f32 %v5254, 0.044715
      %v5369 = vmul.f32 %v5259, 0.044715
      %v5370 = vmul.f32 %v5264, 0.044715
      %v5371 = vmul.f32 %v5269, 0.044715
      %v5372 = vmul.f32 %v5274, 0.044715
      %v5373 = vmul.f32 %v5279, 0.044715
      %v5374 = vmul.f32 %v5284, 0.044715
      %v5375 = vmul.f32 %v5289, 0.044715
      %v5376 = vmul.f32 %v5294, 0.044715
      %v5377 = vmul.f32 %v5299, 0.044715
      %v5378 = vmul.f32 %v5304, 0.044715
      %v5379 = vmul.f32 %v5309, 0.044715
      %v5380 = vmul.f32 %v5314, 0.044715
      %v5381 = vmul.f32 %v5349, %v5159
      %v5382 = vmul.f32 %v5350, %v5164
      %v5383 = vmul.f32 %v5351, %v5169
      %v5384 = vmul.f32 %v5352, %v5174
      %v5385 = vmul.f32 %v5353, %v5179
      %v5386 = vmul.f32 %v5354, %v5184
      %v5387 = vmul.f32 %v5355, %v5189
      %v5388 = vmul.f32 %v5356, %v5194
      %v5389 = vmul.f32 %v5357, %v5199
      %v5390 = vmul.f32 %v5358, %v5204
      %v5391 = vmul.f32 %v5359, %v5209
      %v5392 = vmul.f32 %v5360, %v5214
      %v5393 = vmul.f32 %v5361, %v5219
      %v5394 = vmul.f32 %v5362, %v5224
      %v5395 = vmul.f32 %v5363, %v5229
      %v5396 = vmul.f32 %v5364, %v5234
      %v5397 = vmul.f32 %v5365, %v5239
      %v5398 = vmul.f32 %v5366, %v5244
      %v5399 = vmul.f32 %v5367, %v5249
      %v5400 = vmul.f32 %v5368, %v5254
      %v5401 = vmul.f32 %v5369, %v5259
      %v5402 = vmul.f32 %v5370, %v5264
      %v5403 = vmul.f32 %v5371, %v5269
      %v5404 = vmul.f32 %v5372, %v5274
      %v5405 = vmul.f32 %v5373, %v5279
      %v5406 = vmul.f32 %v5374, %v5284
      %v5407 = vmul.f32 %v5375, %v5289
      %v5408 = vmul.f32 %v5376, %v5294
      %v5409 = vmul.f32 %v5377, %v5299
      %v5410 = vmul.f32 %v5378, %v5304
      %v5411 = vmul.f32 %v5379, %v5309
      %v5412 = vmul.f32 %v5380, %v5314
      %v5413 = vmul.f32 %v5381, %v5159
      %v5414 = vmul.f32 %v5382, %v5164
      %v5415 = vmul.f32 %v5383, %v5169
      %v5416 = vmul.f32 %v5384, %v5174
      %v5417 = vmul.f32 %v5385, %v5179
      %v5418 = vmul.f32 %v5386, %v5184
      %v5419 = vmul.f32 %v5387, %v5189
      %v5420 = vmul.f32 %v5388, %v5194
      %v5421 = vmul.f32 %v5389, %v5199
      %v5422 = vmul.f32 %v5390, %v5204
      %v5423 = vmul.f32 %v5391, %v5209
      %v5424 = vmul.f32 %v5392, %v5214
      %v5425 = vmul.f32 %v5393, %v5219
      %v5426 = vmul.f32 %v5394, %v5224
      %v5427 = vmul.f32 %v5395, %v5229
      %v5428 = vmul.f32 %v5396, %v5234
      %v5429 = vmul.f32 %v5397, %v5239
      %v5430 = vmul.f32 %v5398, %v5244
      %v5431 = vmul.f32 %v5399, %v5249
      %v5432 = vmul.f32 %v5400, %v5254
      %v5433 = vmul.f32 %v5401, %v5259
      %v5434 = vmul.f32 %v5402, %v5264
      %v5435 = vmul.f32 %v5403, %v5269
      %v5436 = vmul.f32 %v5404, %v5274
      %v5437 = vmul.f32 %v5405, %v5279
      %v5438 = vmul.f32 %v5406, %v5284
      %v5439 = vmul.f32 %v5407, %v5289
      %v5440 = vmul.f32 %v5408, %v5294
      %v5441 = vmul.f32 %v5409, %v5299
      %v5442 = vmul.f32 %v5410, %v5304
      %v5443 = vmul.f32 %v5411, %v5309
      %v5444 = vmul.f32 %v5412, %v5314
      %v5445 = vadd.f32 %v5159, %v5413
      %v5446 = vadd.f32 %v5164, %v5414
      %v5447 = vadd.f32 %v5169, %v5415
      %v5448 = vadd.f32 %v5174, %v5416
      %v5449 = vadd.f32 %v5179, %v5417
      %v5450 = vadd.f32 %v5184, %v5418
      %v5451 = vadd.f32 %v5189, %v5419
      %v5452 = vadd.f32 %v5194, %v5420
      %v5453 = vadd.f32 %v5199, %v5421
      %v5454 = vadd.f32 %v5204, %v5422
      %v5455 = vadd.f32 %v5209, %v5423
      %v5456 = vadd.f32 %v5214, %v5424
      %v5457 = vadd.f32 %v5219, %v5425
      %v5458 = vadd.f32 %v5224, %v5426
      %v5459 = vadd.f32 %v5229, %v5427
      %v5460 = vadd.f32 %v5234, %v5428
      %v5461 = vadd.f32 %v5239, %v5429
      %v5462 = vadd.f32 %v5244, %v5430
      %v5463 = vadd.f32 %v5249, %v5431
      %v5464 = vadd.f32 %v5254, %v5432
      %v5465 = vadd.f32 %v5259, %v5433
      %v5466 = vadd.f32 %v5264, %v5434
      %v5467 = vadd.f32 %v5269, %v5435
      %v5468 = vadd.f32 %v5274, %v5436
      %v5469 = vadd.f32 %v5279, %v5437
      %v5470 = vadd.f32 %v5284, %v5438
      %v5471 = vadd.f32 %v5289, %v5439
      %v5472 = vadd.f32 %v5294, %v5440
      %v5473 = vadd.f32 %v5299, %v5441
      %v5474 = vadd.f32 %v5304, %v5442
      %v5475 = vadd.f32 %v5309, %v5443
      %v5476 = vadd.f32 %v5314, %v5444
      %v5477 = vmul.f32 %v5445, 0.7978846
      %v5478 = vmul.f32 %v5446, 0.7978846
      %v5479 = vmul.f32 %v5447, 0.7978846
      %v5480 = vmul.f32 %v5448, 0.7978846
      %v5481 = vmul.f32 %v5449, 0.7978846
      %v5482 = vmul.f32 %v5450, 0.7978846
      %v5483 = vmul.f32 %v5451, 0.7978846
      %v5484 = vmul.f32 %v5452, 0.7978846
      %v5485 = vmul.f32 %v5453, 0.7978846
      %v5486 = vmul.f32 %v5454, 0.7978846
      %v5487 = vmul.f32 %v5455, 0.7978846
      %v5488 = vmul.f32 %v5456, 0.7978846
      %v5489 = vmul.f32 %v5457, 0.7978846
      %v5490 = vmul.f32 %v5458, 0.7978846
      %v5491 = vmul.f32 %v5459, 0.7978846
      %v5492 = vmul.f32 %v5460, 0.7978846
      %v5493 = vmul.f32 %v5461, 0.7978846
      %v5494 = vmul.f32 %v5462, 0.7978846
      %v5495 = vmul.f32 %v5463, 0.7978846
      %v5496 = vmul.f32 %v5464, 0.7978846
      %v5497 = vmul.f32 %v5465, 0.7978846
      %v5498 = vmul.f32 %v5466, 0.7978846
      %v5499 = vmul.f32 %v5467, 0.7978846
      %v5500 = vmul.f32 %v5468, 0.7978846
      %v5501 = vmul.f32 %v5469, 0.7978846
      %v5502 = vmul.f32 %v5470, 0.7978846
      %v5503 = vmul.f32 %v5471, 0.7978846
      %v5504 = vmul.f32 %v5472, 0.7978846
      %v5505 = vmul.f32 %v5473, 0.7978846
      %v5506 = vmul.f32 %v5474, 0.7978846
      %v5507 = vmul.f32 %v5475, 0.7978846
      %v5508 = vmul.f32 %v5476, 0.7978846
      %v5509 = vtanh.pop %v5477
      %v5510 = vtanh.pop %v5478
      %v5511 = vtanh.pop %v5479
      %v5512 = vtanh.pop %v5480
      %v5513 = vtanh.pop %v5481
      %v5514 = vtanh.pop %v5482
      %v5515 = vtanh.pop %v5483
      %v5516 = vtanh.pop %v5484
      %v5517 = vtanh.pop %v5485
      %v5518 = vtanh.pop %v5486
      %v5519 = vtanh.pop %v5487
      %v5520 = vtanh.pop %v5488
      %v5521 = vtanh.pop %v5489
      %v5522 = vtanh.pop %v5490
      %v5523 = vtanh.pop %v5491
      %v5524 = vtanh.pop %v5492
      %v5525 = vtanh.pop %v5493
      %v5526 = vtanh.pop %v5494
      %v5527 = vtanh.pop %v5495
      %v5528 = vtanh.pop %v5496
      %v5529 = vtanh.pop %v5497
      %v5530 = vtanh.pop %v5498
      %v5531 = vtanh.pop %v5499
      %v5532 = vtanh.pop %v5500
      %v5533 = vtanh.pop %v5501
      %v5534 = vtanh.pop %v5502
      %v5535 = vtanh.pop %v5503
      %v5536 = vtanh.pop %v5504
      %v5537 = vtanh.pop %v5505
      %v5538 = vtanh.pop %v5506
      %v5539 = vtanh.pop %v5507
      %v5540 = vtanh.pop %v5508
      %v5541 = vadd.f32 %v5509, 1.0
      %v5542 = vadd.f32 %v5510, 1.0
      %v5543 = vadd.f32 %v5511, 1.0
      %v5544 = vadd.f32 %v5512, 1.0
      %v5545 = vadd.f32 %v5513, 1.0
      %v5546 = vadd.f32 %v5514, 1.0
      %v5547 = vadd.f32 %v5515, 1.0
      %v5548 = vadd.f32 %v5516, 1.0
      %v5549 = vadd.f32 %v5517, 1.0
      %v5550 = vadd.f32 %v5518, 1.0
      %v5551 = vadd.f32 %v5519, 1.0
      %v5552 = vadd.f32 %v5520, 1.0
      %v5553 = vadd.f32 %v5521, 1.0
      %v5554 = vadd.f32 %v5522, 1.0
      %v5555 = vadd.f32 %v5523, 1.0
      %v5556 = vadd.f32 %v5524, 1.0
      %v5557 = vadd.f32 %v5525, 1.0
      %v5558 = vadd.f32 %v5526, 1.0
      %v5559 = vadd.f32 %v5527, 1.0
      %v5560 = vadd.f32 %v5528, 1.0
      %v5561 = vadd.f32 %v5529, 1.0
      %v5562 = vadd.f32 %v5530, 1.0
      %v5563 = vadd.f32 %v5531, 1.0
      %v5564 = vadd.f32 %v5532, 1.0
      %v5565 = vadd.f32 %v5533, 1.0
      %v5566 = vadd.f32 %v5534, 1.0
      %v5567 = vadd.f32 %v5535, 1.0
      %v5568 = vadd.f32 %v5536, 1.0
      %v5569 = vadd.f32 %v5537, 1.0
      %v5570 = vadd.f32 %v5538, 1.0
      %v5571 = vadd.f32 %v5539, 1.0
      %v5572 = vadd.f32 %v5540, 1.0
      %v5573 = vmul.f32 %v5317, %v5541
      %v5574 = vmul.f32 %v5318, %v5542
      %v5575 = vmul.f32 %v5319, %v5543
      %v5576 = vmul.f32 %v5320, %v5544
      %v5577 = vmul.f32 %v5321, %v5545
      %v5578 = vmul.f32 %v5322, %v5546
      %v5579 = vmul.f32 %v5323, %v5547
      %v5580 = vmul.f32 %v5324, %v5548
      %v5581 = vmul.f32 %v5325, %v5549
      %v5582 = vmul.f32 %v5326, %v5550
      %v5583 = vmul.f32 %v5327, %v5551
      %v5584 = vmul.f32 %v5328, %v5552
      %v5585 = vmul.f32 %v5329, %v5553
      %v5586 = vmul.f32 %v5330, %v5554
      %v5587 = vmul.f32 %v5331, %v5555
      %v5588 = vmul.f32 %v5332, %v5556
      %v5589 = vmul.f32 %v5333, %v5557
      %v5590 = vmul.f32 %v5334, %v5558
      %v5591 = vmul.f32 %v5335, %v5559
      %v5592 = vmul.f32 %v5336, %v5560
      %v5593 = vmul.f32 %v5337, %v5561
      %v5594 = vmul.f32 %v5338, %v5562
      %v5595 = vmul.f32 %v5339, %v5563
      %v5596 = vmul.f32 %v5340, %v5564
      %v5597 = vmul.f32 %v5341, %v5565
      %v5598 = vmul.f32 %v5342, %v5566
      %v5599 = vmul.f32 %v5343, %v5567
      %v5600 = vmul.f32 %v5344, %v5568
      %v5601 = vmul.f32 %v5345, %v5569
      %v5602 = vmul.f32 %v5346, %v5570
      %v5603 = vmul.f32 %v5347, %v5571
      %v5604 = vmul.f32 %v5348, %v5572
      %v5605 = vld [vmem:[%s273] sm:$0xff]
      %v5606 = vld [vmem:[%s273 + $0x8] sm:$0xff]
      %v5607 = vld [vmem:[%s273 + $0x10] sm:$0xff]
      %v5608 = vld [vmem:[%s273 + $0x18] sm:$0xff]
      %v5609 = vld [vmem:[%s273 + $0x20] sm:$0xff]
      %v5610 = vld [vmem:[%s273 + $0x28] sm:$0xff]
      %v5611 = vld [vmem:[%s273 + $0x30] sm:$0xff]
      %v5612 = vld [vmem:[%s273 + $0x38] sm:$0xff]
      %v5613 = vld [vmem:[%s273 + $0x40] sm:$0xff]
      %v5614 = vld [vmem:[%s273 + $0x48] sm:$0xff]
      %v5615 = vld [vmem:[%s273 + $0x50] sm:$0xff]
      %v5616 = vld [vmem:[%s273 + $0x58] sm:$0xff]
      %v5617 = vld [vmem:[%s273 + $0x60] sm:$0xff]
      %v5618 = vld [vmem:[%s273 + $0x68] sm:$0xff]
      %v5619 = vld [vmem:[%s273 + $0x70] sm:$0xff]
      %v5620 = vld [vmem:[%s273 + $0x78] sm:$0xff]
      %v5621 = vld [vmem:[%s273 + $0x80] sm:$0xff]
      %v5622 = vld [vmem:[%s273 + $0x88] sm:$0xff]
      %v5623 = vld [vmem:[%s273 + $0x90] sm:$0xff]
      %v5624 = vld [vmem:[%s273 + $0x98] sm:$0xff]
      %v5625 = vld [vmem:[%s273 + $0xa0] sm:$0xff]
      %v5626 = vld [vmem:[%s273 + $0xa8] sm:$0xff]
      %v5627 = vld [vmem:[%s273 + $0xb0] sm:$0xff]
      %v5628 = vld [vmem:[%s273 + $0xb8] sm:$0xff]
      %v5629 = vld [vmem:[%s273 + $0xc0] sm:$0xff]
      %v5630 = vld [vmem:[%s273 + $0xc8] sm:$0xff]
      %v5631 = vld [vmem:[%s273 + $0xd0] sm:$0xff]
      %v5632 = vld [vmem:[%s273 + $0xd8] sm:$0xff]
      %v5633 = vld [vmem:[%s273 + $0xe0] sm:$0xff]
      %v5634 = vld [vmem:[%s273 + $0xe8] sm:$0xff]
      %v5635 = vld [vmem:[%s273 + $0xf0] sm:$0xff]
      %v5636 = vld [vmem:[%s273 + $0xf8] sm:$0xff]
      %v5637 = vmul.f32 %v5573, %v5605
      %v5638 = vmul.f32 %v5574, %v5606
      %v5639 = vmul.f32 %v5575, %v5607
      %v5640 = vmul.f32 %v5576, %v5608
      %v5641 = vmul.f32 %v5577, %v5609
      %v5642 = vmul.f32 %v5578, %v5610
      %v5643 = vmul.f32 %v5579, %v5611
      %v5644 = vmul.f32 %v5580, %v5612
      %v5645 = vmul.f32 %v5581, %v5613
      %v5646 = vmul.f32 %v5582, %v5614
      %v5647 = vmul.f32 %v5583, %v5615
      %v5648 = vmul.f32 %v5584, %v5616
      %v5649 = vmul.f32 %v5585, %v5617
      %v5650 = vmul.f32 %v5586, %v5618
      %v5651 = vmul.f32 %v5587, %v5619
      %v5652 = vmul.f32 %v5588, %v5620
      %v5653 = vmul.f32 %v5589, %v5621
      %v5654 = vmul.f32 %v5590, %v5622
      %v5655 = vmul.f32 %v5591, %v5623
      %v5656 = vmul.f32 %v5592, %v5624
      %v5657 = vmul.f32 %v5593, %v5625
      %v5658 = vmul.f32 %v5594, %v5626
      %v5659 = vmul.f32 %v5595, %v5627
      %v5660 = vmul.f32 %v5596, %v5628
      %v5661 = vmul.f32 %v5597, %v5629
      %v5662 = vmul.f32 %v5598, %v5630
      %v5663 = vmul.f32 %v5599, %v5631
      %v5664 = vmul.f32 %v5600, %v5632
      %v5665 = vmul.f32 %v5601, %v5633
      %v5666 = vmul.f32 %v5602, %v5634
      %v5667 = vmul.f32 %v5603, %v5635
      %v5668 = vmul.f32 %v5604, %v5636
      %5669 = vst.msk [vmem:[%s278] sm:$0xff] %vm279, %v5637
      %5670 = vst.msk [vmem:[%s278 + $0x8] sm:$0xff] %vm279, %v5638
      %5671 = vst.msk [vmem:[%s278 + $0x10] sm:$0xff] %vm279, %v5639
      %5672 = vst.msk [vmem:[%s278 + $0x18] sm:$0xff] %vm279, %v5640
      %5673 = vst.msk [vmem:[%s278 + $0x20] sm:$0xff] %vm279, %v5641
      %5674 = vst.msk [vmem:[%s278 + $0x28] sm:$0xff] %vm279, %v5642
      %5675 = vst.msk [vmem:[%s278 + $0x30] sm:$0xff] %vm279, %v5643
      %5676 = vst.msk [vmem:[%s278 + $0x38] sm:$0xff] %vm279, %v5644
      %5677 = vst.msk [vmem:[%s278 + $0x40] sm:$0xff] %vm279, %v5645
      %5678 = vst.msk [vmem:[%s278 + $0x48] sm:$0xff] %vm279, %v5646
      %5679 = vst.msk [vmem:[%s278 + $0x50] sm:$0xff] %vm279, %v5647
      %5680 = vst.msk [vmem:[%s278 + $0x58] sm:$0xff] %vm279, %v5648
      %5681 = vst.msk [vmem:[%s278 + $0x60] sm:$0xff] %vm279, %v5649
      %5682 = vst.msk [vmem:[%s278 + $0x68] sm:$0xff] %vm279, %v5650
      %5683 = vst.msk [vmem:[%s278 + $0x70] sm:$0xff] %vm279, %v5651
      %5684 = vst.msk [vmem:[%s278 + $0x78] sm:$0xff] %vm279, %v5652
      %5685 = vst.msk [vmem:[%s278 + $0x80] sm:$0xff] %vm279, %v5653
      %5686 = vst.msk [vmem:[%s278 + $0x88] sm:$0xff] %vm279, %v5654
      %5687 = vst.msk [vmem:[%s278 + $0x90] sm:$0xff] %vm279, %v5655
      %5688 = vst.msk [vmem:[%s278 + $0x98] sm:$0xff] %vm279, %v5656
      %5689 = vst.msk [vmem:[%s278 + $0xa0] sm:$0xff] %vm279, %v5657
      %5690 = vst.msk [vmem:[%s278 + $0xa8] sm:$0xff] %vm279, %v5658
      %5691 = vst.msk [vmem:[%s278 + $0xb0] sm:$0xff] %vm279, %v5659
      %5692 = vst.msk [vmem:[%s278 + $0xb8] sm:$0xff] %vm279, %v5660
      %5693 = vst.msk [vmem:[%s278 + $0xc0] sm:$0xff] %vm279, %v5661
      %5694 = vst.msk [vmem:[%s278 + $0xc8] sm:$0xff] %vm279, %v5662
      %5695 = vst.msk [vmem:[%s278 + $0xd0] sm:$0xff] %vm279, %v5663
      %5696 = vst.msk [vmem:[%s278 + $0xd8] sm:$0xff] %vm279, %v5664
      %5697 = vst.msk [vmem:[%s278 + $0xe0] sm:$0xff] %vm279, %v5665
      %5698 = vst.msk [vmem:[%s278 + $0xe8] sm:$0xff] %vm279, %v5666
      %5699 = vst.msk [vmem:[%s278 + $0xf0] sm:$0xff] %vm279, %v5667
      %5700 = vst.msk [vmem:[%s278 + $0xf8] sm:$0xff] %vm279, %v5668
      %p5701 = scmp.lt.s32.totalorder %s18, 1
      %s5702 = scalar_select %p5701, %s18, 1
      %s5703 = smul.addr %s5702, 32
      %s5704 = smul.addr %s5703, 8
      %s5705 = scalar_lea.vmem %s7, %s5704
      // Predicated region
      $region49: #{tpu_custom_call.1} parent=47 // pred_check
        %p5706 = pneg %p188
      $region50: #{tpu_custom_call.1} parent=47 // pred_check_branch
        %5708 = sbr.rel (%p5706) target = $region52
      $region51: #{tpu_custom_call.1} parent=47 // pred_region
        _
      $region52: #{tpu_custom_call.1} parent=47 // pred_fallthru
        _
    $region48: #{tpu_custom_call.1} parent=5 // pred_fallthru
      _
    %p5709 = scmp.le.s32.totalorder 2, %s13
    // Predicated region
    $region53: #{tpu_custom_call.1} parent=5 // pred_check
      %p5710 = pneg %p5709
    $region54: #{tpu_custom_call.1} parent=5 // pred_check_branch
      %5712 = sbr.rel (%p5710) target = $region56
    $region55: #{tpu_custom_call.1} parent=5 // pred_region
      %s5713 = ssub.s32 %s13, 2
      // Predicated region
      $region57: #{tpu_custom_call.1} parent=55 // pred_check
        %p5714 = pneg %p194
      $region58: #{tpu_custom_call.1} parent=55 // pred_check_branch
        %5716 = sbr.rel (%p5714) target = $region60
      $region59: #{tpu_custom_call.1} parent=55 // pred_region
        %p5717 = scmp.lt.s32.totalorder %s19, 1
        %s5718 = scalar_select %p5717, %s19, 1
        %s5719 = smul.addr %s5718, 32
        %s5720 = smul.addr %s5719, 8
        %s5721 = scalar_lea.vmem %s7, %s5720
      $region60: #{tpu_custom_call.1} parent=55 // pred_fallthru
        _
    $region56: #{tpu_custom_call.1} parent=5 // pred_fallthru
      _
  $region6: #{tpu_custom_call.1} parent=0 // loop_footer
    %s17 = sadd.s32 1, %s13
  $region7: #{tpu_custom_call.1} parent=0 // loop_footer_branch
    %12 = sbr.rel target = $region3
  $region8: #{tpu_custom_call.1} parent=0 // loop_exit
    _

</llo_original>
